<compile_context>
chip_gen: v7x
topology: tpu7x:2x2x1
jax: 0.10.0
libtpu: 0.0.40
codegen_flags: <defaults>
</compile_context>

<pallas_src>
import functools

import jax
import jax.numpy as jnp
from jax import lax
from jax.experimental import pallas as pl
from jax.experimental.pallas import tpu as pltpu


def _pixel_shuffle_kernel(x_ref, o_ref, *, r, Hb, W, Cb):
    """One grid point == one (batch, channel-block, row-block) triple.

    x_ref: (1, Cb*r*r, Hb, W)     -- r^2 input planes per output channel
    o_ref: (1, Cb, Hb*r, W*r)     -- the shuffled output tile
    """
    Wr = W * r

    def do_channel(c):
        # One slab load of all r^2 planes of this channel, native dtype.
        planes = x_ref[0, pl.ds(c * (r * r), r * r)]            # (r*r, Hb, W)

        rows = []
        for i in range(r):
            # Lane interleave: row_i[h, w*r + j] = planes[i*r + j, h, w]
            row = jnp.stack([planes[i * r + j] for j in range(r)], axis=-1)
            rows.append(row.reshape(Hb, Wr))                    # (Hb, Wr)

        # Sublane interleave: full[h*r + i, :] = rows[i][h, :]
        full = jnp.stack(rows, axis=1).reshape(Hb * r, Wr)      # (Hb*r, Wr)

        # Single dense (lane- and sublane-dense) store per channel.
        o_ref[0, c] = full

    if Cb == 1:
        do_channel(0)
    else:
        def body(c, carry):
            do_channel(c)
            return carry
        lax.fori_loop(0, Cb, body, 0, unroll=min(Cb, 8))


def _vmem_budget():
    """(block budget, vmem_limit_bytes), branched on the chip's VMEM size."""
    cap = None
    try:
        cap = pltpu.get_tpu_info().vmem_capacity_bytes
    except Exception:
        cap = None
    if cap is not None and cap >= (100 << 20):    # v5e / v6e: 128 MiB VMEM
        return 48 << 20, 64 << 20
    return 20 << 20, 32 << 20                      # v7x (64 MiB) or unknown


def _pick_blocks(N, C, H, W, r, itemsize, budget_bytes):
    """Pick (channel block, row block) so double-buffered blocks + in-kernel
    temporaries fit the VMEM budget, preferring an even grid-step count."""
    def step_bytes(cb, hb):
        blk = cb * r * r * hb * W * itemsize       # input block == output block size
        tmp = 4 * r * r * hb * W * itemsize        # planes + rows + full + slack
        return 4 * blk + tmp                        # 2 bufs x (in + out) + temporaries

    # Row block: prefer the full plane; otherwise a multiple-of-8 divisor of H.
    hb_candidates = [H] + sorted(
        [d for d in range(8, H, 8) if H % d == 0], reverse=True)
    hb = hb_candidates[-1]
    for cand in hb_candidates:
        if step_bytes(1, cand) <= budget_bytes:
            hb = cand
            break

    divisors = [d for d in range(1, C + 1) if C % d == 0]
    fitting = [d for d in divisors if step_bytes(d, hb) <= budget_bytes] or [1]

    def steps(cb):
        return N * (C // cb) * (H // hb)

    even = [d for d in fitting if steps(d) >= 2 and steps(d) % 2 == 0]
    atleast2 = [d for d in fitting if steps(d) >= 2]
    if even:
        cb = max(even)            # biggest block that still splits evenly over 2 TCs
    elif atleast2:
        cb = max(atleast2)
    else:
        cb = max(fitting)
    return cb, hb


def pixel_shuffle(x, upscale_factor):
    """Pallas TPU implementation of torch.nn.PixelShuffle (2-D case), NCHW."""
    r = int(upscale_factor)
    N, Cin, H, W = x.shape
    assert Cin % (r * r) == 0, "channels must be divisible by upscale_factor**2"
    C = Cin // (r * r)
    Hr, Wr = H * r, W * r

    budget, vmem_limit = _vmem_budget()
    cb, hb = _pick_blocks(N, C, H, W, r, jnp.dtype(x.dtype).itemsize, budget)

    kernel = functools.partial(_pixel_shuffle_kernel, r=r, Hb=hb, W=W, Cb=cb)

    return pl.pallas_call(
        kernel,
        out_shape=jax.ShapeDtypeStruct((N, C, Hr, Wr), x.dtype),
        grid_spec=pltpu.PrefetchScalarGridSpec(
            num_scalar_prefetch=0,
            grid=(N, C // cb, H // hb),
            in_specs=[
                # channel-block c covers input channels [c*cb*r^2, (c+1)*cb*r^2)
                pl.BlockSpec((1, cb * r * r, hb, W),
                             lambda n, c, h: (n, c, h, 0)),
            ],
            out_specs=pl.BlockSpec((1, cb, hb * r, Wr),
                                   lambda n, c, h: (n, c, h, 0)),
        ),
        compiler_params=pltpu.CompilerParams(
            dimension_semantics=("parallel", "parallel", "parallel"),
            vmem_limit_bytes=vmem_limit,
        ),
    )(x)


def pixel_shuffle_ref(x, r):
    """Pure-JAX reference (same semantics as the PyTorch module, 2-D case)."""
    N, Cin, H, W = x.shape
    C = Cin // (r * r)
    y = x.reshape(N, C, r, r, H, W)
    y = jnp.transpose(y, (0, 1, 4, 2, 5, 3))   # (N, C, H, r, W, r)
    return y.reshape(N, C, H * r, W * r)


if __name__ == "__main__":
    key = jax.random.PRNGKey(0)
    upscale = 2
    x = jax.random.normal(key, (2, 4, 16, 16), dtype=jnp.float32)

    out = pixel_shuffle(x, upscale)
    out = jax.block_until_ready(out)

    ref = pixel_shuffle_ref(x, upscale)
    assert out.shape == (2, 1, 32, 32), out.shape
    assert out.dtype == x.dtype
    # Pure data movement -> must be bit-exact.
    assert bool(jnp.array_equal(out, ref)), "mismatch vs reference"

    print("KERNEL_OK")
</pallas_src>

<mosaic_0001>
module attributes {stable_mosaic.version = 11 : i64} {
  func.func @_pixel_shuffle_kernel(%arg0: i32, %arg1: i32, %arg2: i32, %arg3: memref<1x4x16x16xf32, #tpu.memory_space<vmem>>, %arg4: memref<1x1x32x32xf32, #tpu.memory_space<vmem>>) attributes {dimension_semantics = [#tpu.dimension_semantics<parallel>, #tpu.dimension_semantics<parallel>, #tpu.dimension_semantics<parallel>], iteration_bounds = array<i64: 2, 1, 1>, scalar_prefetch = 0 : i64, scratch_operands = 0 : i64, tpu.core_type = #tpu.core_type<tc>, window_params = [{transform_indices = @transform_0, window_bounds = array<i64: 1, 4, 16, 16>}, {transform_indices = @transform_1, window_bounds = array<i64: 1, 1, 32, 32>}]} {
    %c0 = arith.constant 0 : index
    %c0_0 = arith.constant 0 : index
    %c0_1 = arith.constant 0 : index
    %c0_2 = arith.constant 0 : index
    %0 = vector.load %arg3[%c0, %c0_0, %c0_1, %c0_2] : memref<1x4x16x16xf32, #tpu.memory_space<vmem>>, vector<1x4x16x16xf32>
    %1 = vector.shape_cast %0 : vector<1x4x16x16xf32> to vector<4x16x16xf32>
    %2 = vector.extract_strided_slice %1 {offsets = [0, 0, 0], sizes = [1, 16, 16], strides = [1, 1, 1]} : vector<4x16x16xf32> to vector<1x16x16xf32>
    %3 = vector.shape_cast %2 : vector<1x16x16xf32> to vector<16x16xf32>
    %4 = vector.extract_strided_slice %1 {offsets = [1, 0, 0], sizes = [1, 16, 16], strides = [1, 1, 1]} : vector<4x16x16xf32> to vector<1x16x16xf32>
    %5 = vector.shape_cast %4 : vector<1x16x16xf32> to vector<16x16xf32>
    %6 = vector.shape_cast %3 : vector<16x16xf32> to vector<16x16x1xf32>
    %7 = vector.shape_cast %5 : vector<16x16xf32> to vector<16x16x1xf32>
    %8 = tpu.concatenate %6, %7 in 2 : vector<16x16x1xf32>, vector<16x16x1xf32> -> vector<16x16x2xf32>
    %9 = vector.shape_cast %8 : vector<16x16x2xf32> to vector<16x32xf32>
    %10 = vector.extract_strided_slice %1 {offsets = [2, 0, 0], sizes = [1, 16, 16], strides = [1, 1, 1]} : vector<4x16x16xf32> to vector<1x16x16xf32>
    %11 = vector.shape_cast %10 : vector<1x16x16xf32> to vector<16x16xf32>
    %12 = vector.extract_strided_slice %1 {offsets = [3, 0, 0], sizes = [1, 16, 16], strides = [1, 1, 1]} : vector<4x16x16xf32> to vector<1x16x16xf32>
    %13 = vector.shape_cast %12 : vector<1x16x16xf32> to vector<16x16xf32>
    %14 = vector.shape_cast %11 : vector<16x16xf32> to vector<16x16x1xf32>
    %15 = vector.shape_cast %13 : vector<16x16xf32> to vector<16x16x1xf32>
    %16 = tpu.concatenate %14, %15 in 2 : vector<16x16x1xf32>, vector<16x16x1xf32> -> vector<16x16x2xf32>
    %17 = vector.shape_cast %16 : vector<16x16x2xf32> to vector<16x32xf32>
    %18 = vector.shape_cast %9 : vector<16x32xf32> to vector<16x1x32xf32>
    %19 = vector.shape_cast %17 : vector<16x32xf32> to vector<16x1x32xf32>
    %20 = tpu.concatenate %18, %19 in 1 : vector<16x1x32xf32>, vector<16x1x32xf32> -> vector<16x2x32xf32>
    %21 = vector.shape_cast %20 : vector<16x2x32xf32> to vector<32x32xf32>
    %c0_3 = arith.constant 0 : index
    %c0_4 = arith.constant 0 : index
    %c0_5 = arith.constant 0 : index
    %c0_6 = arith.constant 0 : index
    %22 = vector.load %arg4[%c0_3, %c0_4, %c0_5, %c0_6] : memref<1x1x32x32xf32, #tpu.memory_space<vmem>>, vector<1x1x32x32xf32>
    %23 = vector.shape_cast %22 : vector<1x1x32x32xf32> to vector<32x32xf32>
    %24 = vector.shape_cast %21 : vector<32x32xf32> to vector<1x1x32x32xf32>
    tpu.vector_store %arg4[%c0_3, %c0_4, %c0_5, %c0_6], %24 {strides = array<i32>} : memref<1x1x32x32xf32, #tpu.memory_space<vmem>>, vector<1x1x32x32xf32>,
    return
  }
  func.func @transform_0(%arg0: i32, %arg1: i32, %arg2: i32) -> (i32, i32, i32, i32) {
    %c0_i32 = arith.constant 0 : i32
    %c0_i32_0 = arith.constant 0 : i32
    return %arg0, %arg1, %arg2, %c0_i32 : i32, i32, i32, i32
  }
  func.func @transform_1(%arg0: i32, %arg1: i32, %arg2: i32) -> (i32, i32, i32, i32) {
    %c0_i32 = arith.constant 0 : i32
    %c0_i32_0 = arith.constant 0 : i32
    return %arg0, %arg1, %arg2, %c0_i32 : i32, i32, i32, i32
  }
}

</mosaic_0001>

<llo_original>
// kernel: tpu_custom_call.1
$region0: #{tpu_custom_call.1}
  #allocation0 [shape = 'u32[]', space=smem, size = 0x4, offset = 0x4, fixed_abs, tag = 'smem constant byte address 0x4 - core index']
  #allocation1 [shape = 'u32[144,128]{1,0:T(1,128)}', space=vmem, size = 0x12000, scoped, tag = 'internal scratch']
  %s0 = inlined_call_operand.hbm [shape: f32[2,4,16,16], index: 0, kind: input, shape index: {}]
  %s1 = inlined_call_operand.hbm [shape: f32[2,1,32,32], index: 1, kind: output, shape index: {}]
  %s2 = sld [smem:[#allocation0]]
  $region41: #{tpu_custom_call.1} parent=0
    _
  %s4 = ssub.s32 1, %s2
  %s5 = scalar_select 0, %s4, %s2
  $region1: #{tpu_custom_call.1} parent=0
    #allocation2 [shape = 'u8[65536]{0}', space=vmem, size = 0x10000, scoped, tag = 'input window, operand 0']
    #allocation3 [shape = 's32[2]{0}', space=sflag, size = 0x8, scoped, tag = 'scoped memory for tpu_custom_call.1']
    #allocation4 [shape = 's32[2]{0}', space=sflag, size = 0x8, scoped, tag = 'scoped memory for tpu_custom_call.1']
    #allocation5 [shape = 'u8[32768]{0}', space=vmem, size = 0x8000, scoped, tag = 'output window, operand 0']
    %6 = vsyncpa [#allocation3], 0
    %s7 = scalar_lea.sflag [#allocation3], 1
    %8 = vsyncpa %s7, 0
    %9 = vsyncpa [#allocation4], 0
    %s10 = scalar_lea.sflag [#allocation4], 1
    %11 = vsyncpa %s10, 0
    loop: start=0, step=1, limit=4
    $region2: #{tpu_custom_call.1} parent=1 // loop_pre_header
      _
    $region3: #{tpu_custom_call.1} parent=1 // loop_header
      %s13 = sphi 0, %s17
      %p14 = scmp.ge.s32.totalorder %s13, 4
      %s20 = sphi 0, %s39
      %s21 = sphi 0, %s35
      %s22 = sphi 0, %s31
      %s23 = sphi 0, %s20
      %s24 = sphi 0, %s21
      %s25 = sphi 0, %s22
      %s26 = sphi 0, %s23
      %s27 = sphi 0, %s24
      %s28 = sphi 0, %s25
      %s46 = sphi 0, %s48
      %s49 = sphi 0, %s46
      %s50 = sphi 0, %s49
      %s66 = sphi 0, %s50
      %s76 = sphi 0, %s78
      %s79 = sphi 0, %s76
      %s80 = sphi 0, %s79
      %s96 = sphi 0, %s80
    $region4: #{tpu_custom_call.1} parent=1 // loop_header_branch
      %16 = sbr.rel (%p14) target = $region8
    $region5: #{tpu_custom_call.1} parent=1 // loop_body
      %s18 = ssub.s32 %s13, 1
      %s19 = ssub.s32 %s13, 2
      %s29 = sadd.s32 1, %s22
      %p30 = scmp.ge.s32.totalorder %s29, 1
      %s31 = scalar_select %p30, 0, %s29
      %s32 = sadd.s32 1, %s21
      %s33 = scalar_select %p30, %s32, %s21
      %p34 = scmp.ge.s32.totalorder %s33, 1
      %s35 = scalar_select %p34, 0, %s33
      %s36 = sadd.s32 1, %s20
      %s37 = scalar_select %p34, %s36, %s20
      %p38 = scmp.ge.s32.totalorder %s37, 2
      %s39 = scalar_select %p38, 0, %s37
      %s40 = ssub.s32 %s20, %s39
      %s41 = ssub.s32 %s21, %s35
      %s42 = sor.u32 %s40, %s41
      %s43 = ssub.s32 %s22, %s31
      %s44 = sor.u32 %s42, %s43
      %p45 = scmp.eq.s32.totalorder %s44, 0
      %s47 = sadd.s32 %s46, 1
      %s48 = scalar_select %p45, %s46, %s47
      %p51 = pneg %p45
      %p52 = scmp.eq.s32.totalorder %s13, 1
      %p53 = por %p51, %p52
      %p54 = scmp.ne.s32.totalorder %s46, %s49
      %p55 = scmp.eq.s32.totalorder %s13, 0
      %p56 = por %p54, %p55
      %p57 = scmp.ne.s32.totalorder %s46, %s49
      %p58 = scmp.eq.s32.totalorder %s18, 1
      %p59 = por %p57, %p58
      %p60 = scmp.ne.s32.totalorder %s49, %s50
      %p61 = scmp.eq.s32.totalorder %s18, 0
      %p62 = por %p60, %p61
      %p63 = scmp.ne.s32.totalorder %s49, %s50
      %p64 = scmp.eq.s32.totalorder %s19, 1
      %p65 = por %p63, %p64
      %p67 = scmp.ne.s32.totalorder %s50, %s66
      %p68 = scmp.eq.s32.totalorder %s19, 0
      %p69 = por %p67, %p68
      %s70 = ssub.s32 %s20, %s39
      %s71 = ssub.s32 %s21, %s35
      %s72 = sor.u32 %s70, %s71
      %s73 = ssub.s32 %s22, %s31
      %s74 = sor.u32 %s72, %s73
      %p75 = scmp.eq.s32.totalorder %s74, 0
      %s77 = sadd.s32 %s76, 1
      %s78 = scalar_select %p75, %s76, %s77
      %p81 = pneg %p75
      %p82 = scmp.eq.s32.totalorder %s13, 1
      %p83 = por %p81, %p82
      %p84 = scmp.ne.s32.totalorder %s76, %s79
      %p85 = scmp.eq.s32.totalorder %s13, 0
      %p86 = por %p84, %p85
      %p87 = scmp.ne.s32.totalorder %s76, %s79
      %p88 = scmp.eq.s32.totalorder %s18, 1
      %p89 = por %p87, %p88
      %p90 = scmp.ne.s32.totalorder %s79, %s80
      %p91 = scmp.eq.s32.totalorder %s18, 0
      %p92 = por %p90, %p91
      %p93 = scmp.ne.s32.totalorder %s79, %s80
      %p94 = scmp.eq.s32.totalorder %s19, 1
      %p95 = por %p93, %p94
      %p97 = scmp.ne.s32.totalorder %s80, %s96
      %p98 = scmp.eq.s32.totalorder %s19, 0
      %p99 = por %p97, %p98
      %p100 = scmp.le.s32.totalorder 1, %s13
      %p101 = scmp.lt.s32.totalorder %s13, 3
      %p102 = pnand %p100, %p101
      %p103 = pneg %p102
      // Predicated region
      $region9: #{tpu_custom_call.1} parent=5 // pred_check
        _
      $region10: #{tpu_custom_call.1} parent=5 // pred_check_branch
        %105 = sbr.rel (%p102) target = $region12
      $region11: #{tpu_custom_call.1} parent=5 // pred_region
        %s106 = ssub.s32 %s13, 1
      $region12: #{tpu_custom_call.1} parent=5 // pred_fallthru
        _
      %p107 = scmp.lt.s32.totalorder %s13, 2
      // Predicated region
      $region13: #{tpu_custom_call.1} parent=5 // pred_check
        %p108 = pneg %p107
      $region14: #{tpu_custom_call.1} parent=5 // pred_check_branch
        %110 = sbr.rel (%p108) target = $region16
      $region15: #{tpu_custom_call.1} parent=5 // pred_region
        // Predicated region
        $region17: #{tpu_custom_call.1} parent=15 // pred_check
          %p111 = pneg %p56
        $region18: #{tpu_custom_call.1} parent=15 // pred_check_branch
          %113 = sbr.rel (%p111) target = $region20
        $region19: #{tpu_custom_call.1} parent=15 // pred_region
          %s114 = sand.u32 %s46, 1
          %s115 = scalar_lea.sflag [#allocation3], %s114
          %s116 = sand.u32 %s46, 1
          %s117 = smul.addr %s116, 64
          %s118 = scalar_lea.vmem [#allocation2], %s117
          %s119 = smul.u32 4, %s21
          %s120 = smul.u32 2, %s22
          %s122 = ssub.s32 1024, 1024
          %123 = vsyncadd %s115, %s122
          %s124 = smul.addr %s119, 2
          %s125 = sadd.s32 %s120, %s124
          %s126 = smul.addr %s20, 8
          %s127 = sadd.s32 %s125, %s126
          %s128 = smul.addr %s127, 128
          %s129 = scalar_lea.hbm %s0, %s128
          %s130 = sshll.u32 %s118, 4
          %s131 = int_to_ptr.vmem [resolvable:$true] %s130
          %136 = dma.hbm_to_vmem [thread:$0]  %s129, 1024, %s131, %s115, 128, 128, 8
        $region20: #{tpu_custom_call.1} parent=15 // pred_fallthru
          _
      $region16: #{tpu_custom_call.1} parent=5 // pred_fallthru
        _
      %p137 = scmp.le.s32.totalorder 1, %s13
      %p138 = scmp.lt.s32.totalorder %s13, 3
      %p139 = pnand %p137, %p138
      %p140 = pneg %p139
      // Predicated region
      $region21: #{tpu_custom_call.1} parent=5 // pred_check
        _
      $region22: #{tpu_custom_call.1} parent=5 // pred_check_branch
        %142 = sbr.rel (%p139) target = $region24
      $region23: #{tpu_custom_call.1} parent=5 // pred_region
        %s143 = ssub.s32 %s13, 1
        %s144 = sand.u32 %s49, 1
        %s145 = scalar_lea.sflag [#allocation3], %s144
        %s146 = sand.u32 %s49, 1
        %s147 = smul.addr %s146, 64
        %s148 = scalar_lea.vmem [#allocation2], %s147
        // Predicated region
        $region25: #{tpu_custom_call.1} parent=23 // pred_check
          %p149 = pneg %p62
        $region26: #{tpu_custom_call.1} parent=23 // pred_check_branch
          %151 = sbr.rel (%p149) target = $region28
        $region27: #{tpu_custom_call.1} parent=23 // pred_region
          %152 = dma.done %s145, 1024
        $region28: #{tpu_custom_call.1} parent=23 // pred_fallthru
          _
        %s153 = sand.u32 %s49, 1
        %s154 = scalar_lea.sflag [#allocation3], %s153
        %s155 = sand.u32 %s49, 1
        %s156 = smul.addr %s155, 64
        %s157 = scalar_lea.vmem [#allocation2], %s156
        %p158 = pneg %p62
        %p159 = pneg %p59
        %p160 = pneg %p92
        %p161 = pneg %p89
        %s162 = sand.u32 %s79, 1
        %s163 = scalar_lea.sflag [#allocation4], %s162
        %s164 = sand.u32 %s79, 1
        %s165 = smul.addr %s164, 32
        %s166 = scalar_lea.vmem [#allocation5], %s165
        %s167 = smul.u32 4, %s24
        %s168 = smul.u32 2, %s25
        %s169 = smul.u32 4, %s25
        %v170 = vld [vmem:[%s148] sm:$0xff]
        %v171 = vld [vmem:[%s148 + $0x8] sm:$0xff]
        %v172 = vld [vmem:[%s148 + $0x10] sm:$0xff]
        %v173 = vld [vmem:[%s148 + $0x18] sm:$0xff]
        %v174 = vld [vmem:[%s148 + $0x20] sm:$0xff]
        %v175 = vld [vmem:[%s148 + $0x28] sm:$0xff]
        %v176 = vld [vmem:[%s148 + $0x30] sm:$0xff]
        %v177 = vld [vmem:[%s148 + $0x38] sm:$0xff]
        %v178 = vlaneseq
        %v179 = vshrl.u32 %v178, 7
        %v180 = vsub.s32 0, %v179
        %v181 = vrot.slane %v170, %v180
        %183 = vbcast.lane.b32.xlu0 %v181, 256
        %v184 = vpop.permute.xlu0 %183
        %s186 = sor.u32 256, 8
        %187 = vbcast.lane.b32.xlu0 %v181, %s186
        %v188 = vpop.permute.xlu0 %187
        %v189 = vlaneseq
        %v190 = vshrl.u32 %v189, 7
        %v191 = vsub.s32 1, %v190
        %v192 = vrot.slane %v170, %v191
        %194 = vbcast.lane.b32.xlu0 %v192, 256
        %v195 = vpop.permute.xlu0 %194
        %s197 = sor.u32 256, 8
        %198 = vbcast.lane.b32.xlu0 %v192, %s197
        %v199 = vpop.permute.xlu0 %198
        %v200 = vlaneseq
        %v201 = vshrl.u32 %v200, 7
        %v202 = vsub.s32 2, %v201
        %v203 = vrot.slane %v170, %v202
        %205 = vbcast.lane.b32.xlu0 %v203, 256
        %v206 = vpop.permute.xlu0 %205
        %s208 = sor.u32 256, 8
        %209 = vbcast.lane.b32.xlu0 %v203, %s208
        %v210 = vpop.permute.xlu0 %209
        %v211 = vlaneseq
        %v212 = vshrl.u32 %v211, 7
        %v213 = vsub.s32 3, %v212
        %v214 = vrot.slane %v170, %v213
        %216 = vbcast.lane.b32.xlu0 %v214, 256
        %v217 = vpop.permute.xlu0 %216
        %s219 = sor.u32 256, 8
        %220 = vbcast.lane.b32.xlu0 %v214, %s219
        %v221 = vpop.permute.xlu0 %220
        %v222 = vlaneseq
        %v223 = vshrl.u32 %v222, 7
        %v224 = vsub.s32 4, %v223
        %v225 = vrot.slane %v170, %v224
        %227 = vbcast.lane.b32.xlu0 %v225, 256
        %v228 = vpop.permute.xlu0 %227
        %s230 = sor.u32 256, 8
        %231 = vbcast.lane.b32.xlu0 %v225, %s230
        %v232 = vpop.permute.xlu0 %231
        %v233 = vlaneseq
        %v234 = vshrl.u32 %v233, 7
        %v235 = vsub.s32 5, %v234
        %v236 = vrot.slane %v170, %v235
        %238 = vbcast.lane.b32.xlu0 %v236, 256
        %v239 = vpop.permute.xlu0 %238
        %s241 = sor.u32 256, 8
        %242 = vbcast.lane.b32.xlu0 %v236, %s241
        %v243 = vpop.permute.xlu0 %242
        %v244 = vlaneseq
        %v245 = vshrl.u32 %v244, 7
        %v246 = vsub.s32 6, %v245
        %v247 = vrot.slane %v170, %v246
        %249 = vbcast.lane.b32.xlu0 %v247, 256
        %v250 = vpop.permute.xlu0 %249
        %s252 = sor.u32 256, 8
        %253 = vbcast.lane.b32.xlu0 %v247, %s252
        %v254 = vpop.permute.xlu0 %253
        %v255 = vlaneseq
        %v256 = vshrl.u32 %v255, 7
        %v257 = vsub.s32 7, %v256
        %v258 = vrot.slane %v170, %v257
        %260 = vbcast.lane.b32.xlu0 %v258, 256
        %v261 = vpop.permute.xlu0 %260
        %s263 = sor.u32 256, 8
        %264 = vbcast.lane.b32.xlu0 %v258, %s263
        %v265 = vpop.permute.xlu0 %264
        %v266 = vlaneseq
        %v267 = vshrl.u32 %v266, 7
        %v268 = vsub.s32 0, %v267
        %v269 = vrot.slane %v171, %v268
        %271 = vbcast.lane.b32.xlu0 %v269, 256
        %v272 = vpop.permute.xlu0 %271
        %s274 = sor.u32 256, 8
        %275 = vbcast.lane.b32.xlu0 %v269, %s274
        %v276 = vpop.permute.xlu0 %275
        %v277 = vlaneseq
        %v278 = vshrl.u32 %v277, 7
        %v279 = vsub.s32 1, %v278
        %v280 = vrot.slane %v171, %v279
        %282 = vbcast.lane.b32.xlu0 %v280, 256
        %v283 = vpop.permute.xlu0 %282
        %s285 = sor.u32 256, 8
        %286 = vbcast.lane.b32.xlu0 %v280, %s285
        %v287 = vpop.permute.xlu0 %286
        %v288 = vlaneseq
        %v289 = vshrl.u32 %v288, 7
        %v290 = vsub.s32 2, %v289
        %v291 = vrot.slane %v171, %v290
        %293 = vbcast.lane.b32.xlu0 %v291, 256
        %v294 = vpop.permute.xlu0 %293
        %s296 = sor.u32 256, 8
        %297 = vbcast.lane.b32.xlu0 %v291, %s296
        %v298 = vpop.permute.xlu0 %297
        %v299 = vlaneseq
        %v300 = vshrl.u32 %v299, 7
        %v301 = vsub.s32 3, %v300
        %v302 = vrot.slane %v171, %v301
        %304 = vbcast.lane.b32.xlu0 %v302, 256
        %v305 = vpop.permute.xlu0 %304
        %s307 = sor.u32 256, 8
        %308 = vbcast.lane.b32.xlu0 %v302, %s307
        %v309 = vpop.permute.xlu0 %308
        %v310 = vlaneseq
        %v311 = vshrl.u32 %v310, 7
        %v312 = vsub.s32 4, %v311
        %v313 = vrot.slane %v171, %v312
        %315 = vbcast.lane.b32.xlu0 %v313, 256
        %v316 = vpop.permute.xlu0 %315
        %s318 = sor.u32 256, 8
        %319 = vbcast.lane.b32.xlu0 %v313, %s318
        %v320 = vpop.permute.xlu0 %319
        %v321 = vlaneseq
        %v322 = vshrl.u32 %v321, 7
        %v323 = vsub.s32 5, %v322
        %v324 = vrot.slane %v171, %v323
        %326 = vbcast.lane.b32.xlu0 %v324, 256
        %v327 = vpop.permute.xlu0 %326
        %s329 = sor.u32 256, 8
        %330 = vbcast.lane.b32.xlu0 %v324, %s329
        %v331 = vpop.permute.xlu0 %330
        %v332 = vlaneseq
        %v333 = vshrl.u32 %v332, 7
        %v334 = vsub.s32 6, %v333
        %v335 = vrot.slane %v171, %v334
        %337 = vbcast.lane.b32.xlu0 %v335, 256
        %v338 = vpop.permute.xlu0 %337
        %s340 = sor.u32 256, 8
        %341 = vbcast.lane.b32.xlu0 %v335, %s340
        %v342 = vpop.permute.xlu0 %341
        %v343 = vlaneseq
        %v344 = vshrl.u32 %v343, 7
        %v345 = vsub.s32 7, %v344
        %v346 = vrot.slane %v171, %v345
        %348 = vbcast.lane.b32.xlu0 %v346, 256
        %v349 = vpop.permute.xlu0 %348
        %s351 = sor.u32 256, 8
        %352 = vbcast.lane.b32.xlu0 %v346, %s351
        %v353 = vpop.permute.xlu0 %352
        %v354 = vlaneseq
        %v355 = vshrl.u32 %v354, 7
        %v356 = vsub.s32 0, %v355
        %v357 = vrot.slane %v172, %v356
        %359 = vbcast.lane.b32.xlu0 %v357, 256
        %v360 = vpop.permute.xlu0 %359
        %s362 = sor.u32 256, 8
        %363 = vbcast.lane.b32.xlu0 %v357, %s362
        %v364 = vpop.permute.xlu0 %363
        %v365 = vlaneseq
        %v366 = vshrl.u32 %v365, 7
        %v367 = vsub.s32 1, %v366
        %v368 = vrot.slane %v172, %v367
        %370 = vbcast.lane.b32.xlu0 %v368, 256
        %v371 = vpop.permute.xlu0 %370
        %s373 = sor.u32 256, 8
        %374 = vbcast.lane.b32.xlu0 %v368, %s373
        %v375 = vpop.permute.xlu0 %374
        %v376 = vlaneseq
        %v377 = vshrl.u32 %v376, 7
        %v378 = vsub.s32 2, %v377
        %v379 = vrot.slane %v172, %v378
        %381 = vbcast.lane.b32.xlu0 %v379, 256
        %v382 = vpop.permute.xlu0 %381
        %s384 = sor.u32 256, 8
        %385 = vbcast.lane.b32.xlu0 %v379, %s384
        %v386 = vpop.permute.xlu0 %385
        %v387 = vlaneseq
        %v388 = vshrl.u32 %v387, 7
        %v389 = vsub.s32 3, %v388
        %v390 = vrot.slane %v172, %v389
        %392 = vbcast.lane.b32.xlu0 %v390, 256
        %v393 = vpop.permute.xlu0 %392
        %s395 = sor.u32 256, 8
        %396 = vbcast.lane.b32.xlu0 %v390, %s395
        %v397 = vpop.permute.xlu0 %396
        %v398 = vlaneseq
        %v399 = vshrl.u32 %v398, 7
        %v400 = vsub.s32 4, %v399
        %v401 = vrot.slane %v172, %v400
        %403 = vbcast.lane.b32.xlu0 %v401, 256
        %v404 = vpop.permute.xlu0 %403
        %s406 = sor.u32 256, 8
        %407 = vbcast.lane.b32.xlu0 %v401, %s406
        %v408 = vpop.permute.xlu0 %407
        %v409 = vlaneseq
        %v410 = vshrl.u32 %v409, 7
        %v411 = vsub.s32 5, %v410
        %v412 = vrot.slane %v172, %v411
        %414 = vbcast.lane.b32.xlu0 %v412, 256
        %v415 = vpop.permute.xlu0 %414
        %s417 = sor.u32 256, 8
        %418 = vbcast.lane.b32.xlu0 %v412, %s417
        %v419 = vpop.permute.xlu0 %418
        %v420 = vlaneseq
        %v421 = vshrl.u32 %v420, 7
        %v422 = vsub.s32 6, %v421
        %v423 = vrot.slane %v172, %v422
        %425 = vbcast.lane.b32.xlu0 %v423, 256
        %v426 = vpop.permute.xlu0 %425
        %s428 = sor.u32 256, 8
        %429 = vbcast.lane.b32.xlu0 %v423, %s428
        %v430 = vpop.permute.xlu0 %429
        %v431 = vlaneseq
        %v432 = vshrl.u32 %v431, 7
        %v433 = vsub.s32 7, %v432
        %v434 = vrot.slane %v172, %v433
        %436 = vbcast.lane.b32.xlu0 %v434, 256
        %v437 = vpop.permute.xlu0 %436
        %s439 = sor.u32 256, 8
        %440 = vbcast.lane.b32.xlu0 %v434, %s439
        %v441 = vpop.permute.xlu0 %440
        %v442 = vlaneseq
        %v443 = vshrl.u32 %v442, 7
        %v444 = vsub.s32 0, %v443
        %v445 = vrot.slane %v173, %v444
        %447 = vbcast.lane.b32.xlu0 %v445, 256
        %v448 = vpop.permute.xlu0 %447
        %s450 = sor.u32 256, 8
        %451 = vbcast.lane.b32.xlu0 %v445, %s450
        %v452 = vpop.permute.xlu0 %451
        %v453 = vlaneseq
        %v454 = vshrl.u32 %v453, 7
        %v455 = vsub.s32 1, %v454
        %v456 = vrot.slane %v173, %v455
        %458 = vbcast.lane.b32.xlu0 %v456, 256
        %v459 = vpop.permute.xlu0 %458
        %s461 = sor.u32 256, 8
        %462 = vbcast.lane.b32.xlu0 %v456, %s461
        %v463 = vpop.permute.xlu0 %462
        %v464 = vlaneseq
        %v465 = vshrl.u32 %v464, 7
        %v466 = vsub.s32 2, %v465
        %v467 = vrot.slane %v173, %v466
        %469 = vbcast.lane.b32.xlu0 %v467, 256
        %v470 = vpop.permute.xlu0 %469
        %s472 = sor.u32 256, 8
        %473 = vbcast.lane.b32.xlu0 %v467, %s472
        %v474 = vpop.permute.xlu0 %473
        %v475 = vlaneseq
        %v476 = vshrl.u32 %v475, 7
        %v477 = vsub.s32 3, %v476
        %v478 = vrot.slane %v173, %v477
        %480 = vbcast.lane.b32.xlu0 %v478, 256
        %v481 = vpop.permute.xlu0 %480
        %s483 = sor.u32 256, 8
        %484 = vbcast.lane.b32.xlu0 %v478, %s483
        %v485 = vpop.permute.xlu0 %484
        %v486 = vlaneseq
        %v487 = vshrl.u32 %v486, 7
        %v488 = vsub.s32 4, %v487
        %v489 = vrot.slane %v173, %v488
        %491 = vbcast.lane.b32.xlu0 %v489, 256
        %v492 = vpop.permute.xlu0 %491
        %s494 = sor.u32 256, 8
        %495 = vbcast.lane.b32.xlu0 %v489, %s494
        %v496 = vpop.permute.xlu0 %495
        %v497 = vlaneseq
        %v498 = vshrl.u32 %v497, 7
        %v499 = vsub.s32 5, %v498
        %v500 = vrot.slane %v173, %v499
        %502 = vbcast.lane.b32.xlu0 %v500, 256
        %v503 = vpop.permute.xlu0 %502
        %s505 = sor.u32 256, 8
        %506 = vbcast.lane.b32.xlu0 %v500, %s505
        %v507 = vpop.permute.xlu0 %506
        %v508 = vlaneseq
        %v509 = vshrl.u32 %v508, 7
        %v510 = vsub.s32 6, %v509
        %v511 = vrot.slane %v173, %v510
        %513 = vbcast.lane.b32.xlu0 %v511, 256
        %v514 = vpop.permute.xlu0 %513
        %s516 = sor.u32 256, 8
        %517 = vbcast.lane.b32.xlu0 %v511, %s516
        %v518 = vpop.permute.xlu0 %517
        %v519 = vlaneseq
        %v520 = vshrl.u32 %v519, 7
        %v521 = vsub.s32 7, %v520
        %v522 = vrot.slane %v173, %v521
        %524 = vbcast.lane.b32.xlu0 %v522, 256
        %v525 = vpop.permute.xlu0 %524
        %s527 = sor.u32 256, 8
        %528 = vbcast.lane.b32.xlu0 %v522, %s527
        %v529 = vpop.permute.xlu0 %528
        %vm530 = vcmask 7168
        %v531 = vsel %vm530, %v184, %v360
        %v532 = vsel %vm530, %v188, %v364
        %v533 = vsel %vm530, %v195, %v371
        %v534 = vsel %vm530, %v199, %v375
        %v535 = vsel %vm530, %v206, %v382
        %v536 = vsel %vm530, %v210, %v386
        %v537 = vsel %vm530, %v217, %v393
        %v538 = vsel %vm530, %v221, %v397
        %v539 = vsel %vm530, %v228, %v404
        %v540 = vsel %vm530, %v232, %v408
        %v541 = vsel %vm530, %v239, %v415
        %v542 = vsel %vm530, %v243, %v419
        %v543 = vsel %vm530, %v250, %v426
        %v544 = vsel %vm530, %v254, %v430
        %v545 = vsel %vm530, %v261, %v437
        %v546 = vsel %vm530, %v265, %v441
        %v547 = vsel %vm530, %v272, %v448
        %v548 = vsel %vm530, %v276, %v452
        %v549 = vsel %vm530, %v283, %v459
        %v550 = vsel %vm530, %v287, %v463
        %v551 = vsel %vm530, %v294, %v470
        %v552 = vsel %vm530, %v298, %v474
        %v553 = vsel %vm530, %v305, %v481
        %v554 = vsel %vm530, %v309, %v485
        %v555 = vsel %vm530, %v316, %v492
        %v556 = vsel %vm530, %v320, %v496
        %v557 = vsel %vm530, %v327, %v503
        %v558 = vsel %vm530, %v331, %v507
        %v559 = vsel %vm530, %v338, %v514
        %v560 = vsel %vm530, %v342, %v518
        %v561 = vsel %vm530, %v349, %v525
        %v562 = vsel %vm530, %v353, %v529
        %v563 = vlaneseq
        %v564 = vshrl.u32 %v563, 7
        %v565 = vsub.s32 0, %v564
        %v566 = vrot.slane %v174, %v565
        %568 = vbcast.lane.b32.xlu0 %v566, 256
        %v569 = vpop.permute.xlu0 %568
        %s571 = sor.u32 256, 8
        %572 = vbcast.lane.b32.xlu0 %v566, %s571
        %v573 = vpop.permute.xlu0 %572
        %v574 = vlaneseq
        %v575 = vshrl.u32 %v574, 7
        %v576 = vsub.s32 1, %v575
        %v577 = vrot.slane %v174, %v576
        %579 = vbcast.lane.b32.xlu0 %v577, 256
        %v580 = vpop.permute.xlu0 %579
        %s582 = sor.u32 256, 8
        %583 = vbcast.lane.b32.xlu0 %v577, %s582
        %v584 = vpop.permute.xlu0 %583
        %v585 = vlaneseq
        %v586 = vshrl.u32 %v585, 7
        %v587 = vsub.s32 2, %v586
        %v588 = vrot.slane %v174, %v587
        %590 = vbcast.lane.b32.xlu0 %v588, 256
        %v591 = vpop.permute.xlu0 %590
        %s593 = sor.u32 256, 8
        %594 = vbcast.lane.b32.xlu0 %v588, %s593
        %v595 = vpop.permute.xlu0 %594
        %v596 = vlaneseq
        %v597 = vshrl.u32 %v596, 7
        %v598 = vsub.s32 3, %v597
        %v599 = vrot.slane %v174, %v598
        %601 = vbcast.lane.b32.xlu0 %v599, 256
        %v602 = vpop.permute.xlu0 %601
        %s604 = sor.u32 256, 8
        %605 = vbcast.lane.b32.xlu0 %v599, %s604
        %v606 = vpop.permute.xlu0 %605
        %v607 = vlaneseq
        %v608 = vshrl.u32 %v607, 7
        %v609 = vsub.s32 4, %v608
        %v610 = vrot.slane %v174, %v609
        %612 = vbcast.lane.b32.xlu0 %v610, 256
        %v613 = vpop.permute.xlu0 %612
        %s615 = sor.u32 256, 8
        %616 = vbcast.lane.b32.xlu0 %v610, %s615
        %v617 = vpop.permute.xlu0 %616
        %v618 = vlaneseq
        %v619 = vshrl.u32 %v618, 7
        %v620 = vsub.s32 5, %v619
        %v621 = vrot.slane %v174, %v620
        %623 = vbcast.lane.b32.xlu0 %v621, 256
        %v624 = vpop.permute.xlu0 %623
        %s626 = sor.u32 256, 8
        %627 = vbcast.lane.b32.xlu0 %v621, %s626
        %v628 = vpop.permute.xlu0 %627
        %v629 = vlaneseq
        %v630 = vshrl.u32 %v629, 7
        %v631 = vsub.s32 6, %v630
        %v632 = vrot.slane %v174, %v631
        %634 = vbcast.lane.b32.xlu0 %v632, 256
        %v635 = vpop.permute.xlu0 %634
        %s637 = sor.u32 256, 8
        %638 = vbcast.lane.b32.xlu0 %v632, %s637
        %v639 = vpop.permute.xlu0 %638
        %v640 = vlaneseq
        %v641 = vshrl.u32 %v640, 7
        %v642 = vsub.s32 7, %v641
        %v643 = vrot.slane %v174, %v642
        %645 = vbcast.lane.b32.xlu0 %v643, 256
        %v646 = vpop.permute.xlu0 %645
        %s648 = sor.u32 256, 8
        %649 = vbcast.lane.b32.xlu0 %v643, %s648
        %v650 = vpop.permute.xlu0 %649
        %v651 = vlaneseq
        %v652 = vshrl.u32 %v651, 7
        %v653 = vsub.s32 0, %v652
        %v654 = vrot.slane %v175, %v653
        %656 = vbcast.lane.b32.xlu0 %v654, 256
        %v657 = vpop.permute.xlu0 %656
        %s659 = sor.u32 256, 8
        %660 = vbcast.lane.b32.xlu0 %v654, %s659
        %v661 = vpop.permute.xlu0 %660
        %v662 = vlaneseq
        %v663 = vshrl.u32 %v662, 7
        %v664 = vsub.s32 1, %v663
        %v665 = vrot.slane %v175, %v664
        %667 = vbcast.lane.b32.xlu0 %v665, 256
        %v668 = vpop.permute.xlu0 %667
        %s670 = sor.u32 256, 8
        %671 = vbcast.lane.b32.xlu0 %v665, %s670
        %v672 = vpop.permute.xlu0 %671
        %v673 = vlaneseq
        %v674 = vshrl.u32 %v673, 7
        %v675 = vsub.s32 2, %v674
        %v676 = vrot.slane %v175, %v675
        %678 = vbcast.lane.b32.xlu0 %v676, 256
        %v679 = vpop.permute.xlu0 %678
        %s681 = sor.u32 256, 8
        %682 = vbcast.lane.b32.xlu0 %v676, %s681
        %v683 = vpop.permute.xlu0 %682
        %v684 = vlaneseq
        %v685 = vshrl.u32 %v684, 7
        %v686 = vsub.s32 3, %v685
        %v687 = vrot.slane %v175, %v686
        %689 = vbcast.lane.b32.xlu0 %v687, 256
        %v690 = vpop.permute.xlu0 %689
        %s692 = sor.u32 256, 8
        %693 = vbcast.lane.b32.xlu0 %v687, %s692
        %v694 = vpop.permute.xlu0 %693
        %v695 = vlaneseq
        %v696 = vshrl.u32 %v695, 7
        %v697 = vsub.s32 4, %v696
        %v698 = vrot.slane %v175, %v697
        %700 = vbcast.lane.b32.xlu0 %v698, 256
        %v701 = vpop.permute.xlu0 %700
        %s703 = sor.u32 256, 8
        %704 = vbcast.lane.b32.xlu0 %v698, %s703
        %v705 = vpop.permute.xlu0 %704
        %v706 = vlaneseq
        %v707 = vshrl.u32 %v706, 7
        %v708 = vsub.s32 5, %v707
        %v709 = vrot.slane %v175, %v708
        %711 = vbcast.lane.b32.xlu0 %v709, 256
        %v712 = vpop.permute.xlu0 %711
        %s714 = sor.u32 256, 8
        %715 = vbcast.lane.b32.xlu0 %v709, %s714
        %v716 = vpop.permute.xlu0 %715
        %v717 = vlaneseq
        %v718 = vshrl.u32 %v717, 7
        %v719 = vsub.s32 6, %v718
        %v720 = vrot.slane %v175, %v719
        %722 = vbcast.lane.b32.xlu0 %v720, 256
        %v723 = vpop.permute.xlu0 %722
        %s725 = sor.u32 256, 8
        %726 = vbcast.lane.b32.xlu0 %v720, %s725
        %v727 = vpop.permute.xlu0 %726
        %v728 = vlaneseq
        %v729 = vshrl.u32 %v728, 7
        %v730 = vsub.s32 7, %v729
        %v731 = vrot.slane %v175, %v730
        %733 = vbcast.lane.b32.xlu0 %v731, 256
        %v734 = vpop.permute.xlu0 %733
        %s736 = sor.u32 256, 8
        %737 = vbcast.lane.b32.xlu0 %v731, %s736
        %v738 = vpop.permute.xlu0 %737
        %v739 = vlaneseq
        %v740 = vshrl.u32 %v739, 7
        %v741 = vsub.s32 0, %v740
        %v742 = vrot.slane %v176, %v741
        %744 = vbcast.lane.b32.xlu0 %v742, 256
        %v745 = vpop.permute.xlu0 %744
        %s747 = sor.u32 256, 8
        %748 = vbcast.lane.b32.xlu0 %v742, %s747
        %v749 = vpop.permute.xlu0 %748
        %v750 = vlaneseq
        %v751 = vshrl.u32 %v750, 7
        %v752 = vsub.s32 1, %v751
        %v753 = vrot.slane %v176, %v752
        %755 = vbcast.lane.b32.xlu0 %v753, 256
        %v756 = vpop.permute.xlu0 %755
        %s758 = sor.u32 256, 8
        %759 = vbcast.lane.b32.xlu0 %v753, %s758
        %v760 = vpop.permute.xlu0 %759
        %v761 = vlaneseq
        %v762 = vshrl.u32 %v761, 7
        %v763 = vsub.s32 2, %v762
        %v764 = vrot.slane %v176, %v763
        %766 = vbcast.lane.b32.xlu0 %v764, 256
        %v767 = vpop.permute.xlu0 %766
        %s769 = sor.u32 256, 8
        %770 = vbcast.lane.b32.xlu0 %v764, %s769
        %v771 = vpop.permute.xlu0 %770
        %v772 = vlaneseq
        %v773 = vshrl.u32 %v772, 7
        %v774 = vsub.s32 3, %v773
        %v775 = vrot.slane %v176, %v774
        %777 = vbcast.lane.b32.xlu0 %v775, 256
        %v778 = vpop.permute.xlu0 %777
        %s780 = sor.u32 256, 8
        %781 = vbcast.lane.b32.xlu0 %v775, %s780
        %v782 = vpop.permute.xlu0 %781
        %v783 = vlaneseq
        %v784 = vshrl.u32 %v783, 7
        %v785 = vsub.s32 4, %v784
        %v786 = vrot.slane %v176, %v785
        %788 = vbcast.lane.b32.xlu0 %v786, 256
        %v789 = vpop.permute.xlu0 %788
        %s791 = sor.u32 256, 8
        %792 = vbcast.lane.b32.xlu0 %v786, %s791
        %v793 = vpop.permute.xlu0 %792
        %v794 = vlaneseq
        %v795 = vshrl.u32 %v794, 7
        %v796 = vsub.s32 5, %v795
        %v797 = vrot.slane %v176, %v796
        %799 = vbcast.lane.b32.xlu0 %v797, 256
        %v800 = vpop.permute.xlu0 %799
        %s802 = sor.u32 256, 8
        %803 = vbcast.lane.b32.xlu0 %v797, %s802
        %v804 = vpop.permute.xlu0 %803
        %v805 = vlaneseq
        %v806 = vshrl.u32 %v805, 7
        %v807 = vsub.s32 6, %v806
        %v808 = vrot.slane %v176, %v807
        %810 = vbcast.lane.b32.xlu0 %v808, 256
        %v811 = vpop.permute.xlu0 %810
        %s813 = sor.u32 256, 8
        %814 = vbcast.lane.b32.xlu0 %v808, %s813
        %v815 = vpop.permute.xlu0 %814
        %v816 = vlaneseq
        %v817 = vshrl.u32 %v816, 7
        %v818 = vsub.s32 7, %v817
        %v819 = vrot.slane %v176, %v818
        %821 = vbcast.lane.b32.xlu0 %v819, 256
        %v822 = vpop.permute.xlu0 %821
        %s824 = sor.u32 256, 8
        %825 = vbcast.lane.b32.xlu0 %v819, %s824
        %v826 = vpop.permute.xlu0 %825
        %v827 = vlaneseq
        %v828 = vshrl.u32 %v827, 7
        %v829 = vsub.s32 0, %v828
        %v830 = vrot.slane %v177, %v829
        %832 = vbcast.lane.b32.xlu0 %v830, 256
        %v833 = vpop.permute.xlu0 %832
        %s835 = sor.u32 256, 8
        %836 = vbcast.lane.b32.xlu0 %v830, %s835
        %v837 = vpop.permute.xlu0 %836
        %v838 = vlaneseq
        %v839 = vshrl.u32 %v838, 7
        %v840 = vsub.s32 1, %v839
        %v841 = vrot.slane %v177, %v840
        %843 = vbcast.lane.b32.xlu0 %v841, 256
        %v844 = vpop.permute.xlu0 %843
        %s846 = sor.u32 256, 8
        %847 = vbcast.lane.b32.xlu0 %v841, %s846
        %v848 = vpop.permute.xlu0 %847
        %v849 = vlaneseq
        %v850 = vshrl.u32 %v849, 7
        %v851 = vsub.s32 2, %v850
        %v852 = vrot.slane %v177, %v851
        %854 = vbcast.lane.b32.xlu0 %v852, 256
        %v855 = vpop.permute.xlu0 %854
        %s857 = sor.u32 256, 8
        %858 = vbcast.lane.b32.xlu0 %v852, %s857
        %v859 = vpop.permute.xlu0 %858
        %v860 = vlaneseq
        %v861 = vshrl.u32 %v860, 7
        %v862 = vsub.s32 3, %v861
        %v863 = vrot.slane %v177, %v862
        %865 = vbcast.lane.b32.xlu0 %v863, 256
        %v866 = vpop.permute.xlu0 %865
        %s868 = sor.u32 256, 8
        %869 = vbcast.lane.b32.xlu0 %v863, %s868
        %v870 = vpop.permute.xlu0 %869
        %v871 = vlaneseq
        %v872 = vshrl.u32 %v871, 7
        %v873 = vsub.s32 4, %v872
        %v874 = vrot.slane %v177, %v873
        %876 = vbcast.lane.b32.xlu0 %v874, 256
        %v877 = vpop.permute.xlu0 %876
        %s879 = sor.u32 256, 8
        %880 = vbcast.lane.b32.xlu0 %v874, %s879
        %v881 = vpop.permute.xlu0 %880
        %v882 = vlaneseq
        %v883 = vshrl.u32 %v882, 7
        %v884 = vsub.s32 5, %v883
        %v885 = vrot.slane %v177, %v884
        %887 = vbcast.lane.b32.xlu0 %v885, 256
        %v888 = vpop.permute.xlu0 %887
        %s890 = sor.u32 256, 8
        %891 = vbcast.lane.b32.xlu0 %v885, %s890
        %v892 = vpop.permute.xlu0 %891
        %v893 = vlaneseq
        %v894 = vshrl.u32 %v893, 7
        %v895 = vsub.s32 6, %v894
        %v896 = vrot.slane %v177, %v895
        %898 = vbcast.lane.b32.xlu0 %v896, 256
        %v899 = vpop.permute.xlu0 %898
        %s901 = sor.u32 256, 8
        %902 = vbcast.lane.b32.xlu0 %v896, %s901
        %v903 = vpop.permute.xlu0 %902
        %v904 = vlaneseq
        %v905 = vshrl.u32 %v904, 7
        %v906 = vsub.s32 7, %v905
        %v907 = vrot.slane %v177, %v906
        %909 = vbcast.lane.b32.xlu0 %v907, 256
        %v910 = vpop.permute.xlu0 %909
        %s912 = sor.u32 256, 8
        %913 = vbcast.lane.b32.xlu0 %v907, %s912
        %v914 = vpop.permute.xlu0 %913
        %v915 = vsel %vm530, %v569, %v745
        %v916 = vsel %vm530, %v573, %v749
        %v917 = vsel %vm530, %v580, %v756
        %v918 = vsel %vm530, %v584, %v760
        %v919 = vsel %vm530, %v591, %v767
        %v920 = vsel %vm530, %v595, %v771
        %v921 = vsel %vm530, %v602, %v778
        %v922 = vsel %vm530, %v606, %v782
        %v923 = vsel %vm530, %v613, %v789
        %v924 = vsel %vm530, %v617, %v793
        %v925 = vsel %vm530, %v624, %v800
        %v926 = vsel %vm530, %v628, %v804
        %v927 = vsel %vm530, %v635, %v811
        %v928 = vsel %vm530, %v639, %v815
        %v929 = vsel %vm530, %v646, %v822
        %v930 = vsel %vm530, %v650, %v826
        %v931 = vsel %vm530, %v657, %v833
        %v932 = vsel %vm530, %v661, %v837
        %v933 = vsel %vm530, %v668, %v844
        %v934 = vsel %vm530, %v672, %v848
        %v935 = vsel %vm530, %v679, %v855
        %v936 = vsel %vm530, %v683, %v859
        %v937 = vsel %vm530, %v690, %v866
        %v938 = vsel %vm530, %v694, %v870
        %v939 = vsel %vm530, %v701, %v877
        %v940 = vsel %vm530, %v705, %v881
        %v941 = vsel %vm530, %v712, %v888
        %v942 = vsel %vm530, %v716, %v892
        %v943 = vsel %vm530, %v723, %v899
        %v944 = vsel %vm530, %v727, %v903
        %v945 = vsel %vm530, %v734, %v910
        %v946 = vsel %vm530, %v738, %v914
        %v947 = vcombine.high %v531, 0.0
        %v949 = vunpack.c.l.s4 1983009808
        %v950 = vunpack.c.0.s8 %v949
        %v951 = vlaneseq
        %v952 = vshrl.u32 %v951, 7
        %v953 = vsub.s32 %v950, %v952
        %v954 = vrot.slane %v531, %v953
        %v956 = vunpack.c.l.s4 1983009808
        %v957 = vunpack.c.0.s8 %v956
        %v958 = vlaneseq
        %v959 = vshrl.u32 %v958, 7
        %v960 = vsub.s32 %v957, %v959
        %v961 = vrot.slane %v947, %v960
        %v962 = vcombine.high %v954, 0.0
        %v964 = vunpack.c.l.s4 1934713408
        %v965 = vunpack.c.0.s8 %v964
        %v966 = vlaneseq
        %v967 = vshrl.u32 %v966, 7
        %v968 = vsub.s32 %v965, %v967
        %v969 = vrot.slane %v954, %v968
        %v971 = vunpack.c.l.s4 1934713408
        %v972 = vunpack.c.0.s8 %v971
        %v973 = vlaneseq
        %v974 = vshrl.u32 %v973, 7
        %v975 = vsub.s32 %v972, %v974
        %v976 = vrot.slane %v962, %v975
        %v977 = vcombine.high %v961, 0.0
        %v979 = vunpack.c.l.s4 1934713408
        %v980 = vunpack.c.0.s8 %v979
        %v981 = vlaneseq
        %v982 = vshrl.u32 %v981, 7
        %v983 = vsub.s32 %v980, %v982
        %v984 = vrot.slane %v961, %v983
        %v986 = vunpack.c.l.s4 1934713408
        %v987 = vunpack.c.0.s8 %v986
        %v988 = vlaneseq
        %v989 = vshrl.u32 %v988, 7
        %v990 = vsub.s32 %v987, %v989
        %v991 = vrot.slane %v977, %v990
        %v992 = vcombine.high %v969, 0.0
        %v993 = vcombine.high %v976, 0.0
        %v994 = vcombine.high %v984, 0.0
        %v995 = vcombine.high %v991, 0.0
        %v996 = vcombine.high %v532, 0.0
        %v998 = vunpack.c.l.s4 1983009808
        %v999 = vunpack.c.0.s8 %v998
        %v1000 = vlaneseq
        %v1001 = vshrl.u32 %v1000, 7
        %v1002 = vsub.s32 %v999, %v1001
        %v1003 = vrot.slane %v532, %v1002
        %v1005 = vunpack.c.l.s4 1983009808
        %v1006 = vunpack.c.0.s8 %v1005
        %v1007 = vlaneseq
        %v1008 = vshrl.u32 %v1007, 7
        %v1009 = vsub.s32 %v1006, %v1008
        %v1010 = vrot.slane %v996, %v1009
        %v1011 = vcombine.high %v1003, 0.0
        %v1013 = vunpack.c.l.s4 1934713408
        %v1014 = vunpack.c.0.s8 %v1013
        %v1015 = vlaneseq
        %v1016 = vshrl.u32 %v1015, 7
        %v1017 = vsub.s32 %v1014, %v1016
        %v1018 = vrot.slane %v1003, %v1017
        %v1020 = vunpack.c.l.s4 1934713408
        %v1021 = vunpack.c.0.s8 %v1020
        %v1022 = vlaneseq
        %v1023 = vshrl.u32 %v1022, 7
        %v1024 = vsub.s32 %v1021, %v1023
        %v1025 = vrot.slane %v1011, %v1024
        %v1026 = vcombine.high %v1010, 0.0
        %v1028 = vunpack.c.l.s4 1934713408
        %v1029 = vunpack.c.0.s8 %v1028
        %v1030 = vlaneseq
        %v1031 = vshrl.u32 %v1030, 7
        %v1032 = vsub.s32 %v1029, %v1031
        %v1033 = vrot.slane %v1010, %v1032
        %v1035 = vunpack.c.l.s4 1934713408
        %v1036 = vunpack.c.0.s8 %v1035
        %v1037 = vlaneseq
        %v1038 = vshrl.u32 %v1037, 7
        %v1039 = vsub.s32 %v1036, %v1038
        %v1040 = vrot.slane %v1026, %v1039
        %v1041 = vcombine.high %v1018, 0.0
        %v1042 = vcombine.high %v1025, 0.0
        %v1043 = vcombine.high %v1033, 0.0
        %v1044 = vcombine.high %v1040, 0.0
        %v1045 = vcombine.high %v533, 0.0
        %v1047 = vunpack.c.l.s4 1983009808
        %v1048 = vunpack.c.0.s8 %v1047
        %v1049 = vlaneseq
        %v1050 = vshrl.u32 %v1049, 7
        %v1051 = vsub.s32 %v1048, %v1050
        %v1052 = vrot.slane %v533, %v1051
        %v1054 = vunpack.c.l.s4 1983009808
        %v1055 = vunpack.c.0.s8 %v1054
        %v1056 = vlaneseq
        %v1057 = vshrl.u32 %v1056, 7
        %v1058 = vsub.s32 %v1055, %v1057
        %v1059 = vrot.slane %v1045, %v1058
        %v1060 = vcombine.high %v1052, 0.0
        %v1062 = vunpack.c.l.s4 1934713408
        %v1063 = vunpack.c.0.s8 %v1062
        %v1064 = vlaneseq
        %v1065 = vshrl.u32 %v1064, 7
        %v1066 = vsub.s32 %v1063, %v1065
        %v1067 = vrot.slane %v1052, %v1066
        %v1069 = vunpack.c.l.s4 1934713408
        %v1070 = vunpack.c.0.s8 %v1069
        %v1071 = vlaneseq
        %v1072 = vshrl.u32 %v1071, 7
        %v1073 = vsub.s32 %v1070, %v1072
        %v1074 = vrot.slane %v1060, %v1073
        %v1075 = vcombine.high %v1059, 0.0
        %v1077 = vunpack.c.l.s4 1934713408
        %v1078 = vunpack.c.0.s8 %v1077
        %v1079 = vlaneseq
        %v1080 = vshrl.u32 %v1079, 7
        %v1081 = vsub.s32 %v1078, %v1080
        %v1082 = vrot.slane %v1059, %v1081
        %v1084 = vunpack.c.l.s4 1934713408
        %v1085 = vunpack.c.0.s8 %v1084
        %v1086 = vlaneseq
        %v1087 = vshrl.u32 %v1086, 7
        %v1088 = vsub.s32 %v1085, %v1087
        %v1089 = vrot.slane %v1075, %v1088
        %v1090 = vcombine.high %v1067, 0.0
        %v1091 = vcombine.high %v1074, 0.0
        %v1092 = vcombine.high %v1082, 0.0
        %v1093 = vcombine.high %v1089, 0.0
        %v1094 = vcombine.high %v534, 0.0
        %v1096 = vunpack.c.l.s4 1983009808
        %v1097 = vunpack.c.0.s8 %v1096
        %v1098 = vlaneseq
        %v1099 = vshrl.u32 %v1098, 7
        %v1100 = vsub.s32 %v1097, %v1099
        %v1101 = vrot.slane %v534, %v1100
        %v1103 = vunpack.c.l.s4 1983009808
        %v1104 = vunpack.c.0.s8 %v1103
        %v1105 = vlaneseq
        %v1106 = vshrl.u32 %v1105, 7
        %v1107 = vsub.s32 %v1104, %v1106
        %v1108 = vrot.slane %v1094, %v1107
        %v1109 = vcombine.high %v1101, 0.0
        %v1111 = vunpack.c.l.s4 1934713408
        %v1112 = vunpack.c.0.s8 %v1111
        %v1113 = vlaneseq
        %v1114 = vshrl.u32 %v1113, 7
        %v1115 = vsub.s32 %v1112, %v1114
        %v1116 = vrot.slane %v1101, %v1115
        %v1118 = vunpack.c.l.s4 1934713408
        %v1119 = vunpack.c.0.s8 %v1118
        %v1120 = vlaneseq
        %v1121 = vshrl.u32 %v1120, 7
        %v1122 = vsub.s32 %v1119, %v1121
        %v1123 = vrot.slane %v1109, %v1122
        %v1124 = vcombine.high %v1108, 0.0
        %v1126 = vunpack.c.l.s4 1934713408
        %v1127 = vunpack.c.0.s8 %v1126
        %v1128 = vlaneseq
        %v1129 = vshrl.u32 %v1128, 7
        %v1130 = vsub.s32 %v1127, %v1129
        %v1131 = vrot.slane %v1108, %v1130
        %v1133 = vunpack.c.l.s4 1934713408
        %v1134 = vunpack.c.0.s8 %v1133
        %v1135 = vlaneseq
        %v1136 = vshrl.u32 %v1135, 7
        %v1137 = vsub.s32 %v1134, %v1136
        %v1138 = vrot.slane %v1124, %v1137
        %v1139 = vcombine.high %v1116, 0.0
        %v1140 = vcombine.high %v1123, 0.0
        %v1141 = vcombine.high %v1131, 0.0
        %v1142 = vcombine.high %v1138, 0.0
        %v1143 = vcombine.high %v535, 0.0
        %v1145 = vunpack.c.l.s4 1983009808
        %v1146 = vunpack.c.0.s8 %v1145
        %v1147 = vlaneseq
        %v1148 = vshrl.u32 %v1147, 7
        %v1149 = vsub.s32 %v1146, %v1148
        %v1150 = vrot.slane %v535, %v1149
        %v1152 = vunpack.c.l.s4 1983009808
        %v1153 = vunpack.c.0.s8 %v1152
        %v1154 = vlaneseq
        %v1155 = vshrl.u32 %v1154, 7
        %v1156 = vsub.s32 %v1153, %v1155
        %v1157 = vrot.slane %v1143, %v1156
        %v1158 = vcombine.high %v1150, 0.0
        %v1160 = vunpack.c.l.s4 1934713408
        %v1161 = vunpack.c.0.s8 %v1160
        %v1162 = vlaneseq
        %v1163 = vshrl.u32 %v1162, 7
        %v1164 = vsub.s32 %v1161, %v1163
        %v1165 = vrot.slane %v1150, %v1164
        %v1167 = vunpack.c.l.s4 1934713408
        %v1168 = vunpack.c.0.s8 %v1167
        %v1169 = vlaneseq
        %v1170 = vshrl.u32 %v1169, 7
        %v1171 = vsub.s32 %v1168, %v1170
        %v1172 = vrot.slane %v1158, %v1171
        %v1173 = vcombine.high %v1157, 0.0
        %v1175 = vunpack.c.l.s4 1934713408
        %v1176 = vunpack.c.0.s8 %v1175
        %v1177 = vlaneseq
        %v1178 = vshrl.u32 %v1177, 7
        %v1179 = vsub.s32 %v1176, %v1178
        %v1180 = vrot.slane %v1157, %v1179
        %v1182 = vunpack.c.l.s4 1934713408
        %v1183 = vunpack.c.0.s8 %v1182
        %v1184 = vlaneseq
        %v1185 = vshrl.u32 %v1184, 7
        %v1186 = vsub.s32 %v1183, %v1185
        %v1187 = vrot.slane %v1173, %v1186
        %v1188 = vcombine.high %v1165, 0.0
        %v1189 = vcombine.high %v1172, 0.0
        %v1190 = vcombine.high %v1180, 0.0
        %v1191 = vcombine.high %v1187, 0.0
        %v1192 = vcombine.high %v536, 0.0
        %v1194 = vunpack.c.l.s4 1983009808
        %v1195 = vunpack.c.0.s8 %v1194
        %v1196 = vlaneseq
        %v1197 = vshrl.u32 %v1196, 7
        %v1198 = vsub.s32 %v1195, %v1197
        %v1199 = vrot.slane %v536, %v1198
        %v1201 = vunpack.c.l.s4 1983009808
        %v1202 = vunpack.c.0.s8 %v1201
        %v1203 = vlaneseq
        %v1204 = vshrl.u32 %v1203, 7
        %v1205 = vsub.s32 %v1202, %v1204
        %v1206 = vrot.slane %v1192, %v1205
        %v1207 = vcombine.high %v1199, 0.0
        %v1209 = vunpack.c.l.s4 1934713408
        %v1210 = vunpack.c.0.s8 %v1209
        %v1211 = vlaneseq
        %v1212 = vshrl.u32 %v1211, 7
        %v1213 = vsub.s32 %v1210, %v1212
        %v1214 = vrot.slane %v1199, %v1213
        %v1216 = vunpack.c.l.s4 1934713408
        %v1217 = vunpack.c.0.s8 %v1216
        %v1218 = vlaneseq
        %v1219 = vshrl.u32 %v1218, 7
        %v1220 = vsub.s32 %v1217, %v1219
        %v1221 = vrot.slane %v1207, %v1220
        %v1222 = vcombine.high %v1206, 0.0
        %v1224 = vunpack.c.l.s4 1934713408
        %v1225 = vunpack.c.0.s8 %v1224
        %v1226 = vlaneseq
        %v1227 = vshrl.u32 %v1226, 7
        %v1228 = vsub.s32 %v1225, %v1227
        %v1229 = vrot.slane %v1206, %v1228
        %v1231 = vunpack.c.l.s4 1934713408
        %v1232 = vunpack.c.0.s8 %v1231
        %v1233 = vlaneseq
        %v1234 = vshrl.u32 %v1233, 7
        %v1235 = vsub.s32 %v1232, %v1234
        %v1236 = vrot.slane %v1222, %v1235
        %v1237 = vcombine.high %v1214, 0.0
        %v1238 = vcombine.high %v1221, 0.0
        %v1239 = vcombine.high %v1229, 0.0
        %v1240 = vcombine.high %v1236, 0.0
        %v1241 = vcombine.high %v537, 0.0
        %v1243 = vunpack.c.l.s4 1983009808
        %v1244 = vunpack.c.0.s8 %v1243
        %v1245 = vlaneseq
        %v1246 = vshrl.u32 %v1245, 7
        %v1247 = vsub.s32 %v1244, %v1246
        %v1248 = vrot.slane %v537, %v1247
        %v1250 = vunpack.c.l.s4 1983009808
        %v1251 = vunpack.c.0.s8 %v1250
        %v1252 = vlaneseq
        %v1253 = vshrl.u32 %v1252, 7
        %v1254 = vsub.s32 %v1251, %v1253
        %v1255 = vrot.slane %v1241, %v1254
        %v1256 = vcombine.high %v1248, 0.0
        %v1258 = vunpack.c.l.s4 1934713408
        %v1259 = vunpack.c.0.s8 %v1258
        %v1260 = vlaneseq
        %v1261 = vshrl.u32 %v1260, 7
        %v1262 = vsub.s32 %v1259, %v1261
        %v1263 = vrot.slane %v1248, %v1262
        %v1265 = vunpack.c.l.s4 1934713408
        %v1266 = vunpack.c.0.s8 %v1265
        %v1267 = vlaneseq
        %v1268 = vshrl.u32 %v1267, 7
        %v1269 = vsub.s32 %v1266, %v1268
        %v1270 = vrot.slane %v1256, %v1269
        %v1271 = vcombine.high %v1255, 0.0
        %v1273 = vunpack.c.l.s4 1934713408
        %v1274 = vunpack.c.0.s8 %v1273
        %v1275 = vlaneseq
        %v1276 = vshrl.u32 %v1275, 7
        %v1277 = vsub.s32 %v1274, %v1276
        %v1278 = vrot.slane %v1255, %v1277
        %v1280 = vunpack.c.l.s4 1934713408
        %v1281 = vunpack.c.0.s8 %v1280
        %v1282 = vlaneseq
        %v1283 = vshrl.u32 %v1282, 7
        %v1284 = vsub.s32 %v1281, %v1283
        %v1285 = vrot.slane %v1271, %v1284
        %v1286 = vcombine.high %v1263, 0.0
        %v1287 = vcombine.high %v1270, 0.0
        %v1288 = vcombine.high %v1278, 0.0
        %v1289 = vcombine.high %v1285, 0.0
        %v1290 = vcombine.high %v538, 0.0
        %v1292 = vunpack.c.l.s4 1983009808
        %v1293 = vunpack.c.0.s8 %v1292
        %v1294 = vlaneseq
        %v1295 = vshrl.u32 %v1294, 7
        %v1296 = vsub.s32 %v1293, %v1295
        %v1297 = vrot.slane %v538, %v1296
        %v1299 = vunpack.c.l.s4 1983009808
        %v1300 = vunpack.c.0.s8 %v1299
        %v1301 = vlaneseq
        %v1302 = vshrl.u32 %v1301, 7
        %v1303 = vsub.s32 %v1300, %v1302
        %v1304 = vrot.slane %v1290, %v1303
        %v1305 = vcombine.high %v1297, 0.0
        %v1307 = vunpack.c.l.s4 1934713408
        %v1308 = vunpack.c.0.s8 %v1307
        %v1309 = vlaneseq
        %v1310 = vshrl.u32 %v1309, 7
        %v1311 = vsub.s32 %v1308, %v1310
        %v1312 = vrot.slane %v1297, %v1311
        %v1314 = vunpack.c.l.s4 1934713408
        %v1315 = vunpack.c.0.s8 %v1314
        %v1316 = vlaneseq
        %v1317 = vshrl.u32 %v1316, 7
        %v1318 = vsub.s32 %v1315, %v1317
        %v1319 = vrot.slane %v1305, %v1318
        %v1320 = vcombine.high %v1304, 0.0
        %v1322 = vunpack.c.l.s4 1934713408
        %v1323 = vunpack.c.0.s8 %v1322
        %v1324 = vlaneseq
        %v1325 = vshrl.u32 %v1324, 7
        %v1326 = vsub.s32 %v1323, %v1325
        %v1327 = vrot.slane %v1304, %v1326
        %v1329 = vunpack.c.l.s4 1934713408
        %v1330 = vunpack.c.0.s8 %v1329
        %v1331 = vlaneseq
        %v1332 = vshrl.u32 %v1331, 7
        %v1333 = vsub.s32 %v1330, %v1332
        %v1334 = vrot.slane %v1320, %v1333
        %v1335 = vcombine.high %v1312, 0.0
        %v1336 = vcombine.high %v1319, 0.0
        %v1337 = vcombine.high %v1327, 0.0
        %v1338 = vcombine.high %v1334, 0.0
        %v1339 = vcombine.high %v539, 0.0
        %v1341 = vunpack.c.l.s4 1983009808
        %v1342 = vunpack.c.0.s8 %v1341
        %v1343 = vlaneseq
        %v1344 = vshrl.u32 %v1343, 7
        %v1345 = vsub.s32 %v1342, %v1344
        %v1346 = vrot.slane %v539, %v1345
        %v1348 = vunpack.c.l.s4 1983009808
        %v1349 = vunpack.c.0.s8 %v1348
        %v1350 = vlaneseq
        %v1351 = vshrl.u32 %v1350, 7
        %v1352 = vsub.s32 %v1349, %v1351
        %v1353 = vrot.slane %v1339, %v1352
        %v1354 = vcombine.high %v1346, 0.0
        %v1356 = vunpack.c.l.s4 1934713408
        %v1357 = vunpack.c.0.s8 %v1356
        %v1358 = vlaneseq
        %v1359 = vshrl.u32 %v1358, 7
        %v1360 = vsub.s32 %v1357, %v1359
        %v1361 = vrot.slane %v1346, %v1360
        %v1363 = vunpack.c.l.s4 1934713408
        %v1364 = vunpack.c.0.s8 %v1363
        %v1365 = vlaneseq
        %v1366 = vshrl.u32 %v1365, 7
        %v1367 = vsub.s32 %v1364, %v1366
        %v1368 = vrot.slane %v1354, %v1367
        %v1369 = vcombine.high %v1353, 0.0
        %v1371 = vunpack.c.l.s4 1934713408
        %v1372 = vunpack.c.0.s8 %v1371
        %v1373 = vlaneseq
        %v1374 = vshrl.u32 %v1373, 7
        %v1375 = vsub.s32 %v1372, %v1374
        %v1376 = vrot.slane %v1353, %v1375
        %v1378 = vunpack.c.l.s4 1934713408
        %v1379 = vunpack.c.0.s8 %v1378
        %v1380 = vlaneseq
        %v1381 = vshrl.u32 %v1380, 7
        %v1382 = vsub.s32 %v1379, %v1381
        %v1383 = vrot.slane %v1369, %v1382
        %v1384 = vcombine.high %v1361, 0.0
        %v1385 = vcombine.high %v1368, 0.0
        %v1386 = vcombine.high %v1376, 0.0
        %v1387 = vcombine.high %v1383, 0.0
        %v1388 = vcombine.high %v540, 0.0
        %v1390 = vunpack.c.l.s4 1983009808
        %v1391 = vunpack.c.0.s8 %v1390
        %v1392 = vlaneseq
        %v1393 = vshrl.u32 %v1392, 7
        %v1394 = vsub.s32 %v1391, %v1393
        %v1395 = vrot.slane %v540, %v1394
        %v1397 = vunpack.c.l.s4 1983009808
        %v1398 = vunpack.c.0.s8 %v1397
        %v1399 = vlaneseq
        %v1400 = vshrl.u32 %v1399, 7
        %v1401 = vsub.s32 %v1398, %v1400
        %v1402 = vrot.slane %v1388, %v1401
        %v1403 = vcombine.high %v1395, 0.0
        %v1405 = vunpack.c.l.s4 1934713408
        %v1406 = vunpack.c.0.s8 %v1405
        %v1407 = vlaneseq
        %v1408 = vshrl.u32 %v1407, 7
        %v1409 = vsub.s32 %v1406, %v1408
        %v1410 = vrot.slane %v1395, %v1409
        %v1412 = vunpack.c.l.s4 1934713408
        %v1413 = vunpack.c.0.s8 %v1412
        %v1414 = vlaneseq
        %v1415 = vshrl.u32 %v1414, 7
        %v1416 = vsub.s32 %v1413, %v1415
        %v1417 = vrot.slane %v1403, %v1416
        %v1418 = vcombine.high %v1402, 0.0
        %v1420 = vunpack.c.l.s4 1934713408
        %v1421 = vunpack.c.0.s8 %v1420
        %v1422 = vlaneseq
        %v1423 = vshrl.u32 %v1422, 7
        %v1424 = vsub.s32 %v1421, %v1423
        %v1425 = vrot.slane %v1402, %v1424
        %v1427 = vunpack.c.l.s4 1934713408
        %v1428 = vunpack.c.0.s8 %v1427
        %v1429 = vlaneseq
        %v1430 = vshrl.u32 %v1429, 7
        %v1431 = vsub.s32 %v1428, %v1430
        %v1432 = vrot.slane %v1418, %v1431
        %v1433 = vcombine.high %v1410, 0.0
        %v1434 = vcombine.high %v1417, 0.0
        %v1435 = vcombine.high %v1425, 0.0
        %v1436 = vcombine.high %v1432, 0.0
        %v1437 = vcombine.high %v541, 0.0
        %v1439 = vunpack.c.l.s4 1983009808
        %v1440 = vunpack.c.0.s8 %v1439
        %v1441 = vlaneseq
        %v1442 = vshrl.u32 %v1441, 7
        %v1443 = vsub.s32 %v1440, %v1442
        %v1444 = vrot.slane %v541, %v1443
        %v1446 = vunpack.c.l.s4 1983009808
        %v1447 = vunpack.c.0.s8 %v1446
        %v1448 = vlaneseq
        %v1449 = vshrl.u32 %v1448, 7
        %v1450 = vsub.s32 %v1447, %v1449
        %v1451 = vrot.slane %v1437, %v1450
        %v1452 = vcombine.high %v1444, 0.0
        %v1454 = vunpack.c.l.s4 1934713408
        %v1455 = vunpack.c.0.s8 %v1454
        %v1456 = vlaneseq
        %v1457 = vshrl.u32 %v1456, 7
        %v1458 = vsub.s32 %v1455, %v1457
        %v1459 = vrot.slane %v1444, %v1458
        %v1461 = vunpack.c.l.s4 1934713408
        %v1462 = vunpack.c.0.s8 %v1461
        %v1463 = vlaneseq
        %v1464 = vshrl.u32 %v1463, 7
        %v1465 = vsub.s32 %v1462, %v1464
        %v1466 = vrot.slane %v1452, %v1465
        %v1467 = vcombine.high %v1451, 0.0
        %v1469 = vunpack.c.l.s4 1934713408
        %v1470 = vunpack.c.0.s8 %v1469
        %v1471 = vlaneseq
        %v1472 = vshrl.u32 %v1471, 7
        %v1473 = vsub.s32 %v1470, %v1472
        %v1474 = vrot.slane %v1451, %v1473
        %v1476 = vunpack.c.l.s4 1934713408
        %v1477 = vunpack.c.0.s8 %v1476
        %v1478 = vlaneseq
        %v1479 = vshrl.u32 %v1478, 7
        %v1480 = vsub.s32 %v1477, %v1479
        %v1481 = vrot.slane %v1467, %v1480
        %v1482 = vcombine.high %v1459, 0.0
        %v1483 = vcombine.high %v1466, 0.0
        %v1484 = vcombine.high %v1474, 0.0
        %v1485 = vcombine.high %v1481, 0.0
        %v1486 = vcombine.high %v542, 0.0
        %v1488 = vunpack.c.l.s4 1983009808
        %v1489 = vunpack.c.0.s8 %v1488
        %v1490 = vlaneseq
        %v1491 = vshrl.u32 %v1490, 7
        %v1492 = vsub.s32 %v1489, %v1491
        %v1493 = vrot.slane %v542, %v1492
        %v1495 = vunpack.c.l.s4 1983009808
        %v1496 = vunpack.c.0.s8 %v1495
        %v1497 = vlaneseq
        %v1498 = vshrl.u32 %v1497, 7
        %v1499 = vsub.s32 %v1496, %v1498
        %v1500 = vrot.slane %v1486, %v1499
        %v1501 = vcombine.high %v1493, 0.0
        %v1503 = vunpack.c.l.s4 1934713408
        %v1504 = vunpack.c.0.s8 %v1503
        %v1505 = vlaneseq
        %v1506 = vshrl.u32 %v1505, 7
        %v1507 = vsub.s32 %v1504, %v1506
        %v1508 = vrot.slane %v1493, %v1507
        %v1510 = vunpack.c.l.s4 1934713408
        %v1511 = vunpack.c.0.s8 %v1510
        %v1512 = vlaneseq
        %v1513 = vshrl.u32 %v1512, 7
        %v1514 = vsub.s32 %v1511, %v1513
        %v1515 = vrot.slane %v1501, %v1514
        %v1516 = vcombine.high %v1500, 0.0
        %v1518 = vunpack.c.l.s4 1934713408
        %v1519 = vunpack.c.0.s8 %v1518
        %v1520 = vlaneseq
        %v1521 = vshrl.u32 %v1520, 7
        %v1522 = vsub.s32 %v1519, %v1521
        %v1523 = vrot.slane %v1500, %v1522
        %v1525 = vunpack.c.l.s4 1934713408
        %v1526 = vunpack.c.0.s8 %v1525
        %v1527 = vlaneseq
        %v1528 = vshrl.u32 %v1527, 7
        %v1529 = vsub.s32 %v1526, %v1528
        %v1530 = vrot.slane %v1516, %v1529
        %v1531 = vcombine.high %v1508, 0.0
        %v1532 = vcombine.high %v1515, 0.0
        %v1533 = vcombine.high %v1523, 0.0
        %v1534 = vcombine.high %v1530, 0.0
        %v1535 = vcombine.high %v543, 0.0
        %v1537 = vunpack.c.l.s4 1983009808
        %v1538 = vunpack.c.0.s8 %v1537
        %v1539 = vlaneseq
        %v1540 = vshrl.u32 %v1539, 7
        %v1541 = vsub.s32 %v1538, %v1540
        %v1542 = vrot.slane %v543, %v1541
        %v1544 = vunpack.c.l.s4 1983009808
        %v1545 = vunpack.c.0.s8 %v1544
        %v1546 = vlaneseq
        %v1547 = vshrl.u32 %v1546, 7
        %v1548 = vsub.s32 %v1545, %v1547
        %v1549 = vrot.slane %v1535, %v1548
        %v1550 = vcombine.high %v1542, 0.0
        %v1552 = vunpack.c.l.s4 1934713408
        %v1553 = vunpack.c.0.s8 %v1552
        %v1554 = vlaneseq
        %v1555 = vshrl.u32 %v1554, 7
        %v1556 = vsub.s32 %v1553, %v1555
        %v1557 = vrot.slane %v1542, %v1556
        %v1559 = vunpack.c.l.s4 1934713408
        %v1560 = vunpack.c.0.s8 %v1559
        %v1561 = vlaneseq
        %v1562 = vshrl.u32 %v1561, 7
        %v1563 = vsub.s32 %v1560, %v1562
        %v1564 = vrot.slane %v1550, %v1563
        %v1565 = vcombine.high %v1549, 0.0
        %v1567 = vunpack.c.l.s4 1934713408
        %v1568 = vunpack.c.0.s8 %v1567
        %v1569 = vlaneseq
        %v1570 = vshrl.u32 %v1569, 7
        %v1571 = vsub.s32 %v1568, %v1570
        %v1572 = vrot.slane %v1549, %v1571
        %v1574 = vunpack.c.l.s4 1934713408
        %v1575 = vunpack.c.0.s8 %v1574
        %v1576 = vlaneseq
        %v1577 = vshrl.u32 %v1576, 7
        %v1578 = vsub.s32 %v1575, %v1577
        %v1579 = vrot.slane %v1565, %v1578
        %v1580 = vcombine.high %v1557, 0.0
        %v1581 = vcombine.high %v1564, 0.0
        %v1582 = vcombine.high %v1572, 0.0
        %v1583 = vcombine.high %v1579, 0.0
        %v1584 = vcombine.high %v544, 0.0
        %v1586 = vunpack.c.l.s4 1983009808
        %v1587 = vunpack.c.0.s8 %v1586
        %v1588 = vlaneseq
        %v1589 = vshrl.u32 %v1588, 7
        %v1590 = vsub.s32 %v1587, %v1589
        %v1591 = vrot.slane %v544, %v1590
        %v1593 = vunpack.c.l.s4 1983009808
        %v1594 = vunpack.c.0.s8 %v1593
        %v1595 = vlaneseq
        %v1596 = vshrl.u32 %v1595, 7
        %v1597 = vsub.s32 %v1594, %v1596
        %v1598 = vrot.slane %v1584, %v1597
        %v1599 = vcombine.high %v1591, 0.0
        %v1601 = vunpack.c.l.s4 1934713408
        %v1602 = vunpack.c.0.s8 %v1601
        %v1603 = vlaneseq
        %v1604 = vshrl.u32 %v1603, 7
        %v1605 = vsub.s32 %v1602, %v1604
        %v1606 = vrot.slane %v1591, %v1605
        %v1608 = vunpack.c.l.s4 1934713408
        %v1609 = vunpack.c.0.s8 %v1608
        %v1610 = vlaneseq
        %v1611 = vshrl.u32 %v1610, 7
        %v1612 = vsub.s32 %v1609, %v1611
        %v1613 = vrot.slane %v1599, %v1612
        %v1614 = vcombine.high %v1598, 0.0
        %v1616 = vunpack.c.l.s4 1934713408
        %v1617 = vunpack.c.0.s8 %v1616
        %v1618 = vlaneseq
        %v1619 = vshrl.u32 %v1618, 7
        %v1620 = vsub.s32 %v1617, %v1619
        %v1621 = vrot.slane %v1598, %v1620
        %v1623 = vunpack.c.l.s4 1934713408
        %v1624 = vunpack.c.0.s8 %v1623
        %v1625 = vlaneseq
        %v1626 = vshrl.u32 %v1625, 7
        %v1627 = vsub.s32 %v1624, %v1626
        %v1628 = vrot.slane %v1614, %v1627
        %v1629 = vcombine.high %v1606, 0.0
        %v1630 = vcombine.high %v1613, 0.0
        %v1631 = vcombine.high %v1621, 0.0
        %v1632 = vcombine.high %v1628, 0.0
        %v1633 = vcombine.high %v545, 0.0
        %v1635 = vunpack.c.l.s4 1983009808
        %v1636 = vunpack.c.0.s8 %v1635
        %v1637 = vlaneseq
        %v1638 = vshrl.u32 %v1637, 7
        %v1639 = vsub.s32 %v1636, %v1638
        %v1640 = vrot.slane %v545, %v1639
        %v1642 = vunpack.c.l.s4 1983009808
        %v1643 = vunpack.c.0.s8 %v1642
        %v1644 = vlaneseq
        %v1645 = vshrl.u32 %v1644, 7
        %v1646 = vsub.s32 %v1643, %v1645
        %v1647 = vrot.slane %v1633, %v1646
        %v1648 = vcombine.high %v1640, 0.0
        %v1650 = vunpack.c.l.s4 1934713408
        %v1651 = vunpack.c.0.s8 %v1650
        %v1652 = vlaneseq
        %v1653 = vshrl.u32 %v1652, 7
        %v1654 = vsub.s32 %v1651, %v1653
        %v1655 = vrot.slane %v1640, %v1654
        %v1657 = vunpack.c.l.s4 1934713408
        %v1658 = vunpack.c.0.s8 %v1657
        %v1659 = vlaneseq
        %v1660 = vshrl.u32 %v1659, 7
        %v1661 = vsub.s32 %v1658, %v1660
        %v1662 = vrot.slane %v1648, %v1661
        %v1663 = vcombine.high %v1647, 0.0
        %v1665 = vunpack.c.l.s4 1934713408
        %v1666 = vunpack.c.0.s8 %v1665
        %v1667 = vlaneseq
        %v1668 = vshrl.u32 %v1667, 7
        %v1669 = vsub.s32 %v1666, %v1668
        %v1670 = vrot.slane %v1647, %v1669
        %v1672 = vunpack.c.l.s4 1934713408
        %v1673 = vunpack.c.0.s8 %v1672
        %v1674 = vlaneseq
        %v1675 = vshrl.u32 %v1674, 7
        %v1676 = vsub.s32 %v1673, %v1675
        %v1677 = vrot.slane %v1663, %v1676
        %v1678 = vcombine.high %v1655, 0.0
        %v1679 = vcombine.high %v1662, 0.0
        %v1680 = vcombine.high %v1670, 0.0
        %v1681 = vcombine.high %v1677, 0.0
        %v1682 = vcombine.high %v546, 0.0
        %v1684 = vunpack.c.l.s4 1983009808
        %v1685 = vunpack.c.0.s8 %v1684
        %v1686 = vlaneseq
        %v1687 = vshrl.u32 %v1686, 7
        %v1688 = vsub.s32 %v1685, %v1687
        %v1689 = vrot.slane %v546, %v1688
        %v1691 = vunpack.c.l.s4 1983009808
        %v1692 = vunpack.c.0.s8 %v1691
        %v1693 = vlaneseq
        %v1694 = vshrl.u32 %v1693, 7
        %v1695 = vsub.s32 %v1692, %v1694
        %v1696 = vrot.slane %v1682, %v1695
        %v1697 = vcombine.high %v1689, 0.0
        %v1699 = vunpack.c.l.s4 1934713408
        %v1700 = vunpack.c.0.s8 %v1699
        %v1701 = vlaneseq
        %v1702 = vshrl.u32 %v1701, 7
        %v1703 = vsub.s32 %v1700, %v1702
        %v1704 = vrot.slane %v1689, %v1703
        %v1706 = vunpack.c.l.s4 1934713408
        %v1707 = vunpack.c.0.s8 %v1706
        %v1708 = vlaneseq
        %v1709 = vshrl.u32 %v1708, 7
        %v1710 = vsub.s32 %v1707, %v1709
        %v1711 = vrot.slane %v1697, %v1710
        %v1712 = vcombine.high %v1696, 0.0
        %v1714 = vunpack.c.l.s4 1934713408
        %v1715 = vunpack.c.0.s8 %v1714
        %v1716 = vlaneseq
        %v1717 = vshrl.u32 %v1716, 7
        %v1718 = vsub.s32 %v1715, %v1717
        %v1719 = vrot.slane %v1696, %v1718
        %v1721 = vunpack.c.l.s4 1934713408
        %v1722 = vunpack.c.0.s8 %v1721
        %v1723 = vlaneseq
        %v1724 = vshrl.u32 %v1723, 7
        %v1725 = vsub.s32 %v1722, %v1724
        %v1726 = vrot.slane %v1712, %v1725
        %v1727 = vcombine.high %v1704, 0.0
        %v1728 = vcombine.high %v1711, 0.0
        %v1729 = vcombine.high %v1719, 0.0
        %v1730 = vcombine.high %v1726, 0.0
        %v1731 = vcombine.high %v547, 0.0
        %v1733 = vunpack.c.l.s4 1983009808
        %v1734 = vunpack.c.0.s8 %v1733
        %v1735 = vlaneseq
        %v1736 = vshrl.u32 %v1735, 7
        %v1737 = vsub.s32 %v1734, %v1736
        %v1738 = vrot.slane %v547, %v1737
        %v1740 = vunpack.c.l.s4 1983009808
        %v1741 = vunpack.c.0.s8 %v1740
        %v1742 = vlaneseq
        %v1743 = vshrl.u32 %v1742, 7
        %v1744 = vsub.s32 %v1741, %v1743
        %v1745 = vrot.slane %v1731, %v1744
        %v1746 = vcombine.high %v1738, 0.0
        %v1748 = vunpack.c.l.s4 1934713408
        %v1749 = vunpack.c.0.s8 %v1748
        %v1750 = vlaneseq
        %v1751 = vshrl.u32 %v1750, 7
        %v1752 = vsub.s32 %v1749, %v1751
        %v1753 = vrot.slane %v1738, %v1752
        %v1755 = vunpack.c.l.s4 1934713408
        %v1756 = vunpack.c.0.s8 %v1755
        %v1757 = vlaneseq
        %v1758 = vshrl.u32 %v1757, 7
        %v1759 = vsub.s32 %v1756, %v1758
        %v1760 = vrot.slane %v1746, %v1759
        %v1761 = vcombine.high %v1745, 0.0
        %v1763 = vunpack.c.l.s4 1934713408
        %v1764 = vunpack.c.0.s8 %v1763
        %v1765 = vlaneseq
        %v1766 = vshrl.u32 %v1765, 7
        %v1767 = vsub.s32 %v1764, %v1766
        %v1768 = vrot.slane %v1745, %v1767
        %v1770 = vunpack.c.l.s4 1934713408
        %v1771 = vunpack.c.0.s8 %v1770
        %v1772 = vlaneseq
        %v1773 = vshrl.u32 %v1772, 7
        %v1774 = vsub.s32 %v1771, %v1773
        %v1775 = vrot.slane %v1761, %v1774
        %v1776 = vcombine.high %v1753, 0.0
        %v1777 = vcombine.high %v1760, 0.0
        %v1778 = vcombine.high %v1768, 0.0
        %v1779 = vcombine.high %v1775, 0.0
        %v1780 = vcombine.high %v548, 0.0
        %v1782 = vunpack.c.l.s4 1983009808
        %v1783 = vunpack.c.0.s8 %v1782
        %v1784 = vlaneseq
        %v1785 = vshrl.u32 %v1784, 7
        %v1786 = vsub.s32 %v1783, %v1785
        %v1787 = vrot.slane %v548, %v1786
        %v1789 = vunpack.c.l.s4 1983009808
        %v1790 = vunpack.c.0.s8 %v1789
        %v1791 = vlaneseq
        %v1792 = vshrl.u32 %v1791, 7
        %v1793 = vsub.s32 %v1790, %v1792
        %v1794 = vrot.slane %v1780, %v1793
        %v1795 = vcombine.high %v1787, 0.0
        %v1797 = vunpack.c.l.s4 1934713408
        %v1798 = vunpack.c.0.s8 %v1797
        %v1799 = vlaneseq
        %v1800 = vshrl.u32 %v1799, 7
        %v1801 = vsub.s32 %v1798, %v1800
        %v1802 = vrot.slane %v1787, %v1801
        %v1804 = vunpack.c.l.s4 1934713408
        %v1805 = vunpack.c.0.s8 %v1804
        %v1806 = vlaneseq
        %v1807 = vshrl.u32 %v1806, 7
        %v1808 = vsub.s32 %v1805, %v1807
        %v1809 = vrot.slane %v1795, %v1808
        %v1810 = vcombine.high %v1794, 0.0
        %v1812 = vunpack.c.l.s4 1934713408
        %v1813 = vunpack.c.0.s8 %v1812
        %v1814 = vlaneseq
        %v1815 = vshrl.u32 %v1814, 7
        %v1816 = vsub.s32 %v1813, %v1815
        %v1817 = vrot.slane %v1794, %v1816
        %v1819 = vunpack.c.l.s4 1934713408
        %v1820 = vunpack.c.0.s8 %v1819
        %v1821 = vlaneseq
        %v1822 = vshrl.u32 %v1821, 7
        %v1823 = vsub.s32 %v1820, %v1822
        %v1824 = vrot.slane %v1810, %v1823
        %v1825 = vcombine.high %v1802, 0.0
        %v1826 = vcombine.high %v1809, 0.0
        %v1827 = vcombine.high %v1817, 0.0
        %v1828 = vcombine.high %v1824, 0.0
        %v1829 = vcombine.high %v549, 0.0
        %v1831 = vunpack.c.l.s4 1983009808
        %v1832 = vunpack.c.0.s8 %v1831
        %v1833 = vlaneseq
        %v1834 = vshrl.u32 %v1833, 7
        %v1835 = vsub.s32 %v1832, %v1834
        %v1836 = vrot.slane %v549, %v1835
        %v1838 = vunpack.c.l.s4 1983009808
        %v1839 = vunpack.c.0.s8 %v1838
        %v1840 = vlaneseq
        %v1841 = vshrl.u32 %v1840, 7
        %v1842 = vsub.s32 %v1839, %v1841
        %v1843 = vrot.slane %v1829, %v1842
        %v1844 = vcombine.high %v1836, 0.0
        %v1846 = vunpack.c.l.s4 1934713408
        %v1847 = vunpack.c.0.s8 %v1846
        %v1848 = vlaneseq
        %v1849 = vshrl.u32 %v1848, 7
        %v1850 = vsub.s32 %v1847, %v1849
        %v1851 = vrot.slane %v1836, %v1850
        %v1853 = vunpack.c.l.s4 1934713408
        %v1854 = vunpack.c.0.s8 %v1853
        %v1855 = vlaneseq
        %v1856 = vshrl.u32 %v1855, 7
        %v1857 = vsub.s32 %v1854, %v1856
        %v1858 = vrot.slane %v1844, %v1857
        %v1859 = vcombine.high %v1843, 0.0
        %v1861 = vunpack.c.l.s4 1934713408
        %v1862 = vunpack.c.0.s8 %v1861
        %v1863 = vlaneseq
        %v1864 = vshrl.u32 %v1863, 7
        %v1865 = vsub.s32 %v1862, %v1864
        %v1866 = vrot.slane %v1843, %v1865
        %v1868 = vunpack.c.l.s4 1934713408
        %v1869 = vunpack.c.0.s8 %v1868
        %v1870 = vlaneseq
        %v1871 = vshrl.u32 %v1870, 7
        %v1872 = vsub.s32 %v1869, %v1871
        %v1873 = vrot.slane %v1859, %v1872
        %v1874 = vcombine.high %v1851, 0.0
        %v1875 = vcombine.high %v1858, 0.0
        %v1876 = vcombine.high %v1866, 0.0
        %v1877 = vcombine.high %v1873, 0.0
        %v1878 = vcombine.high %v550, 0.0
        %v1880 = vunpack.c.l.s4 1983009808
        %v1881 = vunpack.c.0.s8 %v1880
        %v1882 = vlaneseq
        %v1883 = vshrl.u32 %v1882, 7
        %v1884 = vsub.s32 %v1881, %v1883
        %v1885 = vrot.slane %v550, %v1884
        %v1887 = vunpack.c.l.s4 1983009808
        %v1888 = vunpack.c.0.s8 %v1887
        %v1889 = vlaneseq
        %v1890 = vshrl.u32 %v1889, 7
        %v1891 = vsub.s32 %v1888, %v1890
        %v1892 = vrot.slane %v1878, %v1891
        %v1893 = vcombine.high %v1885, 0.0
        %v1895 = vunpack.c.l.s4 1934713408
        %v1896 = vunpack.c.0.s8 %v1895
        %v1897 = vlaneseq
        %v1898 = vshrl.u32 %v1897, 7
        %v1899 = vsub.s32 %v1896, %v1898
        %v1900 = vrot.slane %v1885, %v1899
        %v1902 = vunpack.c.l.s4 1934713408
        %v1903 = vunpack.c.0.s8 %v1902
        %v1904 = vlaneseq
        %v1905 = vshrl.u32 %v1904, 7
        %v1906 = vsub.s32 %v1903, %v1905
        %v1907 = vrot.slane %v1893, %v1906
        %v1908 = vcombine.high %v1892, 0.0
        %v1910 = vunpack.c.l.s4 1934713408
        %v1911 = vunpack.c.0.s8 %v1910
        %v1912 = vlaneseq
        %v1913 = vshrl.u32 %v1912, 7
        %v1914 = vsub.s32 %v1911, %v1913
        %v1915 = vrot.slane %v1892, %v1914
        %v1917 = vunpack.c.l.s4 1934713408
        %v1918 = vunpack.c.0.s8 %v1917
        %v1919 = vlaneseq
        %v1920 = vshrl.u32 %v1919, 7
        %v1921 = vsub.s32 %v1918, %v1920
        %v1922 = vrot.slane %v1908, %v1921
        %v1923 = vcombine.high %v1900, 0.0
        %v1924 = vcombine.high %v1907, 0.0
        %v1925 = vcombine.high %v1915, 0.0
        %v1926 = vcombine.high %v1922, 0.0
        %v1927 = vcombine.high %v551, 0.0
        %v1929 = vunpack.c.l.s4 1983009808
        %v1930 = vunpack.c.0.s8 %v1929
        %v1931 = vlaneseq
        %v1932 = vshrl.u32 %v1931, 7
        %v1933 = vsub.s32 %v1930, %v1932
        %v1934 = vrot.slane %v551, %v1933
        %v1936 = vunpack.c.l.s4 1983009808
        %v1937 = vunpack.c.0.s8 %v1936
        %v1938 = vlaneseq
        %v1939 = vshrl.u32 %v1938, 7
        %v1940 = vsub.s32 %v1937, %v1939
        %v1941 = vrot.slane %v1927, %v1940
        %v1942 = vcombine.high %v1934, 0.0
        %v1944 = vunpack.c.l.s4 1934713408
        %v1945 = vunpack.c.0.s8 %v1944
        %v1946 = vlaneseq
        %v1947 = vshrl.u32 %v1946, 7
        %v1948 = vsub.s32 %v1945, %v1947
        %v1949 = vrot.slane %v1934, %v1948
        %v1951 = vunpack.c.l.s4 1934713408
        %v1952 = vunpack.c.0.s8 %v1951
        %v1953 = vlaneseq
        %v1954 = vshrl.u32 %v1953, 7
        %v1955 = vsub.s32 %v1952, %v1954
        %v1956 = vrot.slane %v1942, %v1955
        %v1957 = vcombine.high %v1941, 0.0
        %v1959 = vunpack.c.l.s4 1934713408
        %v1960 = vunpack.c.0.s8 %v1959
        %v1961 = vlaneseq
        %v1962 = vshrl.u32 %v1961, 7
        %v1963 = vsub.s32 %v1960, %v1962
        %v1964 = vrot.slane %v1941, %v1963
        %v1966 = vunpack.c.l.s4 1934713408
        %v1967 = vunpack.c.0.s8 %v1966
        %v1968 = vlaneseq
        %v1969 = vshrl.u32 %v1968, 7
        %v1970 = vsub.s32 %v1967, %v1969
        %v1971 = vrot.slane %v1957, %v1970
        %v1972 = vcombine.high %v1949, 0.0
        %v1973 = vcombine.high %v1956, 0.0
        %v1974 = vcombine.high %v1964, 0.0
        %v1975 = vcombine.high %v1971, 0.0
        %v1976 = vcombine.high %v552, 0.0
        %v1978 = vunpack.c.l.s4 1983009808
        %v1979 = vunpack.c.0.s8 %v1978
        %v1980 = vlaneseq
        %v1981 = vshrl.u32 %v1980, 7
        %v1982 = vsub.s32 %v1979, %v1981
        %v1983 = vrot.slane %v552, %v1982
        %v1985 = vunpack.c.l.s4 1983009808
        %v1986 = vunpack.c.0.s8 %v1985
        %v1987 = vlaneseq
        %v1988 = vshrl.u32 %v1987, 7
        %v1989 = vsub.s32 %v1986, %v1988
        %v1990 = vrot.slane %v1976, %v1989
        %v1991 = vcombine.high %v1983, 0.0
        %v1993 = vunpack.c.l.s4 1934713408
        %v1994 = vunpack.c.0.s8 %v1993
        %v1995 = vlaneseq
        %v1996 = vshrl.u32 %v1995, 7
        %v1997 = vsub.s32 %v1994, %v1996
        %v1998 = vrot.slane %v1983, %v1997
        %v2000 = vunpack.c.l.s4 1934713408
        %v2001 = vunpack.c.0.s8 %v2000
        %v2002 = vlaneseq
        %v2003 = vshrl.u32 %v2002, 7
        %v2004 = vsub.s32 %v2001, %v2003
        %v2005 = vrot.slane %v1991, %v2004
        %v2006 = vcombine.high %v1990, 0.0
        %v2008 = vunpack.c.l.s4 1934713408
        %v2009 = vunpack.c.0.s8 %v2008
        %v2010 = vlaneseq
        %v2011 = vshrl.u32 %v2010, 7
        %v2012 = vsub.s32 %v2009, %v2011
        %v2013 = vrot.slane %v1990, %v2012
        %v2015 = vunpack.c.l.s4 1934713408
        %v2016 = vunpack.c.0.s8 %v2015
        %v2017 = vlaneseq
        %v2018 = vshrl.u32 %v2017, 7
        %v2019 = vsub.s32 %v2016, %v2018
        %v2020 = vrot.slane %v2006, %v2019
        %v2021 = vcombine.high %v1998, 0.0
        %v2022 = vcombine.high %v2005, 0.0
        %v2023 = vcombine.high %v2013, 0.0
        %v2024 = vcombine.high %v2020, 0.0
        %v2025 = vcombine.high %v553, 0.0
        %v2027 = vunpack.c.l.s4 1983009808
        %v2028 = vunpack.c.0.s8 %v2027
        %v2029 = vlaneseq
        %v2030 = vshrl.u32 %v2029, 7
        %v2031 = vsub.s32 %v2028, %v2030
        %v2032 = vrot.slane %v553, %v2031
        %v2034 = vunpack.c.l.s4 1983009808
        %v2035 = vunpack.c.0.s8 %v2034
        %v2036 = vlaneseq
        %v2037 = vshrl.u32 %v2036, 7
        %v2038 = vsub.s32 %v2035, %v2037
        %v2039 = vrot.slane %v2025, %v2038
        %v2040 = vcombine.high %v2032, 0.0
        %v2042 = vunpack.c.l.s4 1934713408
        %v2043 = vunpack.c.0.s8 %v2042
        %v2044 = vlaneseq
        %v2045 = vshrl.u32 %v2044, 7
        %v2046 = vsub.s32 %v2043, %v2045
        %v2047 = vrot.slane %v2032, %v2046
        %v2049 = vunpack.c.l.s4 1934713408
        %v2050 = vunpack.c.0.s8 %v2049
        %v2051 = vlaneseq
        %v2052 = vshrl.u32 %v2051, 7
        %v2053 = vsub.s32 %v2050, %v2052
        %v2054 = vrot.slane %v2040, %v2053
        %v2055 = vcombine.high %v2039, 0.0
        %v2057 = vunpack.c.l.s4 1934713408
        %v2058 = vunpack.c.0.s8 %v2057
        %v2059 = vlaneseq
        %v2060 = vshrl.u32 %v2059, 7
        %v2061 = vsub.s32 %v2058, %v2060
        %v2062 = vrot.slane %v2039, %v2061
        %v2064 = vunpack.c.l.s4 1934713408
        %v2065 = vunpack.c.0.s8 %v2064
        %v2066 = vlaneseq
        %v2067 = vshrl.u32 %v2066, 7
        %v2068 = vsub.s32 %v2065, %v2067
        %v2069 = vrot.slane %v2055, %v2068
        %v2070 = vcombine.high %v2047, 0.0
        %v2071 = vcombine.high %v2054, 0.0
        %v2072 = vcombine.high %v2062, 0.0
        %v2073 = vcombine.high %v2069, 0.0
        %v2074 = vcombine.high %v554, 0.0
        %v2076 = vunpack.c.l.s4 1983009808
        %v2077 = vunpack.c.0.s8 %v2076
        %v2078 = vlaneseq
        %v2079 = vshrl.u32 %v2078, 7
        %v2080 = vsub.s32 %v2077, %v2079
        %v2081 = vrot.slane %v554, %v2080
        %v2083 = vunpack.c.l.s4 1983009808
        %v2084 = vunpack.c.0.s8 %v2083
        %v2085 = vlaneseq
        %v2086 = vshrl.u32 %v2085, 7
        %v2087 = vsub.s32 %v2084, %v2086
        %v2088 = vrot.slane %v2074, %v2087
        %v2089 = vcombine.high %v2081, 0.0
        %v2091 = vunpack.c.l.s4 1934713408
        %v2092 = vunpack.c.0.s8 %v2091
        %v2093 = vlaneseq
        %v2094 = vshrl.u32 %v2093, 7
        %v2095 = vsub.s32 %v2092, %v2094
        %v2096 = vrot.slane %v2081, %v2095
        %v2098 = vunpack.c.l.s4 1934713408
        %v2099 = vunpack.c.0.s8 %v2098
        %v2100 = vlaneseq
        %v2101 = vshrl.u32 %v2100, 7
        %v2102 = vsub.s32 %v2099, %v2101
        %v2103 = vrot.slane %v2089, %v2102
        %v2104 = vcombine.high %v2088, 0.0
        %v2106 = vunpack.c.l.s4 1934713408
        %v2107 = vunpack.c.0.s8 %v2106
        %v2108 = vlaneseq
        %v2109 = vshrl.u32 %v2108, 7
        %v2110 = vsub.s32 %v2107, %v2109
        %v2111 = vrot.slane %v2088, %v2110
        %v2113 = vunpack.c.l.s4 1934713408
        %v2114 = vunpack.c.0.s8 %v2113
        %v2115 = vlaneseq
        %v2116 = vshrl.u32 %v2115, 7
        %v2117 = vsub.s32 %v2114, %v2116
        %v2118 = vrot.slane %v2104, %v2117
        %v2119 = vcombine.high %v2096, 0.0
        %v2120 = vcombine.high %v2103, 0.0
        %v2121 = vcombine.high %v2111, 0.0
        %v2122 = vcombine.high %v2118, 0.0
        %v2123 = vcombine.high %v555, 0.0
        %v2125 = vunpack.c.l.s4 1983009808
        %v2126 = vunpack.c.0.s8 %v2125
        %v2127 = vlaneseq
        %v2128 = vshrl.u32 %v2127, 7
        %v2129 = vsub.s32 %v2126, %v2128
        %v2130 = vrot.slane %v555, %v2129
        %v2132 = vunpack.c.l.s4 1983009808
        %v2133 = vunpack.c.0.s8 %v2132
        %v2134 = vlaneseq
        %v2135 = vshrl.u32 %v2134, 7
        %v2136 = vsub.s32 %v2133, %v2135
        %v2137 = vrot.slane %v2123, %v2136
        %v2138 = vcombine.high %v2130, 0.0
        %v2140 = vunpack.c.l.s4 1934713408
        %v2141 = vunpack.c.0.s8 %v2140
        %v2142 = vlaneseq
        %v2143 = vshrl.u32 %v2142, 7
        %v2144 = vsub.s32 %v2141, %v2143
        %v2145 = vrot.slane %v2130, %v2144
        %v2147 = vunpack.c.l.s4 1934713408
        %v2148 = vunpack.c.0.s8 %v2147
        %v2149 = vlaneseq
        %v2150 = vshrl.u32 %v2149, 7
        %v2151 = vsub.s32 %v2148, %v2150
        %v2152 = vrot.slane %v2138, %v2151
        %v2153 = vcombine.high %v2137, 0.0
        %v2155 = vunpack.c.l.s4 1934713408
        %v2156 = vunpack.c.0.s8 %v2155
        %v2157 = vlaneseq
        %v2158 = vshrl.u32 %v2157, 7
        %v2159 = vsub.s32 %v2156, %v2158
        %v2160 = vrot.slane %v2137, %v2159
        %v2162 = vunpack.c.l.s4 1934713408
        %v2163 = vunpack.c.0.s8 %v2162
        %v2164 = vlaneseq
        %v2165 = vshrl.u32 %v2164, 7
        %v2166 = vsub.s32 %v2163, %v2165
        %v2167 = vrot.slane %v2153, %v2166
        %v2168 = vcombine.high %v2145, 0.0
        %v2169 = vcombine.high %v2152, 0.0
        %v2170 = vcombine.high %v2160, 0.0
        %v2171 = vcombine.high %v2167, 0.0
        %v2172 = vcombine.high %v556, 0.0
        %v2174 = vunpack.c.l.s4 1983009808
        %v2175 = vunpack.c.0.s8 %v2174
        %v2176 = vlaneseq
        %v2177 = vshrl.u32 %v2176, 7
        %v2178 = vsub.s32 %v2175, %v2177
        %v2179 = vrot.slane %v556, %v2178
        %v2181 = vunpack.c.l.s4 1983009808
        %v2182 = vunpack.c.0.s8 %v2181
        %v2183 = vlaneseq
        %v2184 = vshrl.u32 %v2183, 7
        %v2185 = vsub.s32 %v2182, %v2184
        %v2186 = vrot.slane %v2172, %v2185
        %v2187 = vcombine.high %v2179, 0.0
        %v2189 = vunpack.c.l.s4 1934713408
        %v2190 = vunpack.c.0.s8 %v2189
        %v2191 = vlaneseq
        %v2192 = vshrl.u32 %v2191, 7
        %v2193 = vsub.s32 %v2190, %v2192
        %v2194 = vrot.slane %v2179, %v2193
        %v2196 = vunpack.c.l.s4 1934713408
        %v2197 = vunpack.c.0.s8 %v2196
        %v2198 = vlaneseq
        %v2199 = vshrl.u32 %v2198, 7
        %v2200 = vsub.s32 %v2197, %v2199
        %v2201 = vrot.slane %v2187, %v2200
        %v2202 = vcombine.high %v2186, 0.0
        %v2204 = vunpack.c.l.s4 1934713408
        %v2205 = vunpack.c.0.s8 %v2204
        %v2206 = vlaneseq
        %v2207 = vshrl.u32 %v2206, 7
        %v2208 = vsub.s32 %v2205, %v2207
        %v2209 = vrot.slane %v2186, %v2208
        %v2211 = vunpack.c.l.s4 1934713408
        %v2212 = vunpack.c.0.s8 %v2211
        %v2213 = vlaneseq
        %v2214 = vshrl.u32 %v2213, 7
        %v2215 = vsub.s32 %v2212, %v2214
        %v2216 = vrot.slane %v2202, %v2215
        %v2217 = vcombine.high %v2194, 0.0
        %v2218 = vcombine.high %v2201, 0.0
        %v2219 = vcombine.high %v2209, 0.0
        %v2220 = vcombine.high %v2216, 0.0
        %v2221 = vcombine.high %v557, 0.0
        %v2223 = vunpack.c.l.s4 1983009808
        %v2224 = vunpack.c.0.s8 %v2223
        %v2225 = vlaneseq
        %v2226 = vshrl.u32 %v2225, 7
        %v2227 = vsub.s32 %v2224, %v2226
        %v2228 = vrot.slane %v557, %v2227
        %v2230 = vunpack.c.l.s4 1983009808
        %v2231 = vunpack.c.0.s8 %v2230
        %v2232 = vlaneseq
        %v2233 = vshrl.u32 %v2232, 7
        %v2234 = vsub.s32 %v2231, %v2233
        %v2235 = vrot.slane %v2221, %v2234
        %v2236 = vcombine.high %v2228, 0.0
        %v2238 = vunpack.c.l.s4 1934713408
        %v2239 = vunpack.c.0.s8 %v2238
        %v2240 = vlaneseq
        %v2241 = vshrl.u32 %v2240, 7
        %v2242 = vsub.s32 %v2239, %v2241
        %v2243 = vrot.slane %v2228, %v2242
        %v2245 = vunpack.c.l.s4 1934713408
        %v2246 = vunpack.c.0.s8 %v2245
        %v2247 = vlaneseq
        %v2248 = vshrl.u32 %v2247, 7
        %v2249 = vsub.s32 %v2246, %v2248
        %v2250 = vrot.slane %v2236, %v2249
        %v2251 = vcombine.high %v2235, 0.0
        %v2253 = vunpack.c.l.s4 1934713408
        %v2254 = vunpack.c.0.s8 %v2253
        %v2255 = vlaneseq
        %v2256 = vshrl.u32 %v2255, 7
        %v2257 = vsub.s32 %v2254, %v2256
        %v2258 = vrot.slane %v2235, %v2257
        %v2260 = vunpack.c.l.s4 1934713408
        %v2261 = vunpack.c.0.s8 %v2260
        %v2262 = vlaneseq
        %v2263 = vshrl.u32 %v2262, 7
        %v2264 = vsub.s32 %v2261, %v2263
        %v2265 = vrot.slane %v2251, %v2264
        %v2266 = vcombine.high %v2243, 0.0
        %v2267 = vcombine.high %v2250, 0.0
        %v2268 = vcombine.high %v2258, 0.0
        %v2269 = vcombine.high %v2265, 0.0
        %v2270 = vcombine.high %v558, 0.0
        %v2272 = vunpack.c.l.s4 1983009808
        %v2273 = vunpack.c.0.s8 %v2272
        %v2274 = vlaneseq
        %v2275 = vshrl.u32 %v2274, 7
        %v2276 = vsub.s32 %v2273, %v2275
        %v2277 = vrot.slane %v558, %v2276
        %v2279 = vunpack.c.l.s4 1983009808
        %v2280 = vunpack.c.0.s8 %v2279
        %v2281 = vlaneseq
        %v2282 = vshrl.u32 %v2281, 7
        %v2283 = vsub.s32 %v2280, %v2282
        %v2284 = vrot.slane %v2270, %v2283
        %v2285 = vcombine.high %v2277, 0.0
        %v2287 = vunpack.c.l.s4 1934713408
        %v2288 = vunpack.c.0.s8 %v2287
        %v2289 = vlaneseq
        %v2290 = vshrl.u32 %v2289, 7
        %v2291 = vsub.s32 %v2288, %v2290
        %v2292 = vrot.slane %v2277, %v2291
        %v2294 = vunpack.c.l.s4 1934713408
        %v2295 = vunpack.c.0.s8 %v2294
        %v2296 = vlaneseq
        %v2297 = vshrl.u32 %v2296, 7
        %v2298 = vsub.s32 %v2295, %v2297
        %v2299 = vrot.slane %v2285, %v2298
        %v2300 = vcombine.high %v2284, 0.0
        %v2302 = vunpack.c.l.s4 1934713408
        %v2303 = vunpack.c.0.s8 %v2302
        %v2304 = vlaneseq
        %v2305 = vshrl.u32 %v2304, 7
        %v2306 = vsub.s32 %v2303, %v2305
        %v2307 = vrot.slane %v2284, %v2306
        %v2309 = vunpack.c.l.s4 1934713408
        %v2310 = vunpack.c.0.s8 %v2309
        %v2311 = vlaneseq
        %v2312 = vshrl.u32 %v2311, 7
        %v2313 = vsub.s32 %v2310, %v2312
        %v2314 = vrot.slane %v2300, %v2313
        %v2315 = vcombine.high %v2292, 0.0
        %v2316 = vcombine.high %v2299, 0.0
        %v2317 = vcombine.high %v2307, 0.0
        %v2318 = vcombine.high %v2314, 0.0
        %v2319 = vcombine.high %v559, 0.0
        %v2321 = vunpack.c.l.s4 1983009808
        %v2322 = vunpack.c.0.s8 %v2321
        %v2323 = vlaneseq
        %v2324 = vshrl.u32 %v2323, 7
        %v2325 = vsub.s32 %v2322, %v2324
        %v2326 = vrot.slane %v559, %v2325
        %v2328 = vunpack.c.l.s4 1983009808
        %v2329 = vunpack.c.0.s8 %v2328
        %v2330 = vlaneseq
        %v2331 = vshrl.u32 %v2330, 7
        %v2332 = vsub.s32 %v2329, %v2331
        %v2333 = vrot.slane %v2319, %v2332
        %v2334 = vcombine.high %v2326, 0.0
        %v2336 = vunpack.c.l.s4 1934713408
        %v2337 = vunpack.c.0.s8 %v2336
        %v2338 = vlaneseq
        %v2339 = vshrl.u32 %v2338, 7
        %v2340 = vsub.s32 %v2337, %v2339
        %v2341 = vrot.slane %v2326, %v2340
        %v2343 = vunpack.c.l.s4 1934713408
        %v2344 = vunpack.c.0.s8 %v2343
        %v2345 = vlaneseq
        %v2346 = vshrl.u32 %v2345, 7
        %v2347 = vsub.s32 %v2344, %v2346
        %v2348 = vrot.slane %v2334, %v2347
        %v2349 = vcombine.high %v2333, 0.0
        %v2351 = vunpack.c.l.s4 1934713408
        %v2352 = vunpack.c.0.s8 %v2351
        %v2353 = vlaneseq
        %v2354 = vshrl.u32 %v2353, 7
        %v2355 = vsub.s32 %v2352, %v2354
        %v2356 = vrot.slane %v2333, %v2355
        %v2358 = vunpack.c.l.s4 1934713408
        %v2359 = vunpack.c.0.s8 %v2358
        %v2360 = vlaneseq
        %v2361 = vshrl.u32 %v2360, 7
        %v2362 = vsub.s32 %v2359, %v2361
        %v2363 = vrot.slane %v2349, %v2362
        %v2364 = vcombine.high %v2341, 0.0
        %v2365 = vcombine.high %v2348, 0.0
        %v2366 = vcombine.high %v2356, 0.0
        %v2367 = vcombine.high %v2363, 0.0
        %v2368 = vcombine.high %v560, 0.0
        %v2370 = vunpack.c.l.s4 1983009808
        %v2371 = vunpack.c.0.s8 %v2370
        %v2372 = vlaneseq
        %v2373 = vshrl.u32 %v2372, 7
        %v2374 = vsub.s32 %v2371, %v2373
        %v2375 = vrot.slane %v560, %v2374
        %v2377 = vunpack.c.l.s4 1983009808
        %v2378 = vunpack.c.0.s8 %v2377
        %v2379 = vlaneseq
        %v2380 = vshrl.u32 %v2379, 7
        %v2381 = vsub.s32 %v2378, %v2380
        %v2382 = vrot.slane %v2368, %v2381
        %v2383 = vcombine.high %v2375, 0.0
        %v2385 = vunpack.c.l.s4 1934713408
        %v2386 = vunpack.c.0.s8 %v2385
        %v2387 = vlaneseq
        %v2388 = vshrl.u32 %v2387, 7
        %v2389 = vsub.s32 %v2386, %v2388
        %v2390 = vrot.slane %v2375, %v2389
        %v2392 = vunpack.c.l.s4 1934713408
        %v2393 = vunpack.c.0.s8 %v2392
        %v2394 = vlaneseq
        %v2395 = vshrl.u32 %v2394, 7
        %v2396 = vsub.s32 %v2393, %v2395
        %v2397 = vrot.slane %v2383, %v2396
        %v2398 = vcombine.high %v2382, 0.0
        %v2400 = vunpack.c.l.s4 1934713408
        %v2401 = vunpack.c.0.s8 %v2400
        %v2402 = vlaneseq
        %v2403 = vshrl.u32 %v2402, 7
        %v2404 = vsub.s32 %v2401, %v2403
        %v2405 = vrot.slane %v2382, %v2404
        %v2407 = vunpack.c.l.s4 1934713408
        %v2408 = vunpack.c.0.s8 %v2407
        %v2409 = vlaneseq
        %v2410 = vshrl.u32 %v2409, 7
        %v2411 = vsub.s32 %v2408, %v2410
        %v2412 = vrot.slane %v2398, %v2411
        %v2413 = vcombine.high %v2390, 0.0
        %v2414 = vcombine.high %v2397, 0.0
        %v2415 = vcombine.high %v2405, 0.0
        %v2416 = vcombine.high %v2412, 0.0
        %v2417 = vcombine.high %v561, 0.0
        %v2419 = vunpack.c.l.s4 1983009808
        %v2420 = vunpack.c.0.s8 %v2419
        %v2421 = vlaneseq
        %v2422 = vshrl.u32 %v2421, 7
        %v2423 = vsub.s32 %v2420, %v2422
        %v2424 = vrot.slane %v561, %v2423
        %v2426 = vunpack.c.l.s4 1983009808
        %v2427 = vunpack.c.0.s8 %v2426
        %v2428 = vlaneseq
        %v2429 = vshrl.u32 %v2428, 7
        %v2430 = vsub.s32 %v2427, %v2429
        %v2431 = vrot.slane %v2417, %v2430
        %v2432 = vcombine.high %v2424, 0.0
        %v2434 = vunpack.c.l.s4 1934713408
        %v2435 = vunpack.c.0.s8 %v2434
        %v2436 = vlaneseq
        %v2437 = vshrl.u32 %v2436, 7
        %v2438 = vsub.s32 %v2435, %v2437
        %v2439 = vrot.slane %v2424, %v2438
        %v2441 = vunpack.c.l.s4 1934713408
        %v2442 = vunpack.c.0.s8 %v2441
        %v2443 = vlaneseq
        %v2444 = vshrl.u32 %v2443, 7
        %v2445 = vsub.s32 %v2442, %v2444
        %v2446 = vrot.slane %v2432, %v2445
        %v2447 = vcombine.high %v2431, 0.0
        %v2449 = vunpack.c.l.s4 1934713408
        %v2450 = vunpack.c.0.s8 %v2449
        %v2451 = vlaneseq
        %v2452 = vshrl.u32 %v2451, 7
        %v2453 = vsub.s32 %v2450, %v2452
        %v2454 = vrot.slane %v2431, %v2453
        %v2456 = vunpack.c.l.s4 1934713408
        %v2457 = vunpack.c.0.s8 %v2456
        %v2458 = vlaneseq
        %v2459 = vshrl.u32 %v2458, 7
        %v2460 = vsub.s32 %v2457, %v2459
        %v2461 = vrot.slane %v2447, %v2460
        %v2462 = vcombine.high %v2439, 0.0
        %v2463 = vcombine.high %v2446, 0.0
        %v2464 = vcombine.high %v2454, 0.0
        %v2465 = vcombine.high %v2461, 0.0
        %v2466 = vcombine.high %v562, 0.0
        %v2468 = vunpack.c.l.s4 1983009808
        %v2469 = vunpack.c.0.s8 %v2468
        %v2470 = vlaneseq
        %v2471 = vshrl.u32 %v2470, 7
        %v2472 = vsub.s32 %v2469, %v2471
        %v2473 = vrot.slane %v562, %v2472
        %v2475 = vunpack.c.l.s4 1983009808
        %v2476 = vunpack.c.0.s8 %v2475
        %v2477 = vlaneseq
        %v2478 = vshrl.u32 %v2477, 7
        %v2479 = vsub.s32 %v2476, %v2478
        %v2480 = vrot.slane %v2466, %v2479
        %v2481 = vcombine.high %v2473, 0.0
        %v2483 = vunpack.c.l.s4 1934713408
        %v2484 = vunpack.c.0.s8 %v2483
        %v2485 = vlaneseq
        %v2486 = vshrl.u32 %v2485, 7
        %v2487 = vsub.s32 %v2484, %v2486
        %v2488 = vrot.slane %v2473, %v2487
        %v2490 = vunpack.c.l.s4 1934713408
        %v2491 = vunpack.c.0.s8 %v2490
        %v2492 = vlaneseq
        %v2493 = vshrl.u32 %v2492, 7
        %v2494 = vsub.s32 %v2491, %v2493
        %v2495 = vrot.slane %v2481, %v2494
        %v2496 = vcombine.high %v2480, 0.0
        %v2498 = vunpack.c.l.s4 1934713408
        %v2499 = vunpack.c.0.s8 %v2498
        %v2500 = vlaneseq
        %v2501 = vshrl.u32 %v2500, 7
        %v2502 = vsub.s32 %v2499, %v2501
        %v2503 = vrot.slane %v2480, %v2502
        %v2505 = vunpack.c.l.s4 1934713408
        %v2506 = vunpack.c.0.s8 %v2505
        %v2507 = vlaneseq
        %v2508 = vshrl.u32 %v2507, 7
        %v2509 = vsub.s32 %v2506, %v2508
        %v2510 = vrot.slane %v2496, %v2509
        %v2511 = vcombine.high %v2488, 0.0
        %v2512 = vcombine.high %v2495, 0.0
        %v2513 = vcombine.high %v2503, 0.0
        %v2514 = vcombine.high %v2510, 0.0
        %2531 = vrot.lane.b32.xlu0 %v992, 2
        %v2532 = vpop.permute.xlu0 %2531
        %2533 = vrot.lane.b32.xlu0 %v1090, 2
        %v2534 = vpop.permute.xlu0 %2533
        %2535 = vrot.lane.b32.xlu0 %v1188, 2
        %v2536 = vpop.permute.xlu0 %2535
        %2537 = vrot.lane.b32.xlu0 %v1286, 2
        %v2538 = vpop.permute.xlu0 %2537
        %2539 = vrot.lane.b32.xlu0 %v1384, 2
        %v2540 = vpop.permute.xlu0 %2539
        %2541 = vrot.lane.b32.xlu0 %v1482, 2
        %v2542 = vpop.permute.xlu0 %2541
        %2543 = vrot.lane.b32.xlu0 %v1580, 2
        %v2544 = vpop.permute.xlu0 %2543
        %2545 = vrot.lane.b32.xlu0 %v1678, 2
        %v2546 = vpop.permute.xlu0 %2545
        %2547 = vrot.lane.b32.xlu0 %v1776, 2
        %v2548 = vpop.permute.xlu0 %2547
        %2549 = vrot.lane.b32.xlu0 %v1874, 2
        %v2550 = vpop.permute.xlu0 %2549
        %2551 = vrot.lane.b32.xlu0 %v1972, 2
        %v2552 = vpop.permute.xlu0 %2551
        %2553 = vrot.lane.b32.xlu0 %v2070, 2
        %v2554 = vpop.permute.xlu0 %2553
        %2555 = vrot.lane.b32.xlu0 %v2168, 2
        %v2556 = vpop.permute.xlu0 %2555
        %2557 = vrot.lane.b32.xlu0 %v2266, 2
        %v2558 = vpop.permute.xlu0 %2557
        %2559 = vrot.lane.b32.xlu0 %v2364, 2
        %v2560 = vpop.permute.xlu0 %2559
        %2561 = vrot.lane.b32.xlu0 %v2462, 2
        %v2562 = vpop.permute.xlu0 %2561
        %2595 = vrot.lane.b32.xlu0 %v976, 4
        %v2596 = vpop.permute.xlu0 %2595
        %2597 = vrot.lane.b32.xlu0 %v1074, 4
        %v2598 = vpop.permute.xlu0 %2597
        %2599 = vrot.lane.b32.xlu0 %v1172, 4
        %v2600 = vpop.permute.xlu0 %2599
        %2601 = vrot.lane.b32.xlu0 %v1270, 4
        %v2602 = vpop.permute.xlu0 %2601
        %2603 = vrot.lane.b32.xlu0 %v1368, 4
        %v2604 = vpop.permute.xlu0 %2603
        %2605 = vrot.lane.b32.xlu0 %v1466, 4
        %v2606 = vpop.permute.xlu0 %2605
        %2607 = vrot.lane.b32.xlu0 %v1564, 4
        %v2608 = vpop.permute.xlu0 %2607
        %2609 = vrot.lane.b32.xlu0 %v1662, 4
        %v2610 = vpop.permute.xlu0 %2609
        %2611 = vrot.lane.b32.xlu0 %v1760, 4
        %v2612 = vpop.permute.xlu0 %2611
        %2613 = vrot.lane.b32.xlu0 %v1858, 4
        %v2614 = vpop.permute.xlu0 %2613
        %2615 = vrot.lane.b32.xlu0 %v1956, 4
        %v2616 = vpop.permute.xlu0 %2615
        %2617 = vrot.lane.b32.xlu0 %v2054, 4
        %v2618 = vpop.permute.xlu0 %2617
        %2619 = vrot.lane.b32.xlu0 %v2152, 4
        %v2620 = vpop.permute.xlu0 %2619
        %2621 = vrot.lane.b32.xlu0 %v2250, 4
        %v2622 = vpop.permute.xlu0 %2621
        %2623 = vrot.lane.b32.xlu0 %v2348, 4
        %v2624 = vpop.permute.xlu0 %2623
        %2625 = vrot.lane.b32.xlu0 %v2446, 4
        %v2626 = vpop.permute.xlu0 %2625
        %2659 = vrot.lane.b32.xlu0 %v993, 6
        %v2660 = vpop.permute.xlu0 %2659
        %2661 = vrot.lane.b32.xlu0 %v1091, 6
        %v2662 = vpop.permute.xlu0 %2661
        %2663 = vrot.lane.b32.xlu0 %v1189, 6
        %v2664 = vpop.permute.xlu0 %2663
        %2665 = vrot.lane.b32.xlu0 %v1287, 6
        %v2666 = vpop.permute.xlu0 %2665
        %2667 = vrot.lane.b32.xlu0 %v1385, 6
        %v2668 = vpop.permute.xlu0 %2667
        %2669 = vrot.lane.b32.xlu0 %v1483, 6
        %v2670 = vpop.permute.xlu0 %2669
        %2671 = vrot.lane.b32.xlu0 %v1581, 6
        %v2672 = vpop.permute.xlu0 %2671
        %2673 = vrot.lane.b32.xlu0 %v1679, 6
        %v2674 = vpop.permute.xlu0 %2673
        %2675 = vrot.lane.b32.xlu0 %v1777, 6
        %v2676 = vpop.permute.xlu0 %2675
        %2677 = vrot.lane.b32.xlu0 %v1875, 6
        %v2678 = vpop.permute.xlu0 %2677
        %2679 = vrot.lane.b32.xlu0 %v1973, 6
        %v2680 = vpop.permute.xlu0 %2679
        %2681 = vrot.lane.b32.xlu0 %v2071, 6
        %v2682 = vpop.permute.xlu0 %2681
        %2683 = vrot.lane.b32.xlu0 %v2169, 6
        %v2684 = vpop.permute.xlu0 %2683
        %2685 = vrot.lane.b32.xlu0 %v2267, 6
        %v2686 = vpop.permute.xlu0 %2685
        %2687 = vrot.lane.b32.xlu0 %v2365, 6
        %v2688 = vpop.permute.xlu0 %2687
        %2689 = vrot.lane.b32.xlu0 %v2463, 6
        %v2690 = vpop.permute.xlu0 %2689
        %2723 = vrot.lane.b32.xlu0 %v984, 8
        %v2724 = vpop.permute.xlu0 %2723
        %2725 = vrot.lane.b32.xlu0 %v1082, 8
        %v2726 = vpop.permute.xlu0 %2725
        %2727 = vrot.lane.b32.xlu0 %v1180, 8
        %v2728 = vpop.permute.xlu0 %2727
        %2729 = vrot.lane.b32.xlu0 %v1278, 8
        %v2730 = vpop.permute.xlu0 %2729
        %2731 = vrot.lane.b32.xlu0 %v1376, 8
        %v2732 = vpop.permute.xlu0 %2731
        %2733 = vrot.lane.b32.xlu0 %v1474, 8
        %v2734 = vpop.permute.xlu0 %2733
        %2735 = vrot.lane.b32.xlu0 %v1572, 8
        %v2736 = vpop.permute.xlu0 %2735
        %2737 = vrot.lane.b32.xlu0 %v1670, 8
        %v2738 = vpop.permute.xlu0 %2737
        %2739 = vrot.lane.b32.xlu0 %v1768, 8
        %v2740 = vpop.permute.xlu0 %2739
        %2741 = vrot.lane.b32.xlu0 %v1866, 8
        %v2742 = vpop.permute.xlu0 %2741
        %2743 = vrot.lane.b32.xlu0 %v1964, 8
        %v2744 = vpop.permute.xlu0 %2743
        %2745 = vrot.lane.b32.xlu0 %v2062, 8
        %v2746 = vpop.permute.xlu0 %2745
        %2747 = vrot.lane.b32.xlu0 %v2160, 8
        %v2748 = vpop.permute.xlu0 %2747
        %2749 = vrot.lane.b32.xlu0 %v2258, 8
        %v2750 = vpop.permute.xlu0 %2749
        %2751 = vrot.lane.b32.xlu0 %v2356, 8
        %v2752 = vpop.permute.xlu0 %2751
        %2753 = vrot.lane.b32.xlu0 %v2454, 8
        %v2754 = vpop.permute.xlu0 %2753
        %2787 = vrot.lane.b32.xlu0 %v994, 10
        %v2788 = vpop.permute.xlu0 %2787
        %2789 = vrot.lane.b32.xlu0 %v1092, 10
        %v2790 = vpop.permute.xlu0 %2789
        %2791 = vrot.lane.b32.xlu0 %v1190, 10
        %v2792 = vpop.permute.xlu0 %2791
        %2793 = vrot.lane.b32.xlu0 %v1288, 10
        %v2794 = vpop.permute.xlu0 %2793
        %2795 = vrot.lane.b32.xlu0 %v1386, 10
        %v2796 = vpop.permute.xlu0 %2795
        %2797 = vrot.lane.b32.xlu0 %v1484, 10
        %v2798 = vpop.permute.xlu0 %2797
        %2799 = vrot.lane.b32.xlu0 %v1582, 10
        %v2800 = vpop.permute.xlu0 %2799
        %2801 = vrot.lane.b32.xlu0 %v1680, 10
        %v2802 = vpop.permute.xlu0 %2801
        %2803 = vrot.lane.b32.xlu0 %v1778, 10
        %v2804 = vpop.permute.xlu0 %2803
        %2805 = vrot.lane.b32.xlu0 %v1876, 10
        %v2806 = vpop.permute.xlu0 %2805
        %2807 = vrot.lane.b32.xlu0 %v1974, 10
        %v2808 = vpop.permute.xlu0 %2807
        %2809 = vrot.lane.b32.xlu0 %v2072, 10
        %v2810 = vpop.permute.xlu0 %2809
        %2811 = vrot.lane.b32.xlu0 %v2170, 10
        %v2812 = vpop.permute.xlu0 %2811
        %2813 = vrot.lane.b32.xlu0 %v2268, 10
        %v2814 = vpop.permute.xlu0 %2813
        %2815 = vrot.lane.b32.xlu0 %v2366, 10
        %v2816 = vpop.permute.xlu0 %2815
        %2817 = vrot.lane.b32.xlu0 %v2464, 10
        %v2818 = vpop.permute.xlu0 %2817
        %2851 = vrot.lane.b32.xlu0 %v991, 12
        %v2852 = vpop.permute.xlu0 %2851
        %2853 = vrot.lane.b32.xlu0 %v1089, 12
        %v2854 = vpop.permute.xlu0 %2853
        %2855 = vrot.lane.b32.xlu0 %v1187, 12
        %v2856 = vpop.permute.xlu0 %2855
        %2857 = vrot.lane.b32.xlu0 %v1285, 12
        %v2858 = vpop.permute.xlu0 %2857
        %2859 = vrot.lane.b32.xlu0 %v1383, 12
        %v2860 = vpop.permute.xlu0 %2859
        %2861 = vrot.lane.b32.xlu0 %v1481, 12
        %v2862 = vpop.permute.xlu0 %2861
        %2863 = vrot.lane.b32.xlu0 %v1579, 12
        %v2864 = vpop.permute.xlu0 %2863
        %2865 = vrot.lane.b32.xlu0 %v1677, 12
        %v2866 = vpop.permute.xlu0 %2865
        %2867 = vrot.lane.b32.xlu0 %v1775, 12
        %v2868 = vpop.permute.xlu0 %2867
        %2869 = vrot.lane.b32.xlu0 %v1873, 12
        %v2870 = vpop.permute.xlu0 %2869
        %2871 = vrot.lane.b32.xlu0 %v1971, 12
        %v2872 = vpop.permute.xlu0 %2871
        %2873 = vrot.lane.b32.xlu0 %v2069, 12
        %v2874 = vpop.permute.xlu0 %2873
        %2875 = vrot.lane.b32.xlu0 %v2167, 12
        %v2876 = vpop.permute.xlu0 %2875
        %2877 = vrot.lane.b32.xlu0 %v2265, 12
        %v2878 = vpop.permute.xlu0 %2877
        %2879 = vrot.lane.b32.xlu0 %v2363, 12
        %v2880 = vpop.permute.xlu0 %2879
        %2881 = vrot.lane.b32.xlu0 %v2461, 12
        %v2882 = vpop.permute.xlu0 %2881
        %2915 = vrot.lane.b32.xlu0 %v995, 14
        %v2916 = vpop.permute.xlu0 %2915
        %2917 = vrot.lane.b32.xlu0 %v1093, 14
        %v2918 = vpop.permute.xlu0 %2917
        %2919 = vrot.lane.b32.xlu0 %v1191, 14
        %v2920 = vpop.permute.xlu0 %2919
        %2921 = vrot.lane.b32.xlu0 %v1289, 14
        %v2922 = vpop.permute.xlu0 %2921
        %2923 = vrot.lane.b32.xlu0 %v1387, 14
        %v2924 = vpop.permute.xlu0 %2923
        %2925 = vrot.lane.b32.xlu0 %v1485, 14
        %v2926 = vpop.permute.xlu0 %2925
        %2927 = vrot.lane.b32.xlu0 %v1583, 14
        %v2928 = vpop.permute.xlu0 %2927
        %2929 = vrot.lane.b32.xlu0 %v1681, 14
        %v2930 = vpop.permute.xlu0 %2929
        %2931 = vrot.lane.b32.xlu0 %v1779, 14
        %v2932 = vpop.permute.xlu0 %2931
        %2933 = vrot.lane.b32.xlu0 %v1877, 14
        %v2934 = vpop.permute.xlu0 %2933
        %2935 = vrot.lane.b32.xlu0 %v1975, 14
        %v2936 = vpop.permute.xlu0 %2935
        %2937 = vrot.lane.b32.xlu0 %v2073, 14
        %v2938 = vpop.permute.xlu0 %2937
        %2939 = vrot.lane.b32.xlu0 %v2171, 14
        %v2940 = vpop.permute.xlu0 %2939
        %2941 = vrot.lane.b32.xlu0 %v2269, 14
        %v2942 = vpop.permute.xlu0 %2941
        %2943 = vrot.lane.b32.xlu0 %v2367, 14
        %v2944 = vpop.permute.xlu0 %2943
        %2945 = vrot.lane.b32.xlu0 %v2465, 14
        %v2946 = vpop.permute.xlu0 %2945
        %2979 = vrot.lane.b32.xlu0 %v1018, 16
        %v2980 = vpop.permute.xlu0 %2979
        %2981 = vrot.lane.b32.xlu0 %v1116, 16
        %v2982 = vpop.permute.xlu0 %2981
        %2983 = vrot.lane.b32.xlu0 %v1214, 16
        %v2984 = vpop.permute.xlu0 %2983
        %2985 = vrot.lane.b32.xlu0 %v1312, 16
        %v2986 = vpop.permute.xlu0 %2985
        %2987 = vrot.lane.b32.xlu0 %v1410, 16
        %v2988 = vpop.permute.xlu0 %2987
        %2989 = vrot.lane.b32.xlu0 %v1508, 16
        %v2990 = vpop.permute.xlu0 %2989
        %2991 = vrot.lane.b32.xlu0 %v1606, 16
        %v2992 = vpop.permute.xlu0 %2991
        %2993 = vrot.lane.b32.xlu0 %v1704, 16
        %v2994 = vpop.permute.xlu0 %2993
        %2995 = vrot.lane.b32.xlu0 %v1802, 16
        %v2996 = vpop.permute.xlu0 %2995
        %2997 = vrot.lane.b32.xlu0 %v1900, 16
        %v2998 = vpop.permute.xlu0 %2997
        %2999 = vrot.lane.b32.xlu0 %v1998, 16
        %v3000 = vpop.permute.xlu0 %2999
        %3001 = vrot.lane.b32.xlu0 %v2096, 16
        %v3002 = vpop.permute.xlu0 %3001
        %3003 = vrot.lane.b32.xlu0 %v2194, 16
        %v3004 = vpop.permute.xlu0 %3003
        %3005 = vrot.lane.b32.xlu0 %v2292, 16
        %v3006 = vpop.permute.xlu0 %3005
        %3007 = vrot.lane.b32.xlu0 %v2390, 16
        %v3008 = vpop.permute.xlu0 %3007
        %3009 = vrot.lane.b32.xlu0 %v2488, 16
        %v3010 = vpop.permute.xlu0 %3009
        %3043 = vrot.lane.b32.xlu0 %v1041, 18
        %v3044 = vpop.permute.xlu0 %3043
        %3045 = vrot.lane.b32.xlu0 %v1139, 18
        %v3046 = vpop.permute.xlu0 %3045
        %3047 = vrot.lane.b32.xlu0 %v1237, 18
        %v3048 = vpop.permute.xlu0 %3047
        %3049 = vrot.lane.b32.xlu0 %v1335, 18
        %v3050 = vpop.permute.xlu0 %3049
        %3051 = vrot.lane.b32.xlu0 %v1433, 18
        %v3052 = vpop.permute.xlu0 %3051
        %3053 = vrot.lane.b32.xlu0 %v1531, 18
        %v3054 = vpop.permute.xlu0 %3053
        %3055 = vrot.lane.b32.xlu0 %v1629, 18
        %v3056 = vpop.permute.xlu0 %3055
        %3057 = vrot.lane.b32.xlu0 %v1727, 18
        %v3058 = vpop.permute.xlu0 %3057
        %3059 = vrot.lane.b32.xlu0 %v1825, 18
        %v3060 = vpop.permute.xlu0 %3059
        %3061 = vrot.lane.b32.xlu0 %v1923, 18
        %v3062 = vpop.permute.xlu0 %3061
        %3063 = vrot.lane.b32.xlu0 %v2021, 18
        %v3064 = vpop.permute.xlu0 %3063
        %3065 = vrot.lane.b32.xlu0 %v2119, 18
        %v3066 = vpop.permute.xlu0 %3065
        %3067 = vrot.lane.b32.xlu0 %v2217, 18
        %v3068 = vpop.permute.xlu0 %3067
        %3069 = vrot.lane.b32.xlu0 %v2315, 18
        %v3070 = vpop.permute.xlu0 %3069
        %3071 = vrot.lane.b32.xlu0 %v2413, 18
        %v3072 = vpop.permute.xlu0 %3071
        %3073 = vrot.lane.b32.xlu0 %v2511, 18
        %v3074 = vpop.permute.xlu0 %3073
        %3107 = vrot.lane.b32.xlu0 %v1025, 20
        %v3108 = vpop.permute.xlu0 %3107
        %3109 = vrot.lane.b32.xlu0 %v1123, 20
        %v3110 = vpop.permute.xlu0 %3109
        %3111 = vrot.lane.b32.xlu0 %v1221, 20
        %v3112 = vpop.permute.xlu0 %3111
        %3113 = vrot.lane.b32.xlu0 %v1319, 20
        %v3114 = vpop.permute.xlu0 %3113
        %3115 = vrot.lane.b32.xlu0 %v1417, 20
        %v3116 = vpop.permute.xlu0 %3115
        %3117 = vrot.lane.b32.xlu0 %v1515, 20
        %v3118 = vpop.permute.xlu0 %3117
        %3119 = vrot.lane.b32.xlu0 %v1613, 20
        %v3120 = vpop.permute.xlu0 %3119
        %3121 = vrot.lane.b32.xlu0 %v1711, 20
        %v3122 = vpop.permute.xlu0 %3121
        %3123 = vrot.lane.b32.xlu0 %v1809, 20
        %v3124 = vpop.permute.xlu0 %3123
        %3125 = vrot.lane.b32.xlu0 %v1907, 20
        %v3126 = vpop.permute.xlu0 %3125
        %3127 = vrot.lane.b32.xlu0 %v2005, 20
        %v3128 = vpop.permute.xlu0 %3127
        %3129 = vrot.lane.b32.xlu0 %v2103, 20
        %v3130 = vpop.permute.xlu0 %3129
        %3131 = vrot.lane.b32.xlu0 %v2201, 20
        %v3132 = vpop.permute.xlu0 %3131
        %3133 = vrot.lane.b32.xlu0 %v2299, 20
        %v3134 = vpop.permute.xlu0 %3133
        %3135 = vrot.lane.b32.xlu0 %v2397, 20
        %v3136 = vpop.permute.xlu0 %3135
        %3137 = vrot.lane.b32.xlu0 %v2495, 20
        %v3138 = vpop.permute.xlu0 %3137
        %3171 = vrot.lane.b32.xlu0 %v1042, 22
        %v3172 = vpop.permute.xlu0 %3171
        %3173 = vrot.lane.b32.xlu0 %v1140, 22
        %v3174 = vpop.permute.xlu0 %3173
        %3175 = vrot.lane.b32.xlu0 %v1238, 22
        %v3176 = vpop.permute.xlu0 %3175
        %3177 = vrot.lane.b32.xlu0 %v1336, 22
        %v3178 = vpop.permute.xlu0 %3177
        %3179 = vrot.lane.b32.xlu0 %v1434, 22
        %v3180 = vpop.permute.xlu0 %3179
        %3181 = vrot.lane.b32.xlu0 %v1532, 22
        %v3182 = vpop.permute.xlu0 %3181
        %3183 = vrot.lane.b32.xlu0 %v1630, 22
        %v3184 = vpop.permute.xlu0 %3183
        %3185 = vrot.lane.b32.xlu0 %v1728, 22
        %v3186 = vpop.permute.xlu0 %3185
        %3187 = vrot.lane.b32.xlu0 %v1826, 22
        %v3188 = vpop.permute.xlu0 %3187
        %3189 = vrot.lane.b32.xlu0 %v1924, 22
        %v3190 = vpop.permute.xlu0 %3189
        %3191 = vrot.lane.b32.xlu0 %v2022, 22
        %v3192 = vpop.permute.xlu0 %3191
        %3193 = vrot.lane.b32.xlu0 %v2120, 22
        %v3194 = vpop.permute.xlu0 %3193
        %3195 = vrot.lane.b32.xlu0 %v2218, 22
        %v3196 = vpop.permute.xlu0 %3195
        %3197 = vrot.lane.b32.xlu0 %v2316, 22
        %v3198 = vpop.permute.xlu0 %3197
        %3199 = vrot.lane.b32.xlu0 %v2414, 22
        %v3200 = vpop.permute.xlu0 %3199
        %3201 = vrot.lane.b32.xlu0 %v2512, 22
        %v3202 = vpop.permute.xlu0 %3201
        %3235 = vrot.lane.b32.xlu0 %v1033, 24
        %v3236 = vpop.permute.xlu0 %3235
        %3237 = vrot.lane.b32.xlu0 %v1131, 24
        %v3238 = vpop.permute.xlu0 %3237
        %3239 = vrot.lane.b32.xlu0 %v1229, 24
        %v3240 = vpop.permute.xlu0 %3239
        %3241 = vrot.lane.b32.xlu0 %v1327, 24
        %v3242 = vpop.permute.xlu0 %3241
        %3243 = vrot.lane.b32.xlu0 %v1425, 24
        %v3244 = vpop.permute.xlu0 %3243
        %3245 = vrot.lane.b32.xlu0 %v1523, 24
        %v3246 = vpop.permute.xlu0 %3245
        %3247 = vrot.lane.b32.xlu0 %v1621, 24
        %v3248 = vpop.permute.xlu0 %3247
        %3249 = vrot.lane.b32.xlu0 %v1719, 24
        %v3250 = vpop.permute.xlu0 %3249
        %3251 = vrot.lane.b32.xlu0 %v1817, 24
        %v3252 = vpop.permute.xlu0 %3251
        %3253 = vrot.lane.b32.xlu0 %v1915, 24
        %v3254 = vpop.permute.xlu0 %3253
        %3255 = vrot.lane.b32.xlu0 %v2013, 24
        %v3256 = vpop.permute.xlu0 %3255
        %3257 = vrot.lane.b32.xlu0 %v2111, 24
        %v3258 = vpop.permute.xlu0 %3257
        %3259 = vrot.lane.b32.xlu0 %v2209, 24
        %v3260 = vpop.permute.xlu0 %3259
        %3261 = vrot.lane.b32.xlu0 %v2307, 24
        %v3262 = vpop.permute.xlu0 %3261
        %3263 = vrot.lane.b32.xlu0 %v2405, 24
        %v3264 = vpop.permute.xlu0 %3263
        %3265 = vrot.lane.b32.xlu0 %v2503, 24
        %v3266 = vpop.permute.xlu0 %3265
        %3299 = vrot.lane.b32.xlu0 %v1043, 26
        %v3300 = vpop.permute.xlu0 %3299
        %3301 = vrot.lane.b32.xlu0 %v1141, 26
        %v3302 = vpop.permute.xlu0 %3301
        %3303 = vrot.lane.b32.xlu0 %v1239, 26
        %v3304 = vpop.permute.xlu0 %3303
        %3305 = vrot.lane.b32.xlu0 %v1337, 26
        %v3306 = vpop.permute.xlu0 %3305
        %3307 = vrot.lane.b32.xlu0 %v1435, 26
        %v3308 = vpop.permute.xlu0 %3307
        %3309 = vrot.lane.b32.xlu0 %v1533, 26
        %v3310 = vpop.permute.xlu0 %3309
        %3311 = vrot.lane.b32.xlu0 %v1631, 26
        %v3312 = vpop.permute.xlu0 %3311
        %3313 = vrot.lane.b32.xlu0 %v1729, 26
        %v3314 = vpop.permute.xlu0 %3313
        %3315 = vrot.lane.b32.xlu0 %v1827, 26
        %v3316 = vpop.permute.xlu0 %3315
        %3317 = vrot.lane.b32.xlu0 %v1925, 26
        %v3318 = vpop.permute.xlu0 %3317
        %3319 = vrot.lane.b32.xlu0 %v2023, 26
        %v3320 = vpop.permute.xlu0 %3319
        %3321 = vrot.lane.b32.xlu0 %v2121, 26
        %v3322 = vpop.permute.xlu0 %3321
        %3323 = vrot.lane.b32.xlu0 %v2219, 26
        %v3324 = vpop.permute.xlu0 %3323
        %3325 = vrot.lane.b32.xlu0 %v2317, 26
        %v3326 = vpop.permute.xlu0 %3325
        %3327 = vrot.lane.b32.xlu0 %v2415, 26
        %v3328 = vpop.permute.xlu0 %3327
        %3329 = vrot.lane.b32.xlu0 %v2513, 26
        %v3330 = vpop.permute.xlu0 %3329
        %3363 = vrot.lane.b32.xlu0 %v1040, 28
        %v3364 = vpop.permute.xlu0 %3363
        %3365 = vrot.lane.b32.xlu0 %v1138, 28
        %v3366 = vpop.permute.xlu0 %3365
        %3367 = vrot.lane.b32.xlu0 %v1236, 28
        %v3368 = vpop.permute.xlu0 %3367
        %3369 = vrot.lane.b32.xlu0 %v1334, 28
        %v3370 = vpop.permute.xlu0 %3369
        %3371 = vrot.lane.b32.xlu0 %v1432, 28
        %v3372 = vpop.permute.xlu0 %3371
        %3373 = vrot.lane.b32.xlu0 %v1530, 28
        %v3374 = vpop.permute.xlu0 %3373
        %3375 = vrot.lane.b32.xlu0 %v1628, 28
        %v3376 = vpop.permute.xlu0 %3375
        %3377 = vrot.lane.b32.xlu0 %v1726, 28
        %v3378 = vpop.permute.xlu0 %3377
        %3379 = vrot.lane.b32.xlu0 %v1824, 28
        %v3380 = vpop.permute.xlu0 %3379
        %3381 = vrot.lane.b32.xlu0 %v1922, 28
        %v3382 = vpop.permute.xlu0 %3381
        %3383 = vrot.lane.b32.xlu0 %v2020, 28
        %v3384 = vpop.permute.xlu0 %3383
        %3385 = vrot.lane.b32.xlu0 %v2118, 28
        %v3386 = vpop.permute.xlu0 %3385
        %3387 = vrot.lane.b32.xlu0 %v2216, 28
        %v3388 = vpop.permute.xlu0 %3387
        %3389 = vrot.lane.b32.xlu0 %v2314, 28
        %v3390 = vpop.permute.xlu0 %3389
        %3391 = vrot.lane.b32.xlu0 %v2412, 28
        %v3392 = vpop.permute.xlu0 %3391
        %3393 = vrot.lane.b32.xlu0 %v2510, 28
        %v3394 = vpop.permute.xlu0 %3393
        %3427 = vrot.lane.b32.xlu0 %v1044, 30
        %v3428 = vpop.permute.xlu0 %3427
        %3429 = vrot.lane.b32.xlu0 %v1142, 30
        %v3430 = vpop.permute.xlu0 %3429
        %3431 = vrot.lane.b32.xlu0 %v1240, 30
        %v3432 = vpop.permute.xlu0 %3431
        %3433 = vrot.lane.b32.xlu0 %v1338, 30
        %v3434 = vpop.permute.xlu0 %3433
        %3435 = vrot.lane.b32.xlu0 %v1436, 30
        %v3436 = vpop.permute.xlu0 %3435
        %3437 = vrot.lane.b32.xlu0 %v1534, 30
        %v3438 = vpop.permute.xlu0 %3437
        %3439 = vrot.lane.b32.xlu0 %v1632, 30
        %v3440 = vpop.permute.xlu0 %3439
        %3441 = vrot.lane.b32.xlu0 %v1730, 30
        %v3442 = vpop.permute.xlu0 %3441
        %3443 = vrot.lane.b32.xlu0 %v1828, 30
        %v3444 = vpop.permute.xlu0 %3443
        %3445 = vrot.lane.b32.xlu0 %v1926, 30
        %v3446 = vpop.permute.xlu0 %3445
        %3447 = vrot.lane.b32.xlu0 %v2024, 30
        %v3448 = vpop.permute.xlu0 %3447
        %3449 = vrot.lane.b32.xlu0 %v2122, 30
        %v3450 = vpop.permute.xlu0 %3449
        %3451 = vrot.lane.b32.xlu0 %v2220, 30
        %v3452 = vpop.permute.xlu0 %3451
        %3453 = vrot.lane.b32.xlu0 %v2318, 30
        %v3454 = vpop.permute.xlu0 %3453
        %3455 = vrot.lane.b32.xlu0 %v2416, 30
        %v3456 = vpop.permute.xlu0 %3455
        %3457 = vrot.lane.b32.xlu0 %v2514, 30
        %v3458 = vpop.permute.xlu0 %3457
        %vm3475 = vcmask 15360
        %v3476 = vsel %vm3475, %v969, %v2532
        %v3477 = vsel %vm3475, %v1067, %v2534
        %v3478 = vsel %vm3475, %v1165, %v2536
        %v3479 = vsel %vm3475, %v1263, %v2538
        %v3480 = vsel %vm3475, %v1361, %v2540
        %v3481 = vsel %vm3475, %v1459, %v2542
        %v3482 = vsel %vm3475, %v1557, %v2544
        %v3483 = vsel %vm3475, %v1655, %v2546
        %v3484 = vsel %vm3475, %v1753, %v2548
        %v3485 = vsel %vm3475, %v1851, %v2550
        %v3486 = vsel %vm3475, %v1949, %v2552
        %v3487 = vsel %vm3475, %v2047, %v2554
        %v3488 = vsel %vm3475, %v2145, %v2556
        %v3489 = vsel %vm3475, %v2243, %v2558
        %v3490 = vsel %vm3475, %v2341, %v2560
        %v3491 = vsel %vm3475, %v2439, %v2562
        %vm3492 = vcmask 31744
        %v3493 = vsel %vm3492, %v3476, %v2596
        %v3494 = vsel %vm3492, %v3477, %v2598
        %v3495 = vsel %vm3492, %v3478, %v2600
        %v3496 = vsel %vm3492, %v3479, %v2602
        %v3497 = vsel %vm3492, %v3480, %v2604
        %v3498 = vsel %vm3492, %v3481, %v2606
        %v3499 = vsel %vm3492, %v3482, %v2608
        %v3500 = vsel %vm3492, %v3483, %v2610
        %v3501 = vsel %vm3492, %v3484, %v2612
        %v3502 = vsel %vm3492, %v3485, %v2614
        %v3503 = vsel %vm3492, %v3486, %v2616
        %v3504 = vsel %vm3492, %v3487, %v2618
        %v3505 = vsel %vm3492, %v3488, %v2620
        %v3506 = vsel %vm3492, %v3489, %v2622
        %v3507 = vsel %vm3492, %v3490, %v2624
        %v3508 = vsel %vm3492, %v3491, %v2626
        %vm3509 = vcmask 48128
        %v3510 = vsel %vm3509, %v3493, %v2660
        %v3511 = vsel %vm3509, %v3494, %v2662
        %v3512 = vsel %vm3509, %v3495, %v2664
        %v3513 = vsel %vm3509, %v3496, %v2666
        %v3514 = vsel %vm3509, %v3497, %v2668
        %v3515 = vsel %vm3509, %v3498, %v2670
        %v3516 = vsel %vm3509, %v3499, %v2672
        %v3517 = vsel %vm3509, %v3500, %v2674
        %v3518 = vsel %vm3509, %v3501, %v2676
        %v3519 = vsel %vm3509, %v3502, %v2678
        %v3520 = vsel %vm3509, %v3503, %v2680
        %v3521 = vsel %vm3509, %v3504, %v2682
        %v3522 = vsel %vm3509, %v3505, %v2684
        %v3523 = vsel %vm3509, %v3506, %v2686
        %v3524 = vsel %vm3509, %v3507, %v2688
        %v3525 = vsel %vm3509, %v3508, %v2690
        %vm3526 = vcmask 64512
        %v3527 = vsel %vm3526, %v3510, %v2724
        %v3528 = vsel %vm3526, %v3511, %v2726
        %v3529 = vsel %vm3526, %v3512, %v2728
        %v3530 = vsel %vm3526, %v3513, %v2730
        %v3531 = vsel %vm3526, %v3514, %v2732
        %v3532 = vsel %vm3526, %v3515, %v2734
        %v3533 = vsel %vm3526, %v3516, %v2736
        %v3534 = vsel %vm3526, %v3517, %v2738
        %v3535 = vsel %vm3526, %v3518, %v2740
        %v3536 = vsel %vm3526, %v3519, %v2742
        %v3537 = vsel %vm3526, %v3520, %v2744
        %v3538 = vsel %vm3526, %v3521, %v2746
        %v3539 = vsel %vm3526, %v3522, %v2748
        %v3540 = vsel %vm3526, %v3523, %v2750
        %v3541 = vsel %vm3526, %v3524, %v2752
        %v3542 = vsel %vm3526, %v3525, %v2754
        %vm3543 = vcmask 80896
        %v3544 = vsel %vm3543, %v3527, %v2788
        %v3545 = vsel %vm3543, %v3528, %v2790
        %v3546 = vsel %vm3543, %v3529, %v2792
        %v3547 = vsel %vm3543, %v3530, %v2794
        %v3548 = vsel %vm3543, %v3531, %v2796
        %v3549 = vsel %vm3543, %v3532, %v2798
        %v3550 = vsel %vm3543, %v3533, %v2800
        %v3551 = vsel %vm3543, %v3534, %v2802
        %v3552 = vsel %vm3543, %v3535, %v2804
        %v3553 = vsel %vm3543, %v3536, %v2806
        %v3554 = vsel %vm3543, %v3537, %v2808
        %v3555 = vsel %vm3543, %v3538, %v2810
        %v3556 = vsel %vm3543, %v3539, %v2812
        %v3557 = vsel %vm3543, %v3540, %v2814
        %v3558 = vsel %vm3543, %v3541, %v2816
        %v3559 = vsel %vm3543, %v3542, %v2818
        %vm3560 = vcmask 97280
        %v3561 = vsel %vm3560, %v3544, %v2852
        %v3562 = vsel %vm3560, %v3545, %v2854
        %v3563 = vsel %vm3560, %v3546, %v2856
        %v3564 = vsel %vm3560, %v3547, %v2858
        %v3565 = vsel %vm3560, %v3548, %v2860
        %v3566 = vsel %vm3560, %v3549, %v2862
        %v3567 = vsel %vm3560, %v3550, %v2864
        %v3568 = vsel %vm3560, %v3551, %v2866
        %v3569 = vsel %vm3560, %v3552, %v2868
        %v3570 = vsel %vm3560, %v3553, %v2870
        %v3571 = vsel %vm3560, %v3554, %v2872
        %v3572 = vsel %vm3560, %v3555, %v2874
        %v3573 = vsel %vm3560, %v3556, %v2876
        %v3574 = vsel %vm3560, %v3557, %v2878
        %v3575 = vsel %vm3560, %v3558, %v2880
        %v3576 = vsel %vm3560, %v3559, %v2882
        %vm3577 = vcmask 113664
        %v3578 = vsel %vm3577, %v3561, %v2916
        %v3579 = vsel %vm3577, %v3562, %v2918
        %v3580 = vsel %vm3577, %v3563, %v2920
        %v3581 = vsel %vm3577, %v3564, %v2922
        %v3582 = vsel %vm3577, %v3565, %v2924
        %v3583 = vsel %vm3577, %v3566, %v2926
        %v3584 = vsel %vm3577, %v3567, %v2928
        %v3585 = vsel %vm3577, %v3568, %v2930
        %v3586 = vsel %vm3577, %v3569, %v2932
        %v3587 = vsel %vm3577, %v3570, %v2934
        %v3588 = vsel %vm3577, %v3571, %v2936
        %v3589 = vsel %vm3577, %v3572, %v2938
        %v3590 = vsel %vm3577, %v3573, %v2940
        %v3591 = vsel %vm3577, %v3574, %v2942
        %v3592 = vsel %vm3577, %v3575, %v2944
        %v3593 = vsel %vm3577, %v3576, %v2946
        %vm3594 = vcmask 130048
        %v3595 = vsel %vm3594, %v3578, %v2980
        %v3596 = vsel %vm3594, %v3579, %v2982
        %v3597 = vsel %vm3594, %v3580, %v2984
        %v3598 = vsel %vm3594, %v3581, %v2986
        %v3599 = vsel %vm3594, %v3582, %v2988
        %v3600 = vsel %vm3594, %v3583, %v2990
        %v3601 = vsel %vm3594, %v3584, %v2992
        %v3602 = vsel %vm3594, %v3585, %v2994
        %v3603 = vsel %vm3594, %v3586, %v2996
        %v3604 = vsel %vm3594, %v3587, %v2998
        %v3605 = vsel %vm3594, %v3588, %v3000
        %v3606 = vsel %vm3594, %v3589, %v3002
        %v3607 = vsel %vm3594, %v3590, %v3004
        %v3608 = vsel %vm3594, %v3591, %v3006
        %v3609 = vsel %vm3594, %v3592, %v3008
        %v3610 = vsel %vm3594, %v3593, %v3010
        %vm3611 = vcmask 146432
        %v3612 = vsel %vm3611, %v3595, %v3044
        %v3613 = vsel %vm3611, %v3596, %v3046
        %v3614 = vsel %vm3611, %v3597, %v3048
        %v3615 = vsel %vm3611, %v3598, %v3050
        %v3616 = vsel %vm3611, %v3599, %v3052
        %v3617 = vsel %vm3611, %v3600, %v3054
        %v3618 = vsel %vm3611, %v3601, %v3056
        %v3619 = vsel %vm3611, %v3602, %v3058
        %v3620 = vsel %vm3611, %v3603, %v3060
        %v3621 = vsel %vm3611, %v3604, %v3062
        %v3622 = vsel %vm3611, %v3605, %v3064
        %v3623 = vsel %vm3611, %v3606, %v3066
        %v3624 = vsel %vm3611, %v3607, %v3068
        %v3625 = vsel %vm3611, %v3608, %v3070
        %v3626 = vsel %vm3611, %v3609, %v3072
        %v3627 = vsel %vm3611, %v3610, %v3074
        %vm3628 = vcmask 162816
        %v3629 = vsel %vm3628, %v3612, %v3108
        %v3630 = vsel %vm3628, %v3613, %v3110
        %v3631 = vsel %vm3628, %v3614, %v3112
        %v3632 = vsel %vm3628, %v3615, %v3114
        %v3633 = vsel %vm3628, %v3616, %v3116
        %v3634 = vsel %vm3628, %v3617, %v3118
        %v3635 = vsel %vm3628, %v3618, %v3120
        %v3636 = vsel %vm3628, %v3619, %v3122
        %v3637 = vsel %vm3628, %v3620, %v3124
        %v3638 = vsel %vm3628, %v3621, %v3126
        %v3639 = vsel %vm3628, %v3622, %v3128
        %v3640 = vsel %vm3628, %v3623, %v3130
        %v3641 = vsel %vm3628, %v3624, %v3132
        %v3642 = vsel %vm3628, %v3625, %v3134
        %v3643 = vsel %vm3628, %v3626, %v3136
        %v3644 = vsel %vm3628, %v3627, %v3138
        %vm3645 = vcmask 179200
        %v3646 = vsel %vm3645, %v3629, %v3172
        %v3647 = vsel %vm3645, %v3630, %v3174
        %v3648 = vsel %vm3645, %v3631, %v3176
        %v3649 = vsel %vm3645, %v3632, %v3178
        %v3650 = vsel %vm3645, %v3633, %v3180
        %v3651 = vsel %vm3645, %v3634, %v3182
        %v3652 = vsel %vm3645, %v3635, %v3184
        %v3653 = vsel %vm3645, %v3636, %v3186
        %v3654 = vsel %vm3645, %v3637, %v3188
        %v3655 = vsel %vm3645, %v3638, %v3190
        %v3656 = vsel %vm3645, %v3639, %v3192
        %v3657 = vsel %vm3645, %v3640, %v3194
        %v3658 = vsel %vm3645, %v3641, %v3196
        %v3659 = vsel %vm3645, %v3642, %v3198
        %v3660 = vsel %vm3645, %v3643, %v3200
        %v3661 = vsel %vm3645, %v3644, %v3202
        %vm3662 = vcmask 195584
        %v3663 = vsel %vm3662, %v3646, %v3236
        %v3664 = vsel %vm3662, %v3647, %v3238
        %v3665 = vsel %vm3662, %v3648, %v3240
        %v3666 = vsel %vm3662, %v3649, %v3242
        %v3667 = vsel %vm3662, %v3650, %v3244
        %v3668 = vsel %vm3662, %v3651, %v3246
        %v3669 = vsel %vm3662, %v3652, %v3248
        %v3670 = vsel %vm3662, %v3653, %v3250
        %v3671 = vsel %vm3662, %v3654, %v3252
        %v3672 = vsel %vm3662, %v3655, %v3254
        %v3673 = vsel %vm3662, %v3656, %v3256
        %v3674 = vsel %vm3662, %v3657, %v3258
        %v3675 = vsel %vm3662, %v3658, %v3260
        %v3676 = vsel %vm3662, %v3659, %v3262
        %v3677 = vsel %vm3662, %v3660, %v3264
        %v3678 = vsel %vm3662, %v3661, %v3266
        %vm3679 = vcmask 211968
        %v3680 = vsel %vm3679, %v3663, %v3300
        %v3681 = vsel %vm3679, %v3664, %v3302
        %v3682 = vsel %vm3679, %v3665, %v3304
        %v3683 = vsel %vm3679, %v3666, %v3306
        %v3684 = vsel %vm3679, %v3667, %v3308
        %v3685 = vsel %vm3679, %v3668, %v3310
        %v3686 = vsel %vm3679, %v3669, %v3312
        %v3687 = vsel %vm3679, %v3670, %v3314
        %v3688 = vsel %vm3679, %v3671, %v3316
        %v3689 = vsel %vm3679, %v3672, %v3318
        %v3690 = vsel %vm3679, %v3673, %v3320
        %v3691 = vsel %vm3679, %v3674, %v3322
        %v3692 = vsel %vm3679, %v3675, %v3324
        %v3693 = vsel %vm3679, %v3676, %v3326
        %v3694 = vsel %vm3679, %v3677, %v3328
        %v3695 = vsel %vm3679, %v3678, %v3330
        %vm3696 = vcmask 228352
        %v3697 = vsel %vm3696, %v3680, %v3364
        %v3698 = vsel %vm3696, %v3681, %v3366
        %v3699 = vsel %vm3696, %v3682, %v3368
        %v3700 = vsel %vm3696, %v3683, %v3370
        %v3701 = vsel %vm3696, %v3684, %v3372
        %v3702 = vsel %vm3696, %v3685, %v3374
        %v3703 = vsel %vm3696, %v3686, %v3376
        %v3704 = vsel %vm3696, %v3687, %v3378
        %v3705 = vsel %vm3696, %v3688, %v3380
        %v3706 = vsel %vm3696, %v3689, %v3382
        %v3707 = vsel %vm3696, %v3690, %v3384
        %v3708 = vsel %vm3696, %v3691, %v3386
        %v3709 = vsel %vm3696, %v3692, %v3388
        %v3710 = vsel %vm3696, %v3693, %v3390
        %v3711 = vsel %vm3696, %v3694, %v3392
        %v3712 = vsel %vm3696, %v3695, %v3394
        %vm3713 = vcmask 244736
        %v3714 = vsel %vm3713, %v3697, %v3428
        %v3715 = vsel %vm3713, %v3698, %v3430
        %v3716 = vsel %vm3713, %v3699, %v3432
        %v3717 = vsel %vm3713, %v3700, %v3434
        %v3718 = vsel %vm3713, %v3701, %v3436
        %v3719 = vsel %vm3713, %v3702, %v3438
        %v3720 = vsel %vm3713, %v3703, %v3440
        %v3721 = vsel %vm3713, %v3704, %v3442
        %v3722 = vsel %vm3713, %v3705, %v3444
        %v3723 = vsel %vm3713, %v3706, %v3446
        %v3724 = vsel %vm3713, %v3707, %v3448
        %v3725 = vsel %vm3713, %v3708, %v3450
        %v3726 = vsel %vm3713, %v3709, %v3452
        %v3727 = vsel %vm3713, %v3710, %v3454
        %v3728 = vsel %vm3713, %v3711, %v3456
        %v3729 = vsel %vm3713, %v3712, %v3458
        %v3730 = vcombine.high %v915, 0.0
        %v3732 = vunpack.c.l.s4 1983009808
        %v3733 = vunpack.c.0.s8 %v3732
        %v3734 = vlaneseq
        %v3735 = vshrl.u32 %v3734, 7
        %v3736 = vsub.s32 %v3733, %v3735
        %v3737 = vrot.slane %v915, %v3736
        %v3739 = vunpack.c.l.s4 1983009808
        %v3740 = vunpack.c.0.s8 %v3739
        %v3741 = vlaneseq
        %v3742 = vshrl.u32 %v3741, 7
        %v3743 = vsub.s32 %v3740, %v3742
        %v3744 = vrot.slane %v3730, %v3743
        %v3745 = vcombine.high %v3737, 0.0
        %v3747 = vunpack.c.l.s4 1934713408
        %v3748 = vunpack.c.0.s8 %v3747
        %v3749 = vlaneseq
        %v3750 = vshrl.u32 %v3749, 7
        %v3751 = vsub.s32 %v3748, %v3750
        %v3752 = vrot.slane %v3737, %v3751
        %v3754 = vunpack.c.l.s4 1934713408
        %v3755 = vunpack.c.0.s8 %v3754
        %v3756 = vlaneseq
        %v3757 = vshrl.u32 %v3756, 7
        %v3758 = vsub.s32 %v3755, %v3757
        %v3759 = vrot.slane %v3745, %v3758
        %v3760 = vcombine.high %v3744, 0.0
        %v3762 = vunpack.c.l.s4 1934713408
        %v3763 = vunpack.c.0.s8 %v3762
        %v3764 = vlaneseq
        %v3765 = vshrl.u32 %v3764, 7
        %v3766 = vsub.s32 %v3763, %v3765
        %v3767 = vrot.slane %v3744, %v3766
        %v3769 = vunpack.c.l.s4 1934713408
        %v3770 = vunpack.c.0.s8 %v3769
        %v3771 = vlaneseq
        %v3772 = vshrl.u32 %v3771, 7
        %v3773 = vsub.s32 %v3770, %v3772
        %v3774 = vrot.slane %v3760, %v3773
        %v3775 = vcombine.high %v3752, 0.0
        %v3776 = vcombine.high %v3759, 0.0
        %v3777 = vcombine.high %v3767, 0.0
        %v3778 = vcombine.high %v3774, 0.0
        %v3779 = vcombine.high %v916, 0.0
        %v3781 = vunpack.c.l.s4 1983009808
        %v3782 = vunpack.c.0.s8 %v3781
        %v3783 = vlaneseq
        %v3784 = vshrl.u32 %v3783, 7
        %v3785 = vsub.s32 %v3782, %v3784
        %v3786 = vrot.slane %v916, %v3785
        %v3788 = vunpack.c.l.s4 1983009808
        %v3789 = vunpack.c.0.s8 %v3788
        %v3790 = vlaneseq
        %v3791 = vshrl.u32 %v3790, 7
        %v3792 = vsub.s32 %v3789, %v3791
        %v3793 = vrot.slane %v3779, %v3792
        %v3794 = vcombine.high %v3786, 0.0
        %v3796 = vunpack.c.l.s4 1934713408
        %v3797 = vunpack.c.0.s8 %v3796
        %v3798 = vlaneseq
        %v3799 = vshrl.u32 %v3798, 7
        %v3800 = vsub.s32 %v3797, %v3799
        %v3801 = vrot.slane %v3786, %v3800
        %v3803 = vunpack.c.l.s4 1934713408
        %v3804 = vunpack.c.0.s8 %v3803
        %v3805 = vlaneseq
        %v3806 = vshrl.u32 %v3805, 7
        %v3807 = vsub.s32 %v3804, %v3806
        %v3808 = vrot.slane %v3794, %v3807
        %v3809 = vcombine.high %v3793, 0.0
        %v3811 = vunpack.c.l.s4 1934713408
        %v3812 = vunpack.c.0.s8 %v3811
        %v3813 = vlaneseq
        %v3814 = vshrl.u32 %v3813, 7
        %v3815 = vsub.s32 %v3812, %v3814
        %v3816 = vrot.slane %v3793, %v3815
        %v3818 = vunpack.c.l.s4 1934713408
        %v3819 = vunpack.c.0.s8 %v3818
        %v3820 = vlaneseq
        %v3821 = vshrl.u32 %v3820, 7
        %v3822 = vsub.s32 %v3819, %v3821
        %v3823 = vrot.slane %v3809, %v3822
        %v3824 = vcombine.high %v3801, 0.0
        %v3825 = vcombine.high %v3808, 0.0
        %v3826 = vcombine.high %v3816, 0.0
        %v3827 = vcombine.high %v3823, 0.0
        %v3828 = vcombine.high %v917, 0.0
        %v3830 = vunpack.c.l.s4 1983009808
        %v3831 = vunpack.c.0.s8 %v3830
        %v3832 = vlaneseq
        %v3833 = vshrl.u32 %v3832, 7
        %v3834 = vsub.s32 %v3831, %v3833
        %v3835 = vrot.slane %v917, %v3834
        %v3837 = vunpack.c.l.s4 1983009808
        %v3838 = vunpack.c.0.s8 %v3837
        %v3839 = vlaneseq
        %v3840 = vshrl.u32 %v3839, 7
        %v3841 = vsub.s32 %v3838, %v3840
        %v3842 = vrot.slane %v3828, %v3841
        %v3843 = vcombine.high %v3835, 0.0
        %v3845 = vunpack.c.l.s4 1934713408
        %v3846 = vunpack.c.0.s8 %v3845
        %v3847 = vlaneseq
        %v3848 = vshrl.u32 %v3847, 7
        %v3849 = vsub.s32 %v3846, %v3848
        %v3850 = vrot.slane %v3835, %v3849
        %v3852 = vunpack.c.l.s4 1934713408
        %v3853 = vunpack.c.0.s8 %v3852
        %v3854 = vlaneseq
        %v3855 = vshrl.u32 %v3854, 7
        %v3856 = vsub.s32 %v3853, %v3855
        %v3857 = vrot.slane %v3843, %v3856
        %v3858 = vcombine.high %v3842, 0.0
        %v3860 = vunpack.c.l.s4 1934713408
        %v3861 = vunpack.c.0.s8 %v3860
        %v3862 = vlaneseq
        %v3863 = vshrl.u32 %v3862, 7
        %v3864 = vsub.s32 %v3861, %v3863
        %v3865 = vrot.slane %v3842, %v3864
        %v3867 = vunpack.c.l.s4 1934713408
        %v3868 = vunpack.c.0.s8 %v3867
        %v3869 = vlaneseq
        %v3870 = vshrl.u32 %v3869, 7
        %v3871 = vsub.s32 %v3868, %v3870
        %v3872 = vrot.slane %v3858, %v3871
        %v3873 = vcombine.high %v3850, 0.0
        %v3874 = vcombine.high %v3857, 0.0
        %v3875 = vcombine.high %v3865, 0.0
        %v3876 = vcombine.high %v3872, 0.0
        %v3877 = vcombine.high %v918, 0.0
        %v3879 = vunpack.c.l.s4 1983009808
        %v3880 = vunpack.c.0.s8 %v3879
        %v3881 = vlaneseq
        %v3882 = vshrl.u32 %v3881, 7
        %v3883 = vsub.s32 %v3880, %v3882
        %v3884 = vrot.slane %v918, %v3883
        %v3886 = vunpack.c.l.s4 1983009808
        %v3887 = vunpack.c.0.s8 %v3886
        %v3888 = vlaneseq
        %v3889 = vshrl.u32 %v3888, 7
        %v3890 = vsub.s32 %v3887, %v3889
        %v3891 = vrot.slane %v3877, %v3890
        %v3892 = vcombine.high %v3884, 0.0
        %v3894 = vunpack.c.l.s4 1934713408
        %v3895 = vunpack.c.0.s8 %v3894
        %v3896 = vlaneseq
        %v3897 = vshrl.u32 %v3896, 7
        %v3898 = vsub.s32 %v3895, %v3897
        %v3899 = vrot.slane %v3884, %v3898
        %v3901 = vunpack.c.l.s4 1934713408
        %v3902 = vunpack.c.0.s8 %v3901
        %v3903 = vlaneseq
        %v3904 = vshrl.u32 %v3903, 7
        %v3905 = vsub.s32 %v3902, %v3904
        %v3906 = vrot.slane %v3892, %v3905
        %v3907 = vcombine.high %v3891, 0.0
        %v3909 = vunpack.c.l.s4 1934713408
        %v3910 = vunpack.c.0.s8 %v3909
        %v3911 = vlaneseq
        %v3912 = vshrl.u32 %v3911, 7
        %v3913 = vsub.s32 %v3910, %v3912
        %v3914 = vrot.slane %v3891, %v3913
        %v3916 = vunpack.c.l.s4 1934713408
        %v3917 = vunpack.c.0.s8 %v3916
        %v3918 = vlaneseq
        %v3919 = vshrl.u32 %v3918, 7
        %v3920 = vsub.s32 %v3917, %v3919
        %v3921 = vrot.slane %v3907, %v3920
        %v3922 = vcombine.high %v3899, 0.0
        %v3923 = vcombine.high %v3906, 0.0
        %v3924 = vcombine.high %v3914, 0.0
        %v3925 = vcombine.high %v3921, 0.0
        %v3926 = vcombine.high %v919, 0.0
        %v3928 = vunpack.c.l.s4 1983009808
        %v3929 = vunpack.c.0.s8 %v3928
        %v3930 = vlaneseq
        %v3931 = vshrl.u32 %v3930, 7
        %v3932 = vsub.s32 %v3929, %v3931
        %v3933 = vrot.slane %v919, %v3932
        %v3935 = vunpack.c.l.s4 1983009808
        %v3936 = vunpack.c.0.s8 %v3935
        %v3937 = vlaneseq
        %v3938 = vshrl.u32 %v3937, 7
        %v3939 = vsub.s32 %v3936, %v3938
        %v3940 = vrot.slane %v3926, %v3939
        %v3941 = vcombine.high %v3933, 0.0
        %v3943 = vunpack.c.l.s4 1934713408
        %v3944 = vunpack.c.0.s8 %v3943
        %v3945 = vlaneseq
        %v3946 = vshrl.u32 %v3945, 7
        %v3947 = vsub.s32 %v3944, %v3946
        %v3948 = vrot.slane %v3933, %v3947
        %v3950 = vunpack.c.l.s4 1934713408
        %v3951 = vunpack.c.0.s8 %v3950
        %v3952 = vlaneseq
        %v3953 = vshrl.u32 %v3952, 7
        %v3954 = vsub.s32 %v3951, %v3953
        %v3955 = vrot.slane %v3941, %v3954
        %v3956 = vcombine.high %v3940, 0.0
        %v3958 = vunpack.c.l.s4 1934713408
        %v3959 = vunpack.c.0.s8 %v3958
        %v3960 = vlaneseq
        %v3961 = vshrl.u32 %v3960, 7
        %v3962 = vsub.s32 %v3959, %v3961
        %v3963 = vrot.slane %v3940, %v3962
        %v3965 = vunpack.c.l.s4 1934713408
        %v3966 = vunpack.c.0.s8 %v3965
        %v3967 = vlaneseq
        %v3968 = vshrl.u32 %v3967, 7
        %v3969 = vsub.s32 %v3966, %v3968
        %v3970 = vrot.slane %v3956, %v3969
        %v3971 = vcombine.high %v3948, 0.0
        %v3972 = vcombine.high %v3955, 0.0
        %v3973 = vcombine.high %v3963, 0.0
        %v3974 = vcombine.high %v3970, 0.0
        %v3975 = vcombine.high %v920, 0.0
        %v3977 = vunpack.c.l.s4 1983009808
        %v3978 = vunpack.c.0.s8 %v3977
        %v3979 = vlaneseq
        %v3980 = vshrl.u32 %v3979, 7
        %v3981 = vsub.s32 %v3978, %v3980
        %v3982 = vrot.slane %v920, %v3981
        %v3984 = vunpack.c.l.s4 1983009808
        %v3985 = vunpack.c.0.s8 %v3984
        %v3986 = vlaneseq
        %v3987 = vshrl.u32 %v3986, 7
        %v3988 = vsub.s32 %v3985, %v3987
        %v3989 = vrot.slane %v3975, %v3988
        %v3990 = vcombine.high %v3982, 0.0
        %v3992 = vunpack.c.l.s4 1934713408
        %v3993 = vunpack.c.0.s8 %v3992
        %v3994 = vlaneseq
        %v3995 = vshrl.u32 %v3994, 7
        %v3996 = vsub.s32 %v3993, %v3995
        %v3997 = vrot.slane %v3982, %v3996
        %v3999 = vunpack.c.l.s4 1934713408
        %v4000 = vunpack.c.0.s8 %v3999
        %v4001 = vlaneseq
        %v4002 = vshrl.u32 %v4001, 7
        %v4003 = vsub.s32 %v4000, %v4002
        %v4004 = vrot.slane %v3990, %v4003
        %v4005 = vcombine.high %v3989, 0.0
        %v4007 = vunpack.c.l.s4 1934713408
        %v4008 = vunpack.c.0.s8 %v4007
        %v4009 = vlaneseq
        %v4010 = vshrl.u32 %v4009, 7
        %v4011 = vsub.s32 %v4008, %v4010
        %v4012 = vrot.slane %v3989, %v4011
        %v4014 = vunpack.c.l.s4 1934713408
        %v4015 = vunpack.c.0.s8 %v4014
        %v4016 = vlaneseq
        %v4017 = vshrl.u32 %v4016, 7
        %v4018 = vsub.s32 %v4015, %v4017
        %v4019 = vrot.slane %v4005, %v4018
        %v4020 = vcombine.high %v3997, 0.0
        %v4021 = vcombine.high %v4004, 0.0
        %v4022 = vcombine.high %v4012, 0.0
        %v4023 = vcombine.high %v4019, 0.0
        %v4024 = vcombine.high %v921, 0.0
        %v4026 = vunpack.c.l.s4 1983009808
        %v4027 = vunpack.c.0.s8 %v4026
        %v4028 = vlaneseq
        %v4029 = vshrl.u32 %v4028, 7
        %v4030 = vsub.s32 %v4027, %v4029
        %v4031 = vrot.slane %v921, %v4030
        %v4033 = vunpack.c.l.s4 1983009808
        %v4034 = vunpack.c.0.s8 %v4033
        %v4035 = vlaneseq
        %v4036 = vshrl.u32 %v4035, 7
        %v4037 = vsub.s32 %v4034, %v4036
        %v4038 = vrot.slane %v4024, %v4037
        %v4039 = vcombine.high %v4031, 0.0
        %v4041 = vunpack.c.l.s4 1934713408
        %v4042 = vunpack.c.0.s8 %v4041
        %v4043 = vlaneseq
        %v4044 = vshrl.u32 %v4043, 7
        %v4045 = vsub.s32 %v4042, %v4044
        %v4046 = vrot.slane %v4031, %v4045
        %v4048 = vunpack.c.l.s4 1934713408
        %v4049 = vunpack.c.0.s8 %v4048
        %v4050 = vlaneseq
        %v4051 = vshrl.u32 %v4050, 7
        %v4052 = vsub.s32 %v4049, %v4051
        %v4053 = vrot.slane %v4039, %v4052
        %v4054 = vcombine.high %v4038, 0.0
        %v4056 = vunpack.c.l.s4 1934713408
        %v4057 = vunpack.c.0.s8 %v4056
        %v4058 = vlaneseq
        %v4059 = vshrl.u32 %v4058, 7
        %v4060 = vsub.s32 %v4057, %v4059
        %v4061 = vrot.slane %v4038, %v4060
        %v4063 = vunpack.c.l.s4 1934713408
        %v4064 = vunpack.c.0.s8 %v4063
        %v4065 = vlaneseq
        %v4066 = vshrl.u32 %v4065, 7
        %v4067 = vsub.s32 %v4064, %v4066
        %v4068 = vrot.slane %v4054, %v4067
        %v4069 = vcombine.high %v4046, 0.0
        %v4070 = vcombine.high %v4053, 0.0
        %v4071 = vcombine.high %v4061, 0.0
        %v4072 = vcombine.high %v4068, 0.0
        %v4073 = vcombine.high %v922, 0.0
        %v4075 = vunpack.c.l.s4 1983009808
        %v4076 = vunpack.c.0.s8 %v4075
        %v4077 = vlaneseq
        %v4078 = vshrl.u32 %v4077, 7
        %v4079 = vsub.s32 %v4076, %v4078
        %v4080 = vrot.slane %v922, %v4079
        %v4082 = vunpack.c.l.s4 1983009808
        %v4083 = vunpack.c.0.s8 %v4082
        %v4084 = vlaneseq
        %v4085 = vshrl.u32 %v4084, 7
        %v4086 = vsub.s32 %v4083, %v4085
        %v4087 = vrot.slane %v4073, %v4086
        %v4088 = vcombine.high %v4080, 0.0
        %v4090 = vunpack.c.l.s4 1934713408
        %v4091 = vunpack.c.0.s8 %v4090
        %v4092 = vlaneseq
        %v4093 = vshrl.u32 %v4092, 7
        %v4094 = vsub.s32 %v4091, %v4093
        %v4095 = vrot.slane %v4080, %v4094
        %v4097 = vunpack.c.l.s4 1934713408
        %v4098 = vunpack.c.0.s8 %v4097
        %v4099 = vlaneseq
        %v4100 = vshrl.u32 %v4099, 7
        %v4101 = vsub.s32 %v4098, %v4100
        %v4102 = vrot.slane %v4088, %v4101
        %v4103 = vcombine.high %v4087, 0.0
        %v4105 = vunpack.c.l.s4 1934713408
        %v4106 = vunpack.c.0.s8 %v4105
        %v4107 = vlaneseq
        %v4108 = vshrl.u32 %v4107, 7
        %v4109 = vsub.s32 %v4106, %v4108
        %v4110 = vrot.slane %v4087, %v4109
        %v4112 = vunpack.c.l.s4 1934713408
        %v4113 = vunpack.c.0.s8 %v4112
        %v4114 = vlaneseq
        %v4115 = vshrl.u32 %v4114, 7
        %v4116 = vsub.s32 %v4113, %v4115
        %v4117 = vrot.slane %v4103, %v4116
        %v4118 = vcombine.high %v4095, 0.0
        %v4119 = vcombine.high %v4102, 0.0
        %v4120 = vcombine.high %v4110, 0.0
        %v4121 = vcombine.high %v4117, 0.0
        %v4122 = vcombine.high %v923, 0.0
        %v4124 = vunpack.c.l.s4 1983009808
        %v4125 = vunpack.c.0.s8 %v4124
        %v4126 = vlaneseq
        %v4127 = vshrl.u32 %v4126, 7
        %v4128 = vsub.s32 %v4125, %v4127
        %v4129 = vrot.slane %v923, %v4128
        %v4131 = vunpack.c.l.s4 1983009808
        %v4132 = vunpack.c.0.s8 %v4131
        %v4133 = vlaneseq
        %v4134 = vshrl.u32 %v4133, 7
        %v4135 = vsub.s32 %v4132, %v4134
        %v4136 = vrot.slane %v4122, %v4135
        %v4137 = vcombine.high %v4129, 0.0
        %v4139 = vunpack.c.l.s4 1934713408
        %v4140 = vunpack.c.0.s8 %v4139
        %v4141 = vlaneseq
        %v4142 = vshrl.u32 %v4141, 7
        %v4143 = vsub.s32 %v4140, %v4142
        %v4144 = vrot.slane %v4129, %v4143
        %v4146 = vunpack.c.l.s4 1934713408
        %v4147 = vunpack.c.0.s8 %v4146
        %v4148 = vlaneseq
        %v4149 = vshrl.u32 %v4148, 7
        %v4150 = vsub.s32 %v4147, %v4149
        %v4151 = vrot.slane %v4137, %v4150
        %v4152 = vcombine.high %v4136, 0.0
        %v4154 = vunpack.c.l.s4 1934713408
        %v4155 = vunpack.c.0.s8 %v4154
        %v4156 = vlaneseq
        %v4157 = vshrl.u32 %v4156, 7
        %v4158 = vsub.s32 %v4155, %v4157
        %v4159 = vrot.slane %v4136, %v4158
        %v4161 = vunpack.c.l.s4 1934713408
        %v4162 = vunpack.c.0.s8 %v4161
        %v4163 = vlaneseq
        %v4164 = vshrl.u32 %v4163, 7
        %v4165 = vsub.s32 %v4162, %v4164
        %v4166 = vrot.slane %v4152, %v4165
        %v4167 = vcombine.high %v4144, 0.0
        %v4168 = vcombine.high %v4151, 0.0
        %v4169 = vcombine.high %v4159, 0.0
        %v4170 = vcombine.high %v4166, 0.0
        %v4171 = vcombine.high %v924, 0.0
        %v4173 = vunpack.c.l.s4 1983009808
        %v4174 = vunpack.c.0.s8 %v4173
        %v4175 = vlaneseq
        %v4176 = vshrl.u32 %v4175, 7
        %v4177 = vsub.s32 %v4174, %v4176
        %v4178 = vrot.slane %v924, %v4177
        %v4180 = vunpack.c.l.s4 1983009808
        %v4181 = vunpack.c.0.s8 %v4180
        %v4182 = vlaneseq
        %v4183 = vshrl.u32 %v4182, 7
        %v4184 = vsub.s32 %v4181, %v4183
        %v4185 = vrot.slane %v4171, %v4184
        %v4186 = vcombine.high %v4178, 0.0
        %v4188 = vunpack.c.l.s4 1934713408
        %v4189 = vunpack.c.0.s8 %v4188
        %v4190 = vlaneseq
        %v4191 = vshrl.u32 %v4190, 7
        %v4192 = vsub.s32 %v4189, %v4191
        %v4193 = vrot.slane %v4178, %v4192
        %v4195 = vunpack.c.l.s4 1934713408
        %v4196 = vunpack.c.0.s8 %v4195
        %v4197 = vlaneseq
        %v4198 = vshrl.u32 %v4197, 7
        %v4199 = vsub.s32 %v4196, %v4198
        %v4200 = vrot.slane %v4186, %v4199
        %v4201 = vcombine.high %v4185, 0.0
        %v4203 = vunpack.c.l.s4 1934713408
        %v4204 = vunpack.c.0.s8 %v4203
        %v4205 = vlaneseq
        %v4206 = vshrl.u32 %v4205, 7
        %v4207 = vsub.s32 %v4204, %v4206
        %v4208 = vrot.slane %v4185, %v4207
        %v4210 = vunpack.c.l.s4 1934713408
        %v4211 = vunpack.c.0.s8 %v4210
        %v4212 = vlaneseq
        %v4213 = vshrl.u32 %v4212, 7
        %v4214 = vsub.s32 %v4211, %v4213
        %v4215 = vrot.slane %v4201, %v4214
        %v4216 = vcombine.high %v4193, 0.0
        %v4217 = vcombine.high %v4200, 0.0
        %v4218 = vcombine.high %v4208, 0.0
        %v4219 = vcombine.high %v4215, 0.0
        %v4220 = vcombine.high %v925, 0.0
        %v4222 = vunpack.c.l.s4 1983009808
        %v4223 = vunpack.c.0.s8 %v4222
        %v4224 = vlaneseq
        %v4225 = vshrl.u32 %v4224, 7
        %v4226 = vsub.s32 %v4223, %v4225
        %v4227 = vrot.slane %v925, %v4226
        %v4229 = vunpack.c.l.s4 1983009808
        %v4230 = vunpack.c.0.s8 %v4229
        %v4231 = vlaneseq
        %v4232 = vshrl.u32 %v4231, 7
        %v4233 = vsub.s32 %v4230, %v4232
        %v4234 = vrot.slane %v4220, %v4233
        %v4235 = vcombine.high %v4227, 0.0
        %v4237 = vunpack.c.l.s4 1934713408
        %v4238 = vunpack.c.0.s8 %v4237
        %v4239 = vlaneseq
        %v4240 = vshrl.u32 %v4239, 7
        %v4241 = vsub.s32 %v4238, %v4240
        %v4242 = vrot.slane %v4227, %v4241
        %v4244 = vunpack.c.l.s4 1934713408
        %v4245 = vunpack.c.0.s8 %v4244
        %v4246 = vlaneseq
        %v4247 = vshrl.u32 %v4246, 7
        %v4248 = vsub.s32 %v4245, %v4247
        %v4249 = vrot.slane %v4235, %v4248
        %v4250 = vcombine.high %v4234, 0.0
        %v4252 = vunpack.c.l.s4 1934713408
        %v4253 = vunpack.c.0.s8 %v4252
        %v4254 = vlaneseq
        %v4255 = vshrl.u32 %v4254, 7
        %v4256 = vsub.s32 %v4253, %v4255
        %v4257 = vrot.slane %v4234, %v4256
        %v4259 = vunpack.c.l.s4 1934713408
        %v4260 = vunpack.c.0.s8 %v4259
        %v4261 = vlaneseq
        %v4262 = vshrl.u32 %v4261, 7
        %v4263 = vsub.s32 %v4260, %v4262
        %v4264 = vrot.slane %v4250, %v4263
        %v4265 = vcombine.high %v4242, 0.0
        %v4266 = vcombine.high %v4249, 0.0
        %v4267 = vcombine.high %v4257, 0.0
        %v4268 = vcombine.high %v4264, 0.0
        %v4269 = vcombine.high %v926, 0.0
        %v4271 = vunpack.c.l.s4 1983009808
        %v4272 = vunpack.c.0.s8 %v4271
        %v4273 = vlaneseq
        %v4274 = vshrl.u32 %v4273, 7
        %v4275 = vsub.s32 %v4272, %v4274
        %v4276 = vrot.slane %v926, %v4275
        %v4278 = vunpack.c.l.s4 1983009808
        %v4279 = vunpack.c.0.s8 %v4278
        %v4280 = vlaneseq
        %v4281 = vshrl.u32 %v4280, 7
        %v4282 = vsub.s32 %v4279, %v4281
        %v4283 = vrot.slane %v4269, %v4282
        %v4284 = vcombine.high %v4276, 0.0
        %v4286 = vunpack.c.l.s4 1934713408
        %v4287 = vunpack.c.0.s8 %v4286
        %v4288 = vlaneseq
        %v4289 = vshrl.u32 %v4288, 7
        %v4290 = vsub.s32 %v4287, %v4289
        %v4291 = vrot.slane %v4276, %v4290
        %v4293 = vunpack.c.l.s4 1934713408
        %v4294 = vunpack.c.0.s8 %v4293
        %v4295 = vlaneseq
        %v4296 = vshrl.u32 %v4295, 7
        %v4297 = vsub.s32 %v4294, %v4296
        %v4298 = vrot.slane %v4284, %v4297
        %v4299 = vcombine.high %v4283, 0.0
        %v4301 = vunpack.c.l.s4 1934713408
        %v4302 = vunpack.c.0.s8 %v4301
        %v4303 = vlaneseq
        %v4304 = vshrl.u32 %v4303, 7
        %v4305 = vsub.s32 %v4302, %v4304
        %v4306 = vrot.slane %v4283, %v4305
        %v4308 = vunpack.c.l.s4 1934713408
        %v4309 = vunpack.c.0.s8 %v4308
        %v4310 = vlaneseq
        %v4311 = vshrl.u32 %v4310, 7
        %v4312 = vsub.s32 %v4309, %v4311
        %v4313 = vrot.slane %v4299, %v4312
        %v4314 = vcombine.high %v4291, 0.0
        %v4315 = vcombine.high %v4298, 0.0
        %v4316 = vcombine.high %v4306, 0.0
        %v4317 = vcombine.high %v4313, 0.0
        %v4318 = vcombine.high %v927, 0.0
        %v4320 = vunpack.c.l.s4 1983009808
        %v4321 = vunpack.c.0.s8 %v4320
        %v4322 = vlaneseq
        %v4323 = vshrl.u32 %v4322, 7
        %v4324 = vsub.s32 %v4321, %v4323
        %v4325 = vrot.slane %v927, %v4324
        %v4327 = vunpack.c.l.s4 1983009808
        %v4328 = vunpack.c.0.s8 %v4327
        %v4329 = vlaneseq
        %v4330 = vshrl.u32 %v4329, 7
        %v4331 = vsub.s32 %v4328, %v4330
        %v4332 = vrot.slane %v4318, %v4331
        %v4333 = vcombine.high %v4325, 0.0
        %v4335 = vunpack.c.l.s4 1934713408
        %v4336 = vunpack.c.0.s8 %v4335
        %v4337 = vlaneseq
        %v4338 = vshrl.u32 %v4337, 7
        %v4339 = vsub.s32 %v4336, %v4338
        %v4340 = vrot.slane %v4325, %v4339
        %v4342 = vunpack.c.l.s4 1934713408
        %v4343 = vunpack.c.0.s8 %v4342
        %v4344 = vlaneseq
        %v4345 = vshrl.u32 %v4344, 7
        %v4346 = vsub.s32 %v4343, %v4345
        %v4347 = vrot.slane %v4333, %v4346
        %v4348 = vcombine.high %v4332, 0.0
        %v4350 = vunpack.c.l.s4 1934713408
        %v4351 = vunpack.c.0.s8 %v4350
        %v4352 = vlaneseq
        %v4353 = vshrl.u32 %v4352, 7
        %v4354 = vsub.s32 %v4351, %v4353
        %v4355 = vrot.slane %v4332, %v4354
        %v4357 = vunpack.c.l.s4 1934713408
        %v4358 = vunpack.c.0.s8 %v4357
        %v4359 = vlaneseq
        %v4360 = vshrl.u32 %v4359, 7
        %v4361 = vsub.s32 %v4358, %v4360
        %v4362 = vrot.slane %v4348, %v4361
        %v4363 = vcombine.high %v4340, 0.0
        %v4364 = vcombine.high %v4347, 0.0
        %v4365 = vcombine.high %v4355, 0.0
        %v4366 = vcombine.high %v4362, 0.0
        %v4367 = vcombine.high %v928, 0.0
        %v4369 = vunpack.c.l.s4 1983009808
        %v4370 = vunpack.c.0.s8 %v4369
        %v4371 = vlaneseq
        %v4372 = vshrl.u32 %v4371, 7
        %v4373 = vsub.s32 %v4370, %v4372
        %v4374 = vrot.slane %v928, %v4373
        %v4376 = vunpack.c.l.s4 1983009808
        %v4377 = vunpack.c.0.s8 %v4376
        %v4378 = vlaneseq
        %v4379 = vshrl.u32 %v4378, 7
        %v4380 = vsub.s32 %v4377, %v4379
        %v4381 = vrot.slane %v4367, %v4380
        %v4382 = vcombine.high %v4374, 0.0
        %v4384 = vunpack.c.l.s4 1934713408
        %v4385 = vunpack.c.0.s8 %v4384
        %v4386 = vlaneseq
        %v4387 = vshrl.u32 %v4386, 7
        %v4388 = vsub.s32 %v4385, %v4387
        %v4389 = vrot.slane %v4374, %v4388
        %v4391 = vunpack.c.l.s4 1934713408
        %v4392 = vunpack.c.0.s8 %v4391
        %v4393 = vlaneseq
        %v4394 = vshrl.u32 %v4393, 7
        %v4395 = vsub.s32 %v4392, %v4394
        %v4396 = vrot.slane %v4382, %v4395
        %v4397 = vcombine.high %v4381, 0.0
        %v4399 = vunpack.c.l.s4 1934713408
        %v4400 = vunpack.c.0.s8 %v4399
        %v4401 = vlaneseq
        %v4402 = vshrl.u32 %v4401, 7
        %v4403 = vsub.s32 %v4400, %v4402
        %v4404 = vrot.slane %v4381, %v4403
        %v4406 = vunpack.c.l.s4 1934713408
        %v4407 = vunpack.c.0.s8 %v4406
        %v4408 = vlaneseq
        %v4409 = vshrl.u32 %v4408, 7
        %v4410 = vsub.s32 %v4407, %v4409
        %v4411 = vrot.slane %v4397, %v4410
        %v4412 = vcombine.high %v4389, 0.0
        %v4413 = vcombine.high %v4396, 0.0
        %v4414 = vcombine.high %v4404, 0.0
        %v4415 = vcombine.high %v4411, 0.0
        %v4416 = vcombine.high %v929, 0.0
        %v4418 = vunpack.c.l.s4 1983009808
        %v4419 = vunpack.c.0.s8 %v4418
        %v4420 = vlaneseq
        %v4421 = vshrl.u32 %v4420, 7
        %v4422 = vsub.s32 %v4419, %v4421
        %v4423 = vrot.slane %v929, %v4422
        %v4425 = vunpack.c.l.s4 1983009808
        %v4426 = vunpack.c.0.s8 %v4425
        %v4427 = vlaneseq
        %v4428 = vshrl.u32 %v4427, 7
        %v4429 = vsub.s32 %v4426, %v4428
        %v4430 = vrot.slane %v4416, %v4429
        %v4431 = vcombine.high %v4423, 0.0
        %v4433 = vunpack.c.l.s4 1934713408
        %v4434 = vunpack.c.0.s8 %v4433
        %v4435 = vlaneseq
        %v4436 = vshrl.u32 %v4435, 7
        %v4437 = vsub.s32 %v4434, %v4436
        %v4438 = vrot.slane %v4423, %v4437
        %v4440 = vunpack.c.l.s4 1934713408
        %v4441 = vunpack.c.0.s8 %v4440
        %v4442 = vlaneseq
        %v4443 = vshrl.u32 %v4442, 7
        %v4444 = vsub.s32 %v4441, %v4443
        %v4445 = vrot.slane %v4431, %v4444
        %v4446 = vcombine.high %v4430, 0.0
        %v4448 = vunpack.c.l.s4 1934713408
        %v4449 = vunpack.c.0.s8 %v4448
        %v4450 = vlaneseq
        %v4451 = vshrl.u32 %v4450, 7
        %v4452 = vsub.s32 %v4449, %v4451
        %v4453 = vrot.slane %v4430, %v4452
        %v4455 = vunpack.c.l.s4 1934713408
        %v4456 = vunpack.c.0.s8 %v4455
        %v4457 = vlaneseq
        %v4458 = vshrl.u32 %v4457, 7
        %v4459 = vsub.s32 %v4456, %v4458
        %v4460 = vrot.slane %v4446, %v4459
        %v4461 = vcombine.high %v4438, 0.0
        %v4462 = vcombine.high %v4445, 0.0
        %v4463 = vcombine.high %v4453, 0.0
        %v4464 = vcombine.high %v4460, 0.0
        %v4465 = vcombine.high %v930, 0.0
        %v4467 = vunpack.c.l.s4 1983009808
        %v4468 = vunpack.c.0.s8 %v4467
        %v4469 = vlaneseq
        %v4470 = vshrl.u32 %v4469, 7
        %v4471 = vsub.s32 %v4468, %v4470
        %v4472 = vrot.slane %v930, %v4471
        %v4474 = vunpack.c.l.s4 1983009808
        %v4475 = vunpack.c.0.s8 %v4474
        %v4476 = vlaneseq
        %v4477 = vshrl.u32 %v4476, 7
        %v4478 = vsub.s32 %v4475, %v4477
        %v4479 = vrot.slane %v4465, %v4478
        %v4480 = vcombine.high %v4472, 0.0
        %v4482 = vunpack.c.l.s4 1934713408
        %v4483 = vunpack.c.0.s8 %v4482
        %v4484 = vlaneseq
        %v4485 = vshrl.u32 %v4484, 7
        %v4486 = vsub.s32 %v4483, %v4485
        %v4487 = vrot.slane %v4472, %v4486
        %v4489 = vunpack.c.l.s4 1934713408
        %v4490 = vunpack.c.0.s8 %v4489
        %v4491 = vlaneseq
        %v4492 = vshrl.u32 %v4491, 7
        %v4493 = vsub.s32 %v4490, %v4492
        %v4494 = vrot.slane %v4480, %v4493
        %v4495 = vcombine.high %v4479, 0.0
        %v4497 = vunpack.c.l.s4 1934713408
        %v4498 = vunpack.c.0.s8 %v4497
        %v4499 = vlaneseq
        %v4500 = vshrl.u32 %v4499, 7
        %v4501 = vsub.s32 %v4498, %v4500
        %v4502 = vrot.slane %v4479, %v4501
        %v4504 = vunpack.c.l.s4 1934713408
        %v4505 = vunpack.c.0.s8 %v4504
        %v4506 = vlaneseq
        %v4507 = vshrl.u32 %v4506, 7
        %v4508 = vsub.s32 %v4505, %v4507
        %v4509 = vrot.slane %v4495, %v4508
        %v4510 = vcombine.high %v4487, 0.0
        %v4511 = vcombine.high %v4494, 0.0
        %v4512 = vcombine.high %v4502, 0.0
        %v4513 = vcombine.high %v4509, 0.0
        %v4514 = vcombine.high %v931, 0.0
        %v4516 = vunpack.c.l.s4 1983009808
        %v4517 = vunpack.c.0.s8 %v4516
        %v4518 = vlaneseq
        %v4519 = vshrl.u32 %v4518, 7
        %v4520 = vsub.s32 %v4517, %v4519
        %v4521 = vrot.slane %v931, %v4520
        %v4523 = vunpack.c.l.s4 1983009808
        %v4524 = vunpack.c.0.s8 %v4523
        %v4525 = vlaneseq
        %v4526 = vshrl.u32 %v4525, 7
        %v4527 = vsub.s32 %v4524, %v4526
        %v4528 = vrot.slane %v4514, %v4527
        %v4529 = vcombine.high %v4521, 0.0
        %v4531 = vunpack.c.l.s4 1934713408
        %v4532 = vunpack.c.0.s8 %v4531
        %v4533 = vlaneseq
        %v4534 = vshrl.u32 %v4533, 7
        %v4535 = vsub.s32 %v4532, %v4534
        %v4536 = vrot.slane %v4521, %v4535
        %v4538 = vunpack.c.l.s4 1934713408
        %v4539 = vunpack.c.0.s8 %v4538
        %v4540 = vlaneseq
        %v4541 = vshrl.u32 %v4540, 7
        %v4542 = vsub.s32 %v4539, %v4541
        %v4543 = vrot.slane %v4529, %v4542
        %v4544 = vcombine.high %v4528, 0.0
        %v4546 = vunpack.c.l.s4 1934713408
        %v4547 = vunpack.c.0.s8 %v4546
        %v4548 = vlaneseq
        %v4549 = vshrl.u32 %v4548, 7
        %v4550 = vsub.s32 %v4547, %v4549
        %v4551 = vrot.slane %v4528, %v4550
        %v4553 = vunpack.c.l.s4 1934713408
        %v4554 = vunpack.c.0.s8 %v4553
        %v4555 = vlaneseq
        %v4556 = vshrl.u32 %v4555, 7
        %v4557 = vsub.s32 %v4554, %v4556
        %v4558 = vrot.slane %v4544, %v4557
        %v4559 = vcombine.high %v4536, 0.0
        %v4560 = vcombine.high %v4543, 0.0
        %v4561 = vcombine.high %v4551, 0.0
        %v4562 = vcombine.high %v4558, 0.0
        %v4563 = vcombine.high %v932, 0.0
        %v4565 = vunpack.c.l.s4 1983009808
        %v4566 = vunpack.c.0.s8 %v4565
        %v4567 = vlaneseq
        %v4568 = vshrl.u32 %v4567, 7
        %v4569 = vsub.s32 %v4566, %v4568
        %v4570 = vrot.slane %v932, %v4569
        %v4572 = vunpack.c.l.s4 1983009808
        %v4573 = vunpack.c.0.s8 %v4572
        %v4574 = vlaneseq
        %v4575 = vshrl.u32 %v4574, 7
        %v4576 = vsub.s32 %v4573, %v4575
        %v4577 = vrot.slane %v4563, %v4576
        %v4578 = vcombine.high %v4570, 0.0
        %v4580 = vunpack.c.l.s4 1934713408
        %v4581 = vunpack.c.0.s8 %v4580
        %v4582 = vlaneseq
        %v4583 = vshrl.u32 %v4582, 7
        %v4584 = vsub.s32 %v4581, %v4583
        %v4585 = vrot.slane %v4570, %v4584
        %v4587 = vunpack.c.l.s4 1934713408
        %v4588 = vunpack.c.0.s8 %v4587
        %v4589 = vlaneseq
        %v4590 = vshrl.u32 %v4589, 7
        %v4591 = vsub.s32 %v4588, %v4590
        %v4592 = vrot.slane %v4578, %v4591
        %v4593 = vcombine.high %v4577, 0.0
        %v4595 = vunpack.c.l.s4 1934713408
        %v4596 = vunpack.c.0.s8 %v4595
        %v4597 = vlaneseq
        %v4598 = vshrl.u32 %v4597, 7
        %v4599 = vsub.s32 %v4596, %v4598
        %v4600 = vrot.slane %v4577, %v4599
        %v4602 = vunpack.c.l.s4 1934713408
        %v4603 = vunpack.c.0.s8 %v4602
        %v4604 = vlaneseq
        %v4605 = vshrl.u32 %v4604, 7
        %v4606 = vsub.s32 %v4603, %v4605
        %v4607 = vrot.slane %v4593, %v4606
        %v4608 = vcombine.high %v4585, 0.0
        %v4609 = vcombine.high %v4592, 0.0
        %v4610 = vcombine.high %v4600, 0.0
        %v4611 = vcombine.high %v4607, 0.0
        %v4612 = vcombine.high %v933, 0.0
        %v4614 = vunpack.c.l.s4 1983009808
        %v4615 = vunpack.c.0.s8 %v4614
        %v4616 = vlaneseq
        %v4617 = vshrl.u32 %v4616, 7
        %v4618 = vsub.s32 %v4615, %v4617
        %v4619 = vrot.slane %v933, %v4618
        %v4621 = vunpack.c.l.s4 1983009808
        %v4622 = vunpack.c.0.s8 %v4621
        %v4623 = vlaneseq
        %v4624 = vshrl.u32 %v4623, 7
        %v4625 = vsub.s32 %v4622, %v4624
        %v4626 = vrot.slane %v4612, %v4625
        %v4627 = vcombine.high %v4619, 0.0
        %v4629 = vunpack.c.l.s4 1934713408
        %v4630 = vunpack.c.0.s8 %v4629
        %v4631 = vlaneseq
        %v4632 = vshrl.u32 %v4631, 7
        %v4633 = vsub.s32 %v4630, %v4632
        %v4634 = vrot.slane %v4619, %v4633
        %v4636 = vunpack.c.l.s4 1934713408
        %v4637 = vunpack.c.0.s8 %v4636
        %v4638 = vlaneseq
        %v4639 = vshrl.u32 %v4638, 7
        %v4640 = vsub.s32 %v4637, %v4639
        %v4641 = vrot.slane %v4627, %v4640
        %v4642 = vcombine.high %v4626, 0.0
        %v4644 = vunpack.c.l.s4 1934713408
        %v4645 = vunpack.c.0.s8 %v4644
        %v4646 = vlaneseq
        %v4647 = vshrl.u32 %v4646, 7
        %v4648 = vsub.s32 %v4645, %v4647
        %v4649 = vrot.slane %v4626, %v4648
        %v4651 = vunpack.c.l.s4 1934713408
        %v4652 = vunpack.c.0.s8 %v4651
        %v4653 = vlaneseq
        %v4654 = vshrl.u32 %v4653, 7
        %v4655 = vsub.s32 %v4652, %v4654
        %v4656 = vrot.slane %v4642, %v4655
        %v4657 = vcombine.high %v4634, 0.0
        %v4658 = vcombine.high %v4641, 0.0
        %v4659 = vcombine.high %v4649, 0.0
        %v4660 = vcombine.high %v4656, 0.0
        %v4661 = vcombine.high %v934, 0.0
        %v4663 = vunpack.c.l.s4 1983009808
        %v4664 = vunpack.c.0.s8 %v4663
        %v4665 = vlaneseq
        %v4666 = vshrl.u32 %v4665, 7
        %v4667 = vsub.s32 %v4664, %v4666
        %v4668 = vrot.slane %v934, %v4667
        %v4670 = vunpack.c.l.s4 1983009808
        %v4671 = vunpack.c.0.s8 %v4670
        %v4672 = vlaneseq
        %v4673 = vshrl.u32 %v4672, 7
        %v4674 = vsub.s32 %v4671, %v4673
        %v4675 = vrot.slane %v4661, %v4674
        %v4676 = vcombine.high %v4668, 0.0
        %v4678 = vunpack.c.l.s4 1934713408
        %v4679 = vunpack.c.0.s8 %v4678
        %v4680 = vlaneseq
        %v4681 = vshrl.u32 %v4680, 7
        %v4682 = vsub.s32 %v4679, %v4681
        %v4683 = vrot.slane %v4668, %v4682
        %v4685 = vunpack.c.l.s4 1934713408
        %v4686 = vunpack.c.0.s8 %v4685
        %v4687 = vlaneseq
        %v4688 = vshrl.u32 %v4687, 7
        %v4689 = vsub.s32 %v4686, %v4688
        %v4690 = vrot.slane %v4676, %v4689
        %v4691 = vcombine.high %v4675, 0.0
        %v4693 = vunpack.c.l.s4 1934713408
        %v4694 = vunpack.c.0.s8 %v4693
        %v4695 = vlaneseq
        %v4696 = vshrl.u32 %v4695, 7
        %v4697 = vsub.s32 %v4694, %v4696
        %v4698 = vrot.slane %v4675, %v4697
        %v4700 = vunpack.c.l.s4 1934713408
        %v4701 = vunpack.c.0.s8 %v4700
        %v4702 = vlaneseq
        %v4703 = vshrl.u32 %v4702, 7
        %v4704 = vsub.s32 %v4701, %v4703
        %v4705 = vrot.slane %v4691, %v4704
        %v4706 = vcombine.high %v4683, 0.0
        %v4707 = vcombine.high %v4690, 0.0
        %v4708 = vcombine.high %v4698, 0.0
        %v4709 = vcombine.high %v4705, 0.0
        %v4710 = vcombine.high %v935, 0.0
        %v4712 = vunpack.c.l.s4 1983009808
        %v4713 = vunpack.c.0.s8 %v4712
        %v4714 = vlaneseq
        %v4715 = vshrl.u32 %v4714, 7
        %v4716 = vsub.s32 %v4713, %v4715
        %v4717 = vrot.slane %v935, %v4716
        %v4719 = vunpack.c.l.s4 1983009808
        %v4720 = vunpack.c.0.s8 %v4719
        %v4721 = vlaneseq
        %v4722 = vshrl.u32 %v4721, 7
        %v4723 = vsub.s32 %v4720, %v4722
        %v4724 = vrot.slane %v4710, %v4723
        %v4725 = vcombine.high %v4717, 0.0
        %v4727 = vunpack.c.l.s4 1934713408
        %v4728 = vunpack.c.0.s8 %v4727
        %v4729 = vlaneseq
        %v4730 = vshrl.u32 %v4729, 7
        %v4731 = vsub.s32 %v4728, %v4730
        %v4732 = vrot.slane %v4717, %v4731
        %v4734 = vunpack.c.l.s4 1934713408
        %v4735 = vunpack.c.0.s8 %v4734
        %v4736 = vlaneseq
        %v4737 = vshrl.u32 %v4736, 7
        %v4738 = vsub.s32 %v4735, %v4737
        %v4739 = vrot.slane %v4725, %v4738
        %v4740 = vcombine.high %v4724, 0.0
        %v4742 = vunpack.c.l.s4 1934713408
        %v4743 = vunpack.c.0.s8 %v4742
        %v4744 = vlaneseq
        %v4745 = vshrl.u32 %v4744, 7
        %v4746 = vsub.s32 %v4743, %v4745
        %v4747 = vrot.slane %v4724, %v4746
        %v4749 = vunpack.c.l.s4 1934713408
        %v4750 = vunpack.c.0.s8 %v4749
        %v4751 = vlaneseq
        %v4752 = vshrl.u32 %v4751, 7
        %v4753 = vsub.s32 %v4750, %v4752
        %v4754 = vrot.slane %v4740, %v4753
        %v4755 = vcombine.high %v4732, 0.0
        %v4756 = vcombine.high %v4739, 0.0
        %v4757 = vcombine.high %v4747, 0.0
        %v4758 = vcombine.high %v4754, 0.0
        %v4759 = vcombine.high %v936, 0.0
        %v4761 = vunpack.c.l.s4 1983009808
        %v4762 = vunpack.c.0.s8 %v4761
        %v4763 = vlaneseq
        %v4764 = vshrl.u32 %v4763, 7
        %v4765 = vsub.s32 %v4762, %v4764
        %v4766 = vrot.slane %v936, %v4765
        %v4768 = vunpack.c.l.s4 1983009808
        %v4769 = vunpack.c.0.s8 %v4768
        %v4770 = vlaneseq
        %v4771 = vshrl.u32 %v4770, 7
        %v4772 = vsub.s32 %v4769, %v4771
        %v4773 = vrot.slane %v4759, %v4772
        %v4774 = vcombine.high %v4766, 0.0
        %v4776 = vunpack.c.l.s4 1934713408
        %v4777 = vunpack.c.0.s8 %v4776
        %v4778 = vlaneseq
        %v4779 = vshrl.u32 %v4778, 7
        %v4780 = vsub.s32 %v4777, %v4779
        %v4781 = vrot.slane %v4766, %v4780
        %v4783 = vunpack.c.l.s4 1934713408
        %v4784 = vunpack.c.0.s8 %v4783
        %v4785 = vlaneseq
        %v4786 = vshrl.u32 %v4785, 7
        %v4787 = vsub.s32 %v4784, %v4786
        %v4788 = vrot.slane %v4774, %v4787
        %v4789 = vcombine.high %v4773, 0.0
        %v4791 = vunpack.c.l.s4 1934713408
        %v4792 = vunpack.c.0.s8 %v4791
        %v4793 = vlaneseq
        %v4794 = vshrl.u32 %v4793, 7
        %v4795 = vsub.s32 %v4792, %v4794
        %v4796 = vrot.slane %v4773, %v4795
        %v4798 = vunpack.c.l.s4 1934713408
        %v4799 = vunpack.c.0.s8 %v4798
        %v4800 = vlaneseq
        %v4801 = vshrl.u32 %v4800, 7
        %v4802 = vsub.s32 %v4799, %v4801
        %v4803 = vrot.slane %v4789, %v4802
        %v4804 = vcombine.high %v4781, 0.0
        %v4805 = vcombine.high %v4788, 0.0
        %v4806 = vcombine.high %v4796, 0.0
        %v4807 = vcombine.high %v4803, 0.0
        %v4808 = vcombine.high %v937, 0.0
        %v4810 = vunpack.c.l.s4 1983009808
        %v4811 = vunpack.c.0.s8 %v4810
        %v4812 = vlaneseq
        %v4813 = vshrl.u32 %v4812, 7
        %v4814 = vsub.s32 %v4811, %v4813
        %v4815 = vrot.slane %v937, %v4814
        %v4817 = vunpack.c.l.s4 1983009808
        %v4818 = vunpack.c.0.s8 %v4817
        %v4819 = vlaneseq
        %v4820 = vshrl.u32 %v4819, 7
        %v4821 = vsub.s32 %v4818, %v4820
        %v4822 = vrot.slane %v4808, %v4821
        %v4823 = vcombine.high %v4815, 0.0
        %v4825 = vunpack.c.l.s4 1934713408
        %v4826 = vunpack.c.0.s8 %v4825
        %v4827 = vlaneseq
        %v4828 = vshrl.u32 %v4827, 7
        %v4829 = vsub.s32 %v4826, %v4828
        %v4830 = vrot.slane %v4815, %v4829
        %v4832 = vunpack.c.l.s4 1934713408
        %v4833 = vunpack.c.0.s8 %v4832
        %v4834 = vlaneseq
        %v4835 = vshrl.u32 %v4834, 7
        %v4836 = vsub.s32 %v4833, %v4835
        %v4837 = vrot.slane %v4823, %v4836
        %v4838 = vcombine.high %v4822, 0.0
        %v4840 = vunpack.c.l.s4 1934713408
        %v4841 = vunpack.c.0.s8 %v4840
        %v4842 = vlaneseq
        %v4843 = vshrl.u32 %v4842, 7
        %v4844 = vsub.s32 %v4841, %v4843
        %v4845 = vrot.slane %v4822, %v4844
        %v4847 = vunpack.c.l.s4 1934713408
        %v4848 = vunpack.c.0.s8 %v4847
        %v4849 = vlaneseq
        %v4850 = vshrl.u32 %v4849, 7
        %v4851 = vsub.s32 %v4848, %v4850
        %v4852 = vrot.slane %v4838, %v4851
        %v4853 = vcombine.high %v4830, 0.0
        %v4854 = vcombine.high %v4837, 0.0
        %v4855 = vcombine.high %v4845, 0.0
        %v4856 = vcombine.high %v4852, 0.0
        %v4857 = vcombine.high %v938, 0.0
        %v4859 = vunpack.c.l.s4 1983009808
        %v4860 = vunpack.c.0.s8 %v4859
        %v4861 = vlaneseq
        %v4862 = vshrl.u32 %v4861, 7
        %v4863 = vsub.s32 %v4860, %v4862
        %v4864 = vrot.slane %v938, %v4863
        %v4866 = vunpack.c.l.s4 1983009808
        %v4867 = vunpack.c.0.s8 %v4866
        %v4868 = vlaneseq
        %v4869 = vshrl.u32 %v4868, 7
        %v4870 = vsub.s32 %v4867, %v4869
        %v4871 = vrot.slane %v4857, %v4870
        %v4872 = vcombine.high %v4864, 0.0
        %v4874 = vunpack.c.l.s4 1934713408
        %v4875 = vunpack.c.0.s8 %v4874
        %v4876 = vlaneseq
        %v4877 = vshrl.u32 %v4876, 7
        %v4878 = vsub.s32 %v4875, %v4877
        %v4879 = vrot.slane %v4864, %v4878
        %v4881 = vunpack.c.l.s4 1934713408
        %v4882 = vunpack.c.0.s8 %v4881
        %v4883 = vlaneseq
        %v4884 = vshrl.u32 %v4883, 7
        %v4885 = vsub.s32 %v4882, %v4884
        %v4886 = vrot.slane %v4872, %v4885
        %v4887 = vcombine.high %v4871, 0.0
        %v4889 = vunpack.c.l.s4 1934713408
        %v4890 = vunpack.c.0.s8 %v4889
        %v4891 = vlaneseq
        %v4892 = vshrl.u32 %v4891, 7
        %v4893 = vsub.s32 %v4890, %v4892
        %v4894 = vrot.slane %v4871, %v4893
        %v4896 = vunpack.c.l.s4 1934713408
        %v4897 = vunpack.c.0.s8 %v4896
        %v4898 = vlaneseq
        %v4899 = vshrl.u32 %v4898, 7
        %v4900 = vsub.s32 %v4897, %v4899
        %v4901 = vrot.slane %v4887, %v4900
        %v4902 = vcombine.high %v4879, 0.0
        %v4903 = vcombine.high %v4886, 0.0
        %v4904 = vcombine.high %v4894, 0.0
        %v4905 = vcombine.high %v4901, 0.0
        %v4906 = vcombine.high %v939, 0.0
        %v4908 = vunpack.c.l.s4 1983009808
        %v4909 = vunpack.c.0.s8 %v4908
        %v4910 = vlaneseq
        %v4911 = vshrl.u32 %v4910, 7
        %v4912 = vsub.s32 %v4909, %v4911
        %v4913 = vrot.slane %v939, %v4912
        %v4915 = vunpack.c.l.s4 1983009808
        %v4916 = vunpack.c.0.s8 %v4915
        %v4917 = vlaneseq
        %v4918 = vshrl.u32 %v4917, 7
        %v4919 = vsub.s32 %v4916, %v4918
        %v4920 = vrot.slane %v4906, %v4919
        %v4921 = vcombine.high %v4913, 0.0
        %v4923 = vunpack.c.l.s4 1934713408
        %v4924 = vunpack.c.0.s8 %v4923
        %v4925 = vlaneseq
        %v4926 = vshrl.u32 %v4925, 7
        %v4927 = vsub.s32 %v4924, %v4926
        %v4928 = vrot.slane %v4913, %v4927
        %v4930 = vunpack.c.l.s4 1934713408
        %v4931 = vunpack.c.0.s8 %v4930
        %v4932 = vlaneseq
        %v4933 = vshrl.u32 %v4932, 7
        %v4934 = vsub.s32 %v4931, %v4933
        %v4935 = vrot.slane %v4921, %v4934
        %v4936 = vcombine.high %v4920, 0.0
        %v4938 = vunpack.c.l.s4 1934713408
        %v4939 = vunpack.c.0.s8 %v4938
        %v4940 = vlaneseq
        %v4941 = vshrl.u32 %v4940, 7
        %v4942 = vsub.s32 %v4939, %v4941
        %v4943 = vrot.slane %v4920, %v4942
        %v4945 = vunpack.c.l.s4 1934713408
        %v4946 = vunpack.c.0.s8 %v4945
        %v4947 = vlaneseq
        %v4948 = vshrl.u32 %v4947, 7
        %v4949 = vsub.s32 %v4946, %v4948
        %v4950 = vrot.slane %v4936, %v4949
        %v4951 = vcombine.high %v4928, 0.0
        %v4952 = vcombine.high %v4935, 0.0
        %v4953 = vcombine.high %v4943, 0.0
        %v4954 = vcombine.high %v4950, 0.0
        %v4955 = vcombine.high %v940, 0.0
        %v4957 = vunpack.c.l.s4 1983009808
        %v4958 = vunpack.c.0.s8 %v4957
        %v4959 = vlaneseq
        %v4960 = vshrl.u32 %v4959, 7
        %v4961 = vsub.s32 %v4958, %v4960
        %v4962 = vrot.slane %v940, %v4961
        %v4964 = vunpack.c.l.s4 1983009808
        %v4965 = vunpack.c.0.s8 %v4964
        %v4966 = vlaneseq
        %v4967 = vshrl.u32 %v4966, 7
        %v4968 = vsub.s32 %v4965, %v4967
        %v4969 = vrot.slane %v4955, %v4968
        %v4970 = vcombine.high %v4962, 0.0
        %v4972 = vunpack.c.l.s4 1934713408
        %v4973 = vunpack.c.0.s8 %v4972
        %v4974 = vlaneseq
        %v4975 = vshrl.u32 %v4974, 7
        %v4976 = vsub.s32 %v4973, %v4975
        %v4977 = vrot.slane %v4962, %v4976
        %v4979 = vunpack.c.l.s4 1934713408
        %v4980 = vunpack.c.0.s8 %v4979
        %v4981 = vlaneseq
        %v4982 = vshrl.u32 %v4981, 7
        %v4983 = vsub.s32 %v4980, %v4982
        %v4984 = vrot.slane %v4970, %v4983
        %v4985 = vcombine.high %v4969, 0.0
        %v4987 = vunpack.c.l.s4 1934713408
        %v4988 = vunpack.c.0.s8 %v4987
        %v4989 = vlaneseq
        %v4990 = vshrl.u32 %v4989, 7
        %v4991 = vsub.s32 %v4988, %v4990
        %v4992 = vrot.slane %v4969, %v4991
        %v4994 = vunpack.c.l.s4 1934713408
        %v4995 = vunpack.c.0.s8 %v4994
        %v4996 = vlaneseq
        %v4997 = vshrl.u32 %v4996, 7
        %v4998 = vsub.s32 %v4995, %v4997
        %v4999 = vrot.slane %v4985, %v4998
        %v5000 = vcombine.high %v4977, 0.0
        %v5001 = vcombine.high %v4984, 0.0
        %v5002 = vcombine.high %v4992, 0.0
        %v5003 = vcombine.high %v4999, 0.0
        %v5004 = vcombine.high %v941, 0.0
        %v5006 = vunpack.c.l.s4 1983009808
        %v5007 = vunpack.c.0.s8 %v5006
        %v5008 = vlaneseq
        %v5009 = vshrl.u32 %v5008, 7
        %v5010 = vsub.s32 %v5007, %v5009
        %v5011 = vrot.slane %v941, %v5010
        %v5013 = vunpack.c.l.s4 1983009808
        %v5014 = vunpack.c.0.s8 %v5013
        %v5015 = vlaneseq
        %v5016 = vshrl.u32 %v5015, 7
        %v5017 = vsub.s32 %v5014, %v5016
        %v5018 = vrot.slane %v5004, %v5017
        %v5019 = vcombine.high %v5011, 0.0
        %v5021 = vunpack.c.l.s4 1934713408
        %v5022 = vunpack.c.0.s8 %v5021
        %v5023 = vlaneseq
        %v5024 = vshrl.u32 %v5023, 7
        %v5025 = vsub.s32 %v5022, %v5024
        %v5026 = vrot.slane %v5011, %v5025
        %v5028 = vunpack.c.l.s4 1934713408
        %v5029 = vunpack.c.0.s8 %v5028
        %v5030 = vlaneseq
        %v5031 = vshrl.u32 %v5030, 7
        %v5032 = vsub.s32 %v5029, %v5031
        %v5033 = vrot.slane %v5019, %v5032
        %v5034 = vcombine.high %v5018, 0.0
        %v5036 = vunpack.c.l.s4 1934713408
        %v5037 = vunpack.c.0.s8 %v5036
        %v5038 = vlaneseq
        %v5039 = vshrl.u32 %v5038, 7
        %v5040 = vsub.s32 %v5037, %v5039
        %v5041 = vrot.slane %v5018, %v5040
        %v5043 = vunpack.c.l.s4 1934713408
        %v5044 = vunpack.c.0.s8 %v5043
        %v5045 = vlaneseq
        %v5046 = vshrl.u32 %v5045, 7
        %v5047 = vsub.s32 %v5044, %v5046
        %v5048 = vrot.slane %v5034, %v5047
        %v5049 = vcombine.high %v5026, 0.0
        %v5050 = vcombine.high %v5033, 0.0
        %v5051 = vcombine.high %v5041, 0.0
        %v5052 = vcombine.high %v5048, 0.0
        %v5053 = vcombine.high %v942, 0.0
        %v5055 = vunpack.c.l.s4 1983009808
        %v5056 = vunpack.c.0.s8 %v5055
        %v5057 = vlaneseq
        %v5058 = vshrl.u32 %v5057, 7
        %v5059 = vsub.s32 %v5056, %v5058
        %v5060 = vrot.slane %v942, %v5059
        %v5062 = vunpack.c.l.s4 1983009808
        %v5063 = vunpack.c.0.s8 %v5062
        %v5064 = vlaneseq
        %v5065 = vshrl.u32 %v5064, 7
        %v5066 = vsub.s32 %v5063, %v5065
        %v5067 = vrot.slane %v5053, %v5066
        %v5068 = vcombine.high %v5060, 0.0
        %v5070 = vunpack.c.l.s4 1934713408
        %v5071 = vunpack.c.0.s8 %v5070
        %v5072 = vlaneseq
        %v5073 = vshrl.u32 %v5072, 7
        %v5074 = vsub.s32 %v5071, %v5073
        %v5075 = vrot.slane %v5060, %v5074
        %v5077 = vunpack.c.l.s4 1934713408
        %v5078 = vunpack.c.0.s8 %v5077
        %v5079 = vlaneseq
        %v5080 = vshrl.u32 %v5079, 7
        %v5081 = vsub.s32 %v5078, %v5080
        %v5082 = vrot.slane %v5068, %v5081
        %v5083 = vcombine.high %v5067, 0.0
        %v5085 = vunpack.c.l.s4 1934713408
        %v5086 = vunpack.c.0.s8 %v5085
        %v5087 = vlaneseq
        %v5088 = vshrl.u32 %v5087, 7
        %v5089 = vsub.s32 %v5086, %v5088
        %v5090 = vrot.slane %v5067, %v5089
        %v5092 = vunpack.c.l.s4 1934713408
        %v5093 = vunpack.c.0.s8 %v5092
        %v5094 = vlaneseq
        %v5095 = vshrl.u32 %v5094, 7
        %v5096 = vsub.s32 %v5093, %v5095
        %v5097 = vrot.slane %v5083, %v5096
        %v5098 = vcombine.high %v5075, 0.0
        %v5099 = vcombine.high %v5082, 0.0
        %v5100 = vcombine.high %v5090, 0.0
        %v5101 = vcombine.high %v5097, 0.0
        %v5102 = vcombine.high %v943, 0.0
        %v5104 = vunpack.c.l.s4 1983009808
        %v5105 = vunpack.c.0.s8 %v5104
        %v5106 = vlaneseq
        %v5107 = vshrl.u32 %v5106, 7
        %v5108 = vsub.s32 %v5105, %v5107
        %v5109 = vrot.slane %v943, %v5108
        %v5111 = vunpack.c.l.s4 1983009808
        %v5112 = vunpack.c.0.s8 %v5111
        %v5113 = vlaneseq
        %v5114 = vshrl.u32 %v5113, 7
        %v5115 = vsub.s32 %v5112, %v5114
        %v5116 = vrot.slane %v5102, %v5115
        %v5117 = vcombine.high %v5109, 0.0
        %v5119 = vunpack.c.l.s4 1934713408
        %v5120 = vunpack.c.0.s8 %v5119
        %v5121 = vlaneseq
        %v5122 = vshrl.u32 %v5121, 7
        %v5123 = vsub.s32 %v5120, %v5122
        %v5124 = vrot.slane %v5109, %v5123
        %v5126 = vunpack.c.l.s4 1934713408
        %v5127 = vunpack.c.0.s8 %v5126
        %v5128 = vlaneseq
        %v5129 = vshrl.u32 %v5128, 7
        %v5130 = vsub.s32 %v5127, %v5129
        %v5131 = vrot.slane %v5117, %v5130
        %v5132 = vcombine.high %v5116, 0.0
        %v5134 = vunpack.c.l.s4 1934713408
        %v5135 = vunpack.c.0.s8 %v5134
        %v5136 = vlaneseq
        %v5137 = vshrl.u32 %v5136, 7
        %v5138 = vsub.s32 %v5135, %v5137
        %v5139 = vrot.slane %v5116, %v5138
        %v5141 = vunpack.c.l.s4 1934713408
        %v5142 = vunpack.c.0.s8 %v5141
        %v5143 = vlaneseq
        %v5144 = vshrl.u32 %v5143, 7
        %v5145 = vsub.s32 %v5142, %v5144
        %v5146 = vrot.slane %v5132, %v5145
        %v5147 = vcombine.high %v5124, 0.0
        %v5148 = vcombine.high %v5131, 0.0
        %v5149 = vcombine.high %v5139, 0.0
        %v5150 = vcombine.high %v5146, 0.0
        %v5151 = vcombine.high %v944, 0.0
        %v5153 = vunpack.c.l.s4 1983009808
        %v5154 = vunpack.c.0.s8 %v5153
        %v5155 = vlaneseq
        %v5156 = vshrl.u32 %v5155, 7
        %v5157 = vsub.s32 %v5154, %v5156
        %v5158 = vrot.slane %v944, %v5157
        %v5160 = vunpack.c.l.s4 1983009808
        %v5161 = vunpack.c.0.s8 %v5160
        %v5162 = vlaneseq
        %v5163 = vshrl.u32 %v5162, 7
        %v5164 = vsub.s32 %v5161, %v5163
        %v5165 = vrot.slane %v5151, %v5164
        %v5166 = vcombine.high %v5158, 0.0
        %v5168 = vunpack.c.l.s4 1934713408
        %v5169 = vunpack.c.0.s8 %v5168
        %v5170 = vlaneseq
        %v5171 = vshrl.u32 %v5170, 7
        %v5172 = vsub.s32 %v5169, %v5171
        %v5173 = vrot.slane %v5158, %v5172
        %v5175 = vunpack.c.l.s4 1934713408
        %v5176 = vunpack.c.0.s8 %v5175
        %v5177 = vlaneseq
        %v5178 = vshrl.u32 %v5177, 7
        %v5179 = vsub.s32 %v5176, %v5178
        %v5180 = vrot.slane %v5166, %v5179
        %v5181 = vcombine.high %v5165, 0.0
        %v5183 = vunpack.c.l.s4 1934713408
        %v5184 = vunpack.c.0.s8 %v5183
        %v5185 = vlaneseq
        %v5186 = vshrl.u32 %v5185, 7
        %v5187 = vsub.s32 %v5184, %v5186
        %v5188 = vrot.slane %v5165, %v5187
        %v5190 = vunpack.c.l.s4 1934713408
        %v5191 = vunpack.c.0.s8 %v5190
        %v5192 = vlaneseq
        %v5193 = vshrl.u32 %v5192, 7
        %v5194 = vsub.s32 %v5191, %v5193
        %v5195 = vrot.slane %v5181, %v5194
        %v5196 = vcombine.high %v5173, 0.0
        %v5197 = vcombine.high %v5180, 0.0
        %v5198 = vcombine.high %v5188, 0.0
        %v5199 = vcombine.high %v5195, 0.0
        %v5200 = vcombine.high %v945, 0.0
        %v5202 = vunpack.c.l.s4 1983009808
        %v5203 = vunpack.c.0.s8 %v5202
        %v5204 = vlaneseq
        %v5205 = vshrl.u32 %v5204, 7
        %v5206 = vsub.s32 %v5203, %v5205
        %v5207 = vrot.slane %v945, %v5206
        %v5209 = vunpack.c.l.s4 1983009808
        %v5210 = vunpack.c.0.s8 %v5209
        %v5211 = vlaneseq
        %v5212 = vshrl.u32 %v5211, 7
        %v5213 = vsub.s32 %v5210, %v5212
        %v5214 = vrot.slane %v5200, %v5213
        %v5215 = vcombine.high %v5207, 0.0
        %v5217 = vunpack.c.l.s4 1934713408
        %v5218 = vunpack.c.0.s8 %v5217
        %v5219 = vlaneseq
        %v5220 = vshrl.u32 %v5219, 7
        %v5221 = vsub.s32 %v5218, %v5220
        %v5222 = vrot.slane %v5207, %v5221
        %v5224 = vunpack.c.l.s4 1934713408
        %v5225 = vunpack.c.0.s8 %v5224
        %v5226 = vlaneseq
        %v5227 = vshrl.u32 %v5226, 7
        %v5228 = vsub.s32 %v5225, %v5227
        %v5229 = vrot.slane %v5215, %v5228
        %v5230 = vcombine.high %v5214, 0.0
        %v5232 = vunpack.c.l.s4 1934713408
        %v5233 = vunpack.c.0.s8 %v5232
        %v5234 = vlaneseq
        %v5235 = vshrl.u32 %v5234, 7
        %v5236 = vsub.s32 %v5233, %v5235
        %v5237 = vrot.slane %v5214, %v5236
        %v5239 = vunpack.c.l.s4 1934713408
        %v5240 = vunpack.c.0.s8 %v5239
        %v5241 = vlaneseq
        %v5242 = vshrl.u32 %v5241, 7
        %v5243 = vsub.s32 %v5240, %v5242
        %v5244 = vrot.slane %v5230, %v5243
        %v5245 = vcombine.high %v5222, 0.0
        %v5246 = vcombine.high %v5229, 0.0
        %v5247 = vcombine.high %v5237, 0.0
        %v5248 = vcombine.high %v5244, 0.0
        %v5249 = vcombine.high %v946, 0.0
        %v5251 = vunpack.c.l.s4 1983009808
        %v5252 = vunpack.c.0.s8 %v5251
        %v5253 = vlaneseq
        %v5254 = vshrl.u32 %v5253, 7
        %v5255 = vsub.s32 %v5252, %v5254
        %v5256 = vrot.slane %v946, %v5255
        %v5258 = vunpack.c.l.s4 1983009808
        %v5259 = vunpack.c.0.s8 %v5258
        %v5260 = vlaneseq
        %v5261 = vshrl.u32 %v5260, 7
        %v5262 = vsub.s32 %v5259, %v5261
        %v5263 = vrot.slane %v5249, %v5262
        %v5264 = vcombine.high %v5256, 0.0
        %v5266 = vunpack.c.l.s4 1934713408
        %v5267 = vunpack.c.0.s8 %v5266
        %v5268 = vlaneseq
        %v5269 = vshrl.u32 %v5268, 7
        %v5270 = vsub.s32 %v5267, %v5269
        %v5271 = vrot.slane %v5256, %v5270
        %v5273 = vunpack.c.l.s4 1934713408
        %v5274 = vunpack.c.0.s8 %v5273
        %v5275 = vlaneseq
        %v5276 = vshrl.u32 %v5275, 7
        %v5277 = vsub.s32 %v5274, %v5276
        %v5278 = vrot.slane %v5264, %v5277
        %v5279 = vcombine.high %v5263, 0.0
        %v5281 = vunpack.c.l.s4 1934713408
        %v5282 = vunpack.c.0.s8 %v5281
        %v5283 = vlaneseq
        %v5284 = vshrl.u32 %v5283, 7
        %v5285 = vsub.s32 %v5282, %v5284
        %v5286 = vrot.slane %v5263, %v5285
        %v5288 = vunpack.c.l.s4 1934713408
        %v5289 = vunpack.c.0.s8 %v5288
        %v5290 = vlaneseq
        %v5291 = vshrl.u32 %v5290, 7
        %v5292 = vsub.s32 %v5289, %v5291
        %v5293 = vrot.slane %v5279, %v5292
        %v5294 = vcombine.high %v5271, 0.0
        %v5295 = vcombine.high %v5278, 0.0
        %v5296 = vcombine.high %v5286, 0.0
        %v5297 = vcombine.high %v5293, 0.0
        %5314 = vrot.lane.b32.xlu0 %v3775, 2
        %v5315 = vpop.permute.xlu0 %5314
        %5316 = vrot.lane.b32.xlu0 %v3873, 2
        %v5317 = vpop.permute.xlu0 %5316
        %5318 = vrot.lane.b32.xlu0 %v3971, 2
        %v5319 = vpop.permute.xlu0 %5318
        %5320 = vrot.lane.b32.xlu0 %v4069, 2
        %v5321 = vpop.permute.xlu0 %5320
        %5322 = vrot.lane.b32.xlu0 %v4167, 2
        %v5323 = vpop.permute.xlu0 %5322
        %5324 = vrot.lane.b32.xlu0 %v4265, 2
        %v5325 = vpop.permute.xlu0 %5324
        %5326 = vrot.lane.b32.xlu0 %v4363, 2
        %v5327 = vpop.permute.xlu0 %5326
        %5328 = vrot.lane.b32.xlu0 %v4461, 2
        %v5329 = vpop.permute.xlu0 %5328
        %5330 = vrot.lane.b32.xlu0 %v4559, 2
        %v5331 = vpop.permute.xlu0 %5330
        %5332 = vrot.lane.b32.xlu0 %v4657, 2
        %v5333 = vpop.permute.xlu0 %5332
        %5334 = vrot.lane.b32.xlu0 %v4755, 2
        %v5335 = vpop.permute.xlu0 %5334
        %5336 = vrot.lane.b32.xlu0 %v4853, 2
        %v5337 = vpop.permute.xlu0 %5336
        %5338 = vrot.lane.b32.xlu0 %v4951, 2
        %v5339 = vpop.permute.xlu0 %5338
        %5340 = vrot.lane.b32.xlu0 %v5049, 2
        %v5341 = vpop.permute.xlu0 %5340
        %5342 = vrot.lane.b32.xlu0 %v5147, 2
        %v5343 = vpop.permute.xlu0 %5342
        %5344 = vrot.lane.b32.xlu0 %v5245, 2
        %v5345 = vpop.permute.xlu0 %5344
        %5378 = vrot.lane.b32.xlu0 %v3759, 4
        %v5379 = vpop.permute.xlu0 %5378
        %5380 = vrot.lane.b32.xlu0 %v3857, 4
        %v5381 = vpop.permute.xlu0 %5380
        %5382 = vrot.lane.b32.xlu0 %v3955, 4
        %v5383 = vpop.permute.xlu0 %5382
        %5384 = vrot.lane.b32.xlu0 %v4053, 4
        %v5385 = vpop.permute.xlu0 %5384
        %5386 = vrot.lane.b32.xlu0 %v4151, 4
        %v5387 = vpop.permute.xlu0 %5386
        %5388 = vrot.lane.b32.xlu0 %v4249, 4
        %v5389 = vpop.permute.xlu0 %5388
        %5390 = vrot.lane.b32.xlu0 %v4347, 4
        %v5391 = vpop.permute.xlu0 %5390
        %5392 = vrot.lane.b32.xlu0 %v4445, 4
        %v5393 = vpop.permute.xlu0 %5392
        %5394 = vrot.lane.b32.xlu0 %v4543, 4
        %v5395 = vpop.permute.xlu0 %5394
        %5396 = vrot.lane.b32.xlu0 %v4641, 4
        %v5397 = vpop.permute.xlu0 %5396
        %5398 = vrot.lane.b32.xlu0 %v4739, 4
        %v5399 = vpop.permute.xlu0 %5398
        %5400 = vrot.lane.b32.xlu0 %v4837, 4
        %v5401 = vpop.permute.xlu0 %5400
        %5402 = vrot.lane.b32.xlu0 %v4935, 4
        %v5403 = vpop.permute.xlu0 %5402
        %5404 = vrot.lane.b32.xlu0 %v5033, 4
        %v5405 = vpop.permute.xlu0 %5404
        %5406 = vrot.lane.b32.xlu0 %v5131, 4
        %v5407 = vpop.permute.xlu0 %5406
        %5408 = vrot.lane.b32.xlu0 %v5229, 4
        %v5409 = vpop.permute.xlu0 %5408
        %5442 = vrot.lane.b32.xlu0 %v3776, 6
        %v5443 = vpop.permute.xlu0 %5442
        %5444 = vrot.lane.b32.xlu0 %v3874, 6
        %v5445 = vpop.permute.xlu0 %5444
        %5446 = vrot.lane.b32.xlu0 %v3972, 6
        %v5447 = vpop.permute.xlu0 %5446
        %5448 = vrot.lane.b32.xlu0 %v4070, 6
        %v5449 = vpop.permute.xlu0 %5448
        %5450 = vrot.lane.b32.xlu0 %v4168, 6
        %v5451 = vpop.permute.xlu0 %5450
        %5452 = vrot.lane.b32.xlu0 %v4266, 6
        %v5453 = vpop.permute.xlu0 %5452
        %5454 = vrot.lane.b32.xlu0 %v4364, 6
        %v5455 = vpop.permute.xlu0 %5454
        %5456 = vrot.lane.b32.xlu0 %v4462, 6
        %v5457 = vpop.permute.xlu0 %5456
        %5458 = vrot.lane.b32.xlu0 %v4560, 6
        %v5459 = vpop.permute.xlu0 %5458
        %5460 = vrot.lane.b32.xlu0 %v4658, 6
        %v5461 = vpop.permute.xlu0 %5460
        %5462 = vrot.lane.b32.xlu0 %v4756, 6
        %v5463 = vpop.permute.xlu0 %5462
        %5464 = vrot.lane.b32.xlu0 %v4854, 6
        %v5465 = vpop.permute.xlu0 %5464
        %5466 = vrot.lane.b32.xlu0 %v4952, 6
        %v5467 = vpop.permute.xlu0 %5466
        %5468 = vrot.lane.b32.xlu0 %v5050, 6
        %v5469 = vpop.permute.xlu0 %5468
        %5470 = vrot.lane.b32.xlu0 %v5148, 6
        %v5471 = vpop.permute.xlu0 %5470
        %5472 = vrot.lane.b32.xlu0 %v5246, 6
        %v5473 = vpop.permute.xlu0 %5472
        %5506 = vrot.lane.b32.xlu0 %v3767, 8
        %v5507 = vpop.permute.xlu0 %5506
        %5508 = vrot.lane.b32.xlu0 %v3865, 8
        %v5509 = vpop.permute.xlu0 %5508
        %5510 = vrot.lane.b32.xlu0 %v3963, 8
        %v5511 = vpop.permute.xlu0 %5510
        %5512 = vrot.lane.b32.xlu0 %v4061, 8
        %v5513 = vpop.permute.xlu0 %5512
        %5514 = vrot.lane.b32.xlu0 %v4159, 8
        %v5515 = vpop.permute.xlu0 %5514
        %5516 = vrot.lane.b32.xlu0 %v4257, 8
        %v5517 = vpop.permute.xlu0 %5516
        %5518 = vrot.lane.b32.xlu0 %v4355, 8
        %v5519 = vpop.permute.xlu0 %5518
        %5520 = vrot.lane.b32.xlu0 %v4453, 8
        %v5521 = vpop.permute.xlu0 %5520
        %5522 = vrot.lane.b32.xlu0 %v4551, 8
        %v5523 = vpop.permute.xlu0 %5522
        %5524 = vrot.lane.b32.xlu0 %v4649, 8
        %v5525 = vpop.permute.xlu0 %5524
        %5526 = vrot.lane.b32.xlu0 %v4747, 8
        %v5527 = vpop.permute.xlu0 %5526
        %5528 = vrot.lane.b32.xlu0 %v4845, 8
        %v5529 = vpop.permute.xlu0 %5528
        %5530 = vrot.lane.b32.xlu0 %v4943, 8
        %v5531 = vpop.permute.xlu0 %5530
        %5532 = vrot.lane.b32.xlu0 %v5041, 8
        %v5533 = vpop.permute.xlu0 %5532
        %5534 = vrot.lane.b32.xlu0 %v5139, 8
        %v5535 = vpop.permute.xlu0 %5534
        %5536 = vrot.lane.b32.xlu0 %v5237, 8
        %v5537 = vpop.permute.xlu0 %5536
        %5570 = vrot.lane.b32.xlu0 %v3777, 10
        %v5571 = vpop.permute.xlu0 %5570
        %5572 = vrot.lane.b32.xlu0 %v3875, 10
        %v5573 = vpop.permute.xlu0 %5572
        %5574 = vrot.lane.b32.xlu0 %v3973, 10
        %v5575 = vpop.permute.xlu0 %5574
        %5576 = vrot.lane.b32.xlu0 %v4071, 10
        %v5577 = vpop.permute.xlu0 %5576
        %5578 = vrot.lane.b32.xlu0 %v4169, 10
        %v5579 = vpop.permute.xlu0 %5578
        %5580 = vrot.lane.b32.xlu0 %v4267, 10
        %v5581 = vpop.permute.xlu0 %5580
        %5582 = vrot.lane.b32.xlu0 %v4365, 10
        %v5583 = vpop.permute.xlu0 %5582
        %5584 = vrot.lane.b32.xlu0 %v4463, 10
        %v5585 = vpop.permute.xlu0 %5584
        %5586 = vrot.lane.b32.xlu0 %v4561, 10
        %v5587 = vpop.permute.xlu0 %5586
        %5588 = vrot.lane.b32.xlu0 %v4659, 10
        %v5589 = vpop.permute.xlu0 %5588
        %5590 = vrot.lane.b32.xlu0 %v4757, 10
        %v5591 = vpop.permute.xlu0 %5590
        %5592 = vrot.lane.b32.xlu0 %v4855, 10
        %v5593 = vpop.permute.xlu0 %5592
        %5594 = vrot.lane.b32.xlu0 %v4953, 10
        %v5595 = vpop.permute.xlu0 %5594
        %5596 = vrot.lane.b32.xlu0 %v5051, 10
        %v5597 = vpop.permute.xlu0 %5596
        %5598 = vrot.lane.b32.xlu0 %v5149, 10
        %v5599 = vpop.permute.xlu0 %5598
        %5600 = vrot.lane.b32.xlu0 %v5247, 10
        %v5601 = vpop.permute.xlu0 %5600
        %5634 = vrot.lane.b32.xlu0 %v3774, 12
        %v5635 = vpop.permute.xlu0 %5634
        %5636 = vrot.lane.b32.xlu0 %v3872, 12
        %v5637 = vpop.permute.xlu0 %5636
        %5638 = vrot.lane.b32.xlu0 %v3970, 12
        %v5639 = vpop.permute.xlu0 %5638
        %5640 = vrot.lane.b32.xlu0 %v4068, 12
        %v5641 = vpop.permute.xlu0 %5640
        %5642 = vrot.lane.b32.xlu0 %v4166, 12
        %v5643 = vpop.permute.xlu0 %5642
        %5644 = vrot.lane.b32.xlu0 %v4264, 12
        %v5645 = vpop.permute.xlu0 %5644
        %5646 = vrot.lane.b32.xlu0 %v4362, 12
        %v5647 = vpop.permute.xlu0 %5646
        %5648 = vrot.lane.b32.xlu0 %v4460, 12
        %v5649 = vpop.permute.xlu0 %5648
        %5650 = vrot.lane.b32.xlu0 %v4558, 12
        %v5651 = vpop.permute.xlu0 %5650
        %5652 = vrot.lane.b32.xlu0 %v4656, 12
        %v5653 = vpop.permute.xlu0 %5652
        %5654 = vrot.lane.b32.xlu0 %v4754, 12
        %v5655 = vpop.permute.xlu0 %5654
        %5656 = vrot.lane.b32.xlu0 %v4852, 12
        %v5657 = vpop.permute.xlu0 %5656
        %5658 = vrot.lane.b32.xlu0 %v4950, 12
        %v5659 = vpop.permute.xlu0 %5658
        %5660 = vrot.lane.b32.xlu0 %v5048, 12
        %v5661 = vpop.permute.xlu0 %5660
        %5662 = vrot.lane.b32.xlu0 %v5146, 12
        %v5663 = vpop.permute.xlu0 %5662
        %5664 = vrot.lane.b32.xlu0 %v5244, 12
        %v5665 = vpop.permute.xlu0 %5664
        %5698 = vrot.lane.b32.xlu0 %v3778, 14
        %v5699 = vpop.permute.xlu0 %5698
        %5700 = vrot.lane.b32.xlu0 %v3876, 14
        %v5701 = vpop.permute.xlu0 %5700
        %5702 = vrot.lane.b32.xlu0 %v3974, 14
        %v5703 = vpop.permute.xlu0 %5702
        %5704 = vrot.lane.b32.xlu0 %v4072, 14
        %v5705 = vpop.permute.xlu0 %5704
        %5706 = vrot.lane.b32.xlu0 %v4170, 14
        %v5707 = vpop.permute.xlu0 %5706
        %5708 = vrot.lane.b32.xlu0 %v4268, 14
        %v5709 = vpop.permute.xlu0 %5708
        %5710 = vrot.lane.b32.xlu0 %v4366, 14
        %v5711 = vpop.permute.xlu0 %5710
        %5712 = vrot.lane.b32.xlu0 %v4464, 14
        %v5713 = vpop.permute.xlu0 %5712
        %5714 = vrot.lane.b32.xlu0 %v4562, 14
        %v5715 = vpop.permute.xlu0 %5714
        %5716 = vrot.lane.b32.xlu0 %v4660, 14
        %v5717 = vpop.permute.xlu0 %5716
        %5718 = vrot.lane.b32.xlu0 %v4758, 14
        %v5719 = vpop.permute.xlu0 %5718
        %5720 = vrot.lane.b32.xlu0 %v4856, 14
        %v5721 = vpop.permute.xlu0 %5720
        %5722 = vrot.lane.b32.xlu0 %v4954, 14
        %v5723 = vpop.permute.xlu0 %5722
        %5724 = vrot.lane.b32.xlu0 %v5052, 14
        %v5725 = vpop.permute.xlu0 %5724
        %5726 = vrot.lane.b32.xlu0 %v5150, 14
        %v5727 = vpop.permute.xlu0 %5726
        %5728 = vrot.lane.b32.xlu0 %v5248, 14
        %v5729 = vpop.permute.xlu0 %5728
        %5762 = vrot.lane.b32.xlu0 %v3801, 16
        %v5763 = vpop.permute.xlu0 %5762
        %5764 = vrot.lane.b32.xlu0 %v3899, 16
        %v5765 = vpop.permute.xlu0 %5764
        %5766 = vrot.lane.b32.xlu0 %v3997, 16
        %v5767 = vpop.permute.xlu0 %5766
        %5768 = vrot.lane.b32.xlu0 %v4095, 16
        %v5769 = vpop.permute.xlu0 %5768
        %5770 = vrot.lane.b32.xlu0 %v4193, 16
        %v5771 = vpop.permute.xlu0 %5770
        %5772 = vrot.lane.b32.xlu0 %v4291, 16
        %v5773 = vpop.permute.xlu0 %5772
        %5774 = vrot.lane.b32.xlu0 %v4389, 16
        %v5775 = vpop.permute.xlu0 %5774
        %5776 = vrot.lane.b32.xlu0 %v4487, 16
        %v5777 = vpop.permute.xlu0 %5776
        %5778 = vrot.lane.b32.xlu0 %v4585, 16
        %v5779 = vpop.permute.xlu0 %5778
        %5780 = vrot.lane.b32.xlu0 %v4683, 16
        %v5781 = vpop.permute.xlu0 %5780
        %5782 = vrot.lane.b32.xlu0 %v4781, 16
        %v5783 = vpop.permute.xlu0 %5782
        %5784 = vrot.lane.b32.xlu0 %v4879, 16
        %v5785 = vpop.permute.xlu0 %5784
        %5786 = vrot.lane.b32.xlu0 %v4977, 16
        %v5787 = vpop.permute.xlu0 %5786
        %5788 = vrot.lane.b32.xlu0 %v5075, 16
        %v5789 = vpop.permute.xlu0 %5788
        %5790 = vrot.lane.b32.xlu0 %v5173, 16
        %v5791 = vpop.permute.xlu0 %5790
        %5792 = vrot.lane.b32.xlu0 %v5271, 16
        %v5793 = vpop.permute.xlu0 %5792
        %5826 = vrot.lane.b32.xlu0 %v3824, 18
        %v5827 = vpop.permute.xlu0 %5826
        %5828 = vrot.lane.b32.xlu0 %v3922, 18
        %v5829 = vpop.permute.xlu0 %5828
        %5830 = vrot.lane.b32.xlu0 %v4020, 18
        %v5831 = vpop.permute.xlu0 %5830
        %5832 = vrot.lane.b32.xlu0 %v4118, 18
        %v5833 = vpop.permute.xlu0 %5832
        %5834 = vrot.lane.b32.xlu0 %v4216, 18
        %v5835 = vpop.permute.xlu0 %5834
        %5836 = vrot.lane.b32.xlu0 %v4314, 18
        %v5837 = vpop.permute.xlu0 %5836
        %5838 = vrot.lane.b32.xlu0 %v4412, 18
        %v5839 = vpop.permute.xlu0 %5838
        %5840 = vrot.lane.b32.xlu0 %v4510, 18
        %v5841 = vpop.permute.xlu0 %5840
        %5842 = vrot.lane.b32.xlu0 %v4608, 18
        %v5843 = vpop.permute.xlu0 %5842
        %5844 = vrot.lane.b32.xlu0 %v4706, 18
        %v5845 = vpop.permute.xlu0 %5844
        %5846 = vrot.lane.b32.xlu0 %v4804, 18
        %v5847 = vpop.permute.xlu0 %5846
        %5848 = vrot.lane.b32.xlu0 %v4902, 18
        %v5849 = vpop.permute.xlu0 %5848
        %5850 = vrot.lane.b32.xlu0 %v5000, 18
        %v5851 = vpop.permute.xlu0 %5850
        %5852 = vrot.lane.b32.xlu0 %v5098, 18
        %v5853 = vpop.permute.xlu0 %5852
        %5854 = vrot.lane.b32.xlu0 %v5196, 18
        %v5855 = vpop.permute.xlu0 %5854
        %5856 = vrot.lane.b32.xlu0 %v5294, 18
        %v5857 = vpop.permute.xlu0 %5856
        %5890 = vrot.lane.b32.xlu0 %v3808, 20
        %v5891 = vpop.permute.xlu0 %5890
        %5892 = vrot.lane.b32.xlu0 %v3906, 20
        %v5893 = vpop.permute.xlu0 %5892
        %5894 = vrot.lane.b32.xlu0 %v4004, 20
        %v5895 = vpop.permute.xlu0 %5894
        %5896 = vrot.lane.b32.xlu0 %v4102, 20
        %v5897 = vpop.permute.xlu0 %5896
        %5898 = vrot.lane.b32.xlu0 %v4200, 20
        %v5899 = vpop.permute.xlu0 %5898
        %5900 = vrot.lane.b32.xlu0 %v4298, 20
        %v5901 = vpop.permute.xlu0 %5900
        %5902 = vrot.lane.b32.xlu0 %v4396, 20
        %v5903 = vpop.permute.xlu0 %5902
        %5904 = vrot.lane.b32.xlu0 %v4494, 20
        %v5905 = vpop.permute.xlu0 %5904
        %5906 = vrot.lane.b32.xlu0 %v4592, 20
        %v5907 = vpop.permute.xlu0 %5906
        %5908 = vrot.lane.b32.xlu0 %v4690, 20
        %v5909 = vpop.permute.xlu0 %5908
        %5910 = vrot.lane.b32.xlu0 %v4788, 20
        %v5911 = vpop.permute.xlu0 %5910
        %5912 = vrot.lane.b32.xlu0 %v4886, 20
        %v5913 = vpop.permute.xlu0 %5912
        %5914 = vrot.lane.b32.xlu0 %v4984, 20
        %v5915 = vpop.permute.xlu0 %5914
        %5916 = vrot.lane.b32.xlu0 %v5082, 20
        %v5917 = vpop.permute.xlu0 %5916
        %5918 = vrot.lane.b32.xlu0 %v5180, 20
        %v5919 = vpop.permute.xlu0 %5918
        %5920 = vrot.lane.b32.xlu0 %v5278, 20
        %v5921 = vpop.permute.xlu0 %5920
        %5954 = vrot.lane.b32.xlu0 %v3825, 22
        %v5955 = vpop.permute.xlu0 %5954
        %5956 = vrot.lane.b32.xlu0 %v3923, 22
        %v5957 = vpop.permute.xlu0 %5956
        %5958 = vrot.lane.b32.xlu0 %v4021, 22
        %v5959 = vpop.permute.xlu0 %5958
        %5960 = vrot.lane.b32.xlu0 %v4119, 22
        %v5961 = vpop.permute.xlu0 %5960
        %5962 = vrot.lane.b32.xlu0 %v4217, 22
        %v5963 = vpop.permute.xlu0 %5962
        %5964 = vrot.lane.b32.xlu0 %v4315, 22
        %v5965 = vpop.permute.xlu0 %5964
        %5966 = vrot.lane.b32.xlu0 %v4413, 22
        %v5967 = vpop.permute.xlu0 %5966
        %5968 = vrot.lane.b32.xlu0 %v4511, 22
        %v5969 = vpop.permute.xlu0 %5968
        %5970 = vrot.lane.b32.xlu0 %v4609, 22
        %v5971 = vpop.permute.xlu0 %5970
        %5972 = vrot.lane.b32.xlu0 %v4707, 22
        %v5973 = vpop.permute.xlu0 %5972
        %5974 = vrot.lane.b32.xlu0 %v4805, 22
        %v5975 = vpop.permute.xlu0 %5974
        %5976 = vrot.lane.b32.xlu0 %v4903, 22
        %v5977 = vpop.permute.xlu0 %5976
        %5978 = vrot.lane.b32.xlu0 %v5001, 22
        %v5979 = vpop.permute.xlu0 %5978
        %5980 = vrot.lane.b32.xlu0 %v5099, 22
        %v5981 = vpop.permute.xlu0 %5980
        %5982 = vrot.lane.b32.xlu0 %v5197, 22
        %v5983 = vpop.permute.xlu0 %5982
        %5984 = vrot.lane.b32.xlu0 %v5295, 22
        %v5985 = vpop.permute.xlu0 %5984
        %6018 = vrot.lane.b32.xlu0 %v3816, 24
        %v6019 = vpop.permute.xlu0 %6018
        %6020 = vrot.lane.b32.xlu0 %v3914, 24
        %v6021 = vpop.permute.xlu0 %6020
        %6022 = vrot.lane.b32.xlu0 %v4012, 24
        %v6023 = vpop.permute.xlu0 %6022
        %6024 = vrot.lane.b32.xlu0 %v4110, 24
        %v6025 = vpop.permute.xlu0 %6024
        %6026 = vrot.lane.b32.xlu0 %v4208, 24
        %v6027 = vpop.permute.xlu0 %6026
        %6028 = vrot.lane.b32.xlu0 %v4306, 24
        %v6029 = vpop.permute.xlu0 %6028
        %6030 = vrot.lane.b32.xlu0 %v4404, 24
        %v6031 = vpop.permute.xlu0 %6030
        %6032 = vrot.lane.b32.xlu0 %v4502, 24
        %v6033 = vpop.permute.xlu0 %6032
        %6034 = vrot.lane.b32.xlu0 %v4600, 24
        %v6035 = vpop.permute.xlu0 %6034
        %6036 = vrot.lane.b32.xlu0 %v4698, 24
        %v6037 = vpop.permute.xlu0 %6036
        %6038 = vrot.lane.b32.xlu0 %v4796, 24
        %v6039 = vpop.permute.xlu0 %6038
        %6040 = vrot.lane.b32.xlu0 %v4894, 24
        %v6041 = vpop.permute.xlu0 %6040
        %6042 = vrot.lane.b32.xlu0 %v4992, 24
        %v6043 = vpop.permute.xlu0 %6042
        %6044 = vrot.lane.b32.xlu0 %v5090, 24
        %v6045 = vpop.permute.xlu0 %6044
        %6046 = vrot.lane.b32.xlu0 %v5188, 24
        %v6047 = vpop.permute.xlu0 %6046
        %6048 = vrot.lane.b32.xlu0 %v5286, 24
        %v6049 = vpop.permute.xlu0 %6048
        %6082 = vrot.lane.b32.xlu0 %v3826, 26
        %v6083 = vpop.permute.xlu0 %6082
        %6084 = vrot.lane.b32.xlu0 %v3924, 26
        %v6085 = vpop.permute.xlu0 %6084
        %6086 = vrot.lane.b32.xlu0 %v4022, 26
        %v6087 = vpop.permute.xlu0 %6086
        %6088 = vrot.lane.b32.xlu0 %v4120, 26
        %v6089 = vpop.permute.xlu0 %6088
        %6090 = vrot.lane.b32.xlu0 %v4218, 26
        %v6091 = vpop.permute.xlu0 %6090
        %6092 = vrot.lane.b32.xlu0 %v4316, 26
        %v6093 = vpop.permute.xlu0 %6092
        %6094 = vrot.lane.b32.xlu0 %v4414, 26
        %v6095 = vpop.permute.xlu0 %6094
        %6096 = vrot.lane.b32.xlu0 %v4512, 26
        %v6097 = vpop.permute.xlu0 %6096
        %6098 = vrot.lane.b32.xlu0 %v4610, 26
        %v6099 = vpop.permute.xlu0 %6098
        %6100 = vrot.lane.b32.xlu0 %v4708, 26
        %v6101 = vpop.permute.xlu0 %6100
        %6102 = vrot.lane.b32.xlu0 %v4806, 26
        %v6103 = vpop.permute.xlu0 %6102
        %6104 = vrot.lane.b32.xlu0 %v4904, 26
        %v6105 = vpop.permute.xlu0 %6104
        %6106 = vrot.lane.b32.xlu0 %v5002, 26
        %v6107 = vpop.permute.xlu0 %6106
        %6108 = vrot.lane.b32.xlu0 %v5100, 26
        %v6109 = vpop.permute.xlu0 %6108
        %6110 = vrot.lane.b32.xlu0 %v5198, 26
        %v6111 = vpop.permute.xlu0 %6110
        %6112 = vrot.lane.b32.xlu0 %v5296, 26
        %v6113 = vpop.permute.xlu0 %6112
        %6146 = vrot.lane.b32.xlu0 %v3823, 28
        %v6147 = vpop.permute.xlu0 %6146
        %6148 = vrot.lane.b32.xlu0 %v3921, 28
        %v6149 = vpop.permute.xlu0 %6148
        %6150 = vrot.lane.b32.xlu0 %v4019, 28
        %v6151 = vpop.permute.xlu0 %6150
        %6152 = vrot.lane.b32.xlu0 %v4117, 28
        %v6153 = vpop.permute.xlu0 %6152
        %6154 = vrot.lane.b32.xlu0 %v4215, 28
        %v6155 = vpop.permute.xlu0 %6154
        %6156 = vrot.lane.b32.xlu0 %v4313, 28
        %v6157 = vpop.permute.xlu0 %6156
        %6158 = vrot.lane.b32.xlu0 %v4411, 28
        %v6159 = vpop.permute.xlu0 %6158
        %6160 = vrot.lane.b32.xlu0 %v4509, 28
        %v6161 = vpop.permute.xlu0 %6160
        %6162 = vrot.lane.b32.xlu0 %v4607, 28
        %v6163 = vpop.permute.xlu0 %6162
        %6164 = vrot.lane.b32.xlu0 %v4705, 28
        %v6165 = vpop.permute.xlu0 %6164
        %6166 = vrot.lane.b32.xlu0 %v4803, 28
        %v6167 = vpop.permute.xlu0 %6166
        %6168 = vrot.lane.b32.xlu0 %v4901, 28
        %v6169 = vpop.permute.xlu0 %6168
        %6170 = vrot.lane.b32.xlu0 %v4999, 28
        %v6171 = vpop.permute.xlu0 %6170
        %6172 = vrot.lane.b32.xlu0 %v5097, 28
        %v6173 = vpop.permute.xlu0 %6172
        %6174 = vrot.lane.b32.xlu0 %v5195, 28
        %v6175 = vpop.permute.xlu0 %6174
        %6176 = vrot.lane.b32.xlu0 %v5293, 28
        %v6177 = vpop.permute.xlu0 %6176
        %6210 = vrot.lane.b32.xlu0 %v3827, 30
        %v6211 = vpop.permute.xlu0 %6210
        %6212 = vrot.lane.b32.xlu0 %v3925, 30
        %v6213 = vpop.permute.xlu0 %6212
        %6214 = vrot.lane.b32.xlu0 %v4023, 30
        %v6215 = vpop.permute.xlu0 %6214
        %6216 = vrot.lane.b32.xlu0 %v4121, 30
        %v6217 = vpop.permute.xlu0 %6216
        %6218 = vrot.lane.b32.xlu0 %v4219, 30
        %v6219 = vpop.permute.xlu0 %6218
        %6220 = vrot.lane.b32.xlu0 %v4317, 30
        %v6221 = vpop.permute.xlu0 %6220
        %6222 = vrot.lane.b32.xlu0 %v4415, 30
        %v6223 = vpop.permute.xlu0 %6222
        %6224 = vrot.lane.b32.xlu0 %v4513, 30
        %v6225 = vpop.permute.xlu0 %6224
        %6226 = vrot.lane.b32.xlu0 %v4611, 30
        %v6227 = vpop.permute.xlu0 %6226
        %6228 = vrot.lane.b32.xlu0 %v4709, 30
        %v6229 = vpop.permute.xlu0 %6228
        %6230 = vrot.lane.b32.xlu0 %v4807, 30
        %v6231 = vpop.permute.xlu0 %6230
        %6232 = vrot.lane.b32.xlu0 %v4905, 30
        %v6233 = vpop.permute.xlu0 %6232
        %6234 = vrot.lane.b32.xlu0 %v5003, 30
        %v6235 = vpop.permute.xlu0 %6234
        %6236 = vrot.lane.b32.xlu0 %v5101, 30
        %v6237 = vpop.permute.xlu0 %6236
        %6238 = vrot.lane.b32.xlu0 %v5199, 30
        %v6239 = vpop.permute.xlu0 %6238
        %6240 = vrot.lane.b32.xlu0 %v5297, 30
        %v6241 = vpop.permute.xlu0 %6240
        %v6258 = vsel %vm3475, %v3752, %v5315
        %v6259 = vsel %vm3475, %v3850, %v5317
        %v6260 = vsel %vm3475, %v3948, %v5319
        %v6261 = vsel %vm3475, %v4046, %v5321
        %v6262 = vsel %vm3475, %v4144, %v5323
        %v6263 = vsel %vm3475, %v4242, %v5325
        %v6264 = vsel %vm3475, %v4340, %v5327
        %v6265 = vsel %vm3475, %v4438, %v5329
        %v6266 = vsel %vm3475, %v4536, %v5331
        %v6267 = vsel %vm3475, %v4634, %v5333
        %v6268 = vsel %vm3475, %v4732, %v5335
        %v6269 = vsel %vm3475, %v4830, %v5337
        %v6270 = vsel %vm3475, %v4928, %v5339
        %v6271 = vsel %vm3475, %v5026, %v5341
        %v6272 = vsel %vm3475, %v5124, %v5343
        %v6273 = vsel %vm3475, %v5222, %v5345
        %v6274 = vsel %vm3492, %v6258, %v5379
        %v6275 = vsel %vm3492, %v6259, %v5381
        %v6276 = vsel %vm3492, %v6260, %v5383
        %v6277 = vsel %vm3492, %v6261, %v5385
        %v6278 = vsel %vm3492, %v6262, %v5387
        %v6279 = vsel %vm3492, %v6263, %v5389
        %v6280 = vsel %vm3492, %v6264, %v5391
        %v6281 = vsel %vm3492, %v6265, %v5393
        %v6282 = vsel %vm3492, %v6266, %v5395
        %v6283 = vsel %vm3492, %v6267, %v5397
        %v6284 = vsel %vm3492, %v6268, %v5399
        %v6285 = vsel %vm3492, %v6269, %v5401
        %v6286 = vsel %vm3492, %v6270, %v5403
        %v6287 = vsel %vm3492, %v6271, %v5405
        %v6288 = vsel %vm3492, %v6272, %v5407
        %v6289 = vsel %vm3492, %v6273, %v5409
        %v6290 = vsel %vm3509, %v6274, %v5443
        %v6291 = vsel %vm3509, %v6275, %v5445
        %v6292 = vsel %vm3509, %v6276, %v5447
        %v6293 = vsel %vm3509, %v6277, %v5449
        %v6294 = vsel %vm3509, %v6278, %v5451
        %v6295 = vsel %vm3509, %v6279, %v5453
        %v6296 = vsel %vm3509, %v6280, %v5455
        %v6297 = vsel %vm3509, %v6281, %v5457
        %v6298 = vsel %vm3509, %v6282, %v5459
        %v6299 = vsel %vm3509, %v6283, %v5461
        %v6300 = vsel %vm3509, %v6284, %v5463
        %v6301 = vsel %vm3509, %v6285, %v5465
        %v6302 = vsel %vm3509, %v6286, %v5467
        %v6303 = vsel %vm3509, %v6287, %v5469
        %v6304 = vsel %vm3509, %v6288, %v5471
        %v6305 = vsel %vm3509, %v6289, %v5473
        %v6306 = vsel %vm3526, %v6290, %v5507
        %v6307 = vsel %vm3526, %v6291, %v5509
        %v6308 = vsel %vm3526, %v6292, %v5511
        %v6309 = vsel %vm3526, %v6293, %v5513
        %v6310 = vsel %vm3526, %v6294, %v5515
        %v6311 = vsel %vm3526, %v6295, %v5517
        %v6312 = vsel %vm3526, %v6296, %v5519
        %v6313 = vsel %vm3526, %v6297, %v5521
        %v6314 = vsel %vm3526, %v6298, %v5523
        %v6315 = vsel %vm3526, %v6299, %v5525
        %v6316 = vsel %vm3526, %v6300, %v5527
        %v6317 = vsel %vm3526, %v6301, %v5529
        %v6318 = vsel %vm3526, %v6302, %v5531
        %v6319 = vsel %vm3526, %v6303, %v5533
        %v6320 = vsel %vm3526, %v6304, %v5535
        %v6321 = vsel %vm3526, %v6305, %v5537
        %v6322 = vsel %vm3543, %v6306, %v5571
        %v6323 = vsel %vm3543, %v6307, %v5573
        %v6324 = vsel %vm3543, %v6308, %v5575
        %v6325 = vsel %vm3543, %v6309, %v5577
        %v6326 = vsel %vm3543, %v6310, %v5579
        %v6327 = vsel %vm3543, %v6311, %v5581
        %v6328 = vsel %vm3543, %v6312, %v5583
        %v6329 = vsel %vm3543, %v6313, %v5585
        %v6330 = vsel %vm3543, %v6314, %v5587
        %v6331 = vsel %vm3543, %v6315, %v5589
        %v6332 = vsel %vm3543, %v6316, %v5591
        %v6333 = vsel %vm3543, %v6317, %v5593
        %v6334 = vsel %vm3543, %v6318, %v5595
        %v6335 = vsel %vm3543, %v6319, %v5597
        %v6336 = vsel %vm3543, %v6320, %v5599
        %v6337 = vsel %vm3543, %v6321, %v5601
        %v6338 = vsel %vm3560, %v6322, %v5635
        %v6339 = vsel %vm3560, %v6323, %v5637
        %v6340 = vsel %vm3560, %v6324, %v5639
        %v6341 = vsel %vm3560, %v6325, %v5641
        %v6342 = vsel %vm3560, %v6326, %v5643
        %v6343 = vsel %vm3560, %v6327, %v5645
        %v6344 = vsel %vm3560, %v6328, %v5647
        %v6345 = vsel %vm3560, %v6329, %v5649
        %v6346 = vsel %vm3560, %v6330, %v5651
        %v6347 = vsel %vm3560, %v6331, %v5653
        %v6348 = vsel %vm3560, %v6332, %v5655
        %v6349 = vsel %vm3560, %v6333, %v5657
        %v6350 = vsel %vm3560, %v6334, %v5659
        %v6351 = vsel %vm3560, %v6335, %v5661
        %v6352 = vsel %vm3560, %v6336, %v5663
        %v6353 = vsel %vm3560, %v6337, %v5665
        %v6354 = vsel %vm3577, %v6338, %v5699
        %v6355 = vsel %vm3577, %v6339, %v5701
        %v6356 = vsel %vm3577, %v6340, %v5703
        %v6357 = vsel %vm3577, %v6341, %v5705
        %v6358 = vsel %vm3577, %v6342, %v5707
        %v6359 = vsel %vm3577, %v6343, %v5709
        %v6360 = vsel %vm3577, %v6344, %v5711
        %v6361 = vsel %vm3577, %v6345, %v5713
        %v6362 = vsel %vm3577, %v6346, %v5715
        %v6363 = vsel %vm3577, %v6347, %v5717
        %v6364 = vsel %vm3577, %v6348, %v5719
        %v6365 = vsel %vm3577, %v6349, %v5721
        %v6366 = vsel %vm3577, %v6350, %v5723
        %v6367 = vsel %vm3577, %v6351, %v5725
        %v6368 = vsel %vm3577, %v6352, %v5727
        %v6369 = vsel %vm3577, %v6353, %v5729
        %v6370 = vsel %vm3594, %v6354, %v5763
        %v6371 = vsel %vm3594, %v6355, %v5765
        %v6372 = vsel %vm3594, %v6356, %v5767
        %v6373 = vsel %vm3594, %v6357, %v5769
        %v6374 = vsel %vm3594, %v6358, %v5771
        %v6375 = vsel %vm3594, %v6359, %v5773
        %v6376 = vsel %vm3594, %v6360, %v5775
        %v6377 = vsel %vm3594, %v6361, %v5777
        %v6378 = vsel %vm3594, %v6362, %v5779
        %v6379 = vsel %vm3594, %v6363, %v5781
        %v6380 = vsel %vm3594, %v6364, %v5783
        %v6381 = vsel %vm3594, %v6365, %v5785
        %v6382 = vsel %vm3594, %v6366, %v5787
        %v6383 = vsel %vm3594, %v6367, %v5789
        %v6384 = vsel %vm3594, %v6368, %v5791
        %v6385 = vsel %vm3594, %v6369, %v5793
        %v6386 = vsel %vm3611, %v6370, %v5827
        %v6387 = vsel %vm3611, %v6371, %v5829
        %v6388 = vsel %vm3611, %v6372, %v5831
        %v6389 = vsel %vm3611, %v6373, %v5833
        %v6390 = vsel %vm3611, %v6374, %v5835
        %v6391 = vsel %vm3611, %v6375, %v5837
        %v6392 = vsel %vm3611, %v6376, %v5839
        %v6393 = vsel %vm3611, %v6377, %v5841
        %v6394 = vsel %vm3611, %v6378, %v5843
        %v6395 = vsel %vm3611, %v6379, %v5845
        %v6396 = vsel %vm3611, %v6380, %v5847
        %v6397 = vsel %vm3611, %v6381, %v5849
        %v6398 = vsel %vm3611, %v6382, %v5851
        %v6399 = vsel %vm3611, %v6383, %v5853
        %v6400 = vsel %vm3611, %v6384, %v5855
        %v6401 = vsel %vm3611, %v6385, %v5857
        %v6402 = vsel %vm3628, %v6386, %v5891
        %v6403 = vsel %vm3628, %v6387, %v5893
        %v6404 = vsel %vm3628, %v6388, %v5895
        %v6405 = vsel %vm3628, %v6389, %v5897
        %v6406 = vsel %vm3628, %v6390, %v5899
        %v6407 = vsel %vm3628, %v6391, %v5901
        %v6408 = vsel %vm3628, %v6392, %v5903
        %v6409 = vsel %vm3628, %v6393, %v5905
        %v6410 = vsel %vm3628, %v6394, %v5907
        %v6411 = vsel %vm3628, %v6395, %v5909
        %v6412 = vsel %vm3628, %v6396, %v5911
        %v6413 = vsel %vm3628, %v6397, %v5913
        %v6414 = vsel %vm3628, %v6398, %v5915
        %v6415 = vsel %vm3628, %v6399, %v5917
        %v6416 = vsel %vm3628, %v6400, %v5919
        %v6417 = vsel %vm3628, %v6401, %v5921
        %v6418 = vsel %vm3645, %v6402, %v5955
        %v6419 = vsel %vm3645, %v6403, %v5957
        %v6420 = vsel %vm3645, %v6404, %v5959
        %v6421 = vsel %vm3645, %v6405, %v5961
        %v6422 = vsel %vm3645, %v6406, %v5963
        %v6423 = vsel %vm3645, %v6407, %v5965
        %v6424 = vsel %vm3645, %v6408, %v5967
        %v6425 = vsel %vm3645, %v6409, %v5969
        %v6426 = vsel %vm3645, %v6410, %v5971
        %v6427 = vsel %vm3645, %v6411, %v5973
        %v6428 = vsel %vm3645, %v6412, %v5975
        %v6429 = vsel %vm3645, %v6413, %v5977
        %v6430 = vsel %vm3645, %v6414, %v5979
        %v6431 = vsel %vm3645, %v6415, %v5981
        %v6432 = vsel %vm3645, %v6416, %v5983
        %v6433 = vsel %vm3645, %v6417, %v5985
        %v6434 = vsel %vm3662, %v6418, %v6019
        %v6435 = vsel %vm3662, %v6419, %v6021
        %v6436 = vsel %vm3662, %v6420, %v6023
        %v6437 = vsel %vm3662, %v6421, %v6025
        %v6438 = vsel %vm3662, %v6422, %v6027
        %v6439 = vsel %vm3662, %v6423, %v6029
        %v6440 = vsel %vm3662, %v6424, %v6031
        %v6441 = vsel %vm3662, %v6425, %v6033
        %v6442 = vsel %vm3662, %v6426, %v6035
        %v6443 = vsel %vm3662, %v6427, %v6037
        %v6444 = vsel %vm3662, %v6428, %v6039
        %v6445 = vsel %vm3662, %v6429, %v6041
        %v6446 = vsel %vm3662, %v6430, %v6043
        %v6447 = vsel %vm3662, %v6431, %v6045
        %v6448 = vsel %vm3662, %v6432, %v6047
        %v6449 = vsel %vm3662, %v6433, %v6049
        %v6450 = vsel %vm3679, %v6434, %v6083
        %v6451 = vsel %vm3679, %v6435, %v6085
        %v6452 = vsel %vm3679, %v6436, %v6087
        %v6453 = vsel %vm3679, %v6437, %v6089
        %v6454 = vsel %vm3679, %v6438, %v6091
        %v6455 = vsel %vm3679, %v6439, %v6093
        %v6456 = vsel %vm3679, %v6440, %v6095
        %v6457 = vsel %vm3679, %v6441, %v6097
        %v6458 = vsel %vm3679, %v6442, %v6099
        %v6459 = vsel %vm3679, %v6443, %v6101
        %v6460 = vsel %vm3679, %v6444, %v6103
        %v6461 = vsel %vm3679, %v6445, %v6105
        %v6462 = vsel %vm3679, %v6446, %v6107
        %v6463 = vsel %vm3679, %v6447, %v6109
        %v6464 = vsel %vm3679, %v6448, %v6111
        %v6465 = vsel %vm3679, %v6449, %v6113
        %v6466 = vsel %vm3696, %v6450, %v6147
        %v6467 = vsel %vm3696, %v6451, %v6149
        %v6468 = vsel %vm3696, %v6452, %v6151
        %v6469 = vsel %vm3696, %v6453, %v6153
        %v6470 = vsel %vm3696, %v6454, %v6155
        %v6471 = vsel %vm3696, %v6455, %v6157
        %v6472 = vsel %vm3696, %v6456, %v6159
        %v6473 = vsel %vm3696, %v6457, %v6161
        %v6474 = vsel %vm3696, %v6458, %v6163
        %v6475 = vsel %vm3696, %v6459, %v6165
        %v6476 = vsel %vm3696, %v6460, %v6167
        %v6477 = vsel %vm3696, %v6461, %v6169
        %v6478 = vsel %vm3696, %v6462, %v6171
        %v6479 = vsel %vm3696, %v6463, %v6173
        %v6480 = vsel %vm3696, %v6464, %v6175
        %v6481 = vsel %vm3696, %v6465, %v6177
        %v6482 = vsel %vm3713, %v6466, %v6211
        %v6483 = vsel %vm3713, %v6467, %v6213
        %v6484 = vsel %vm3713, %v6468, %v6215
        %v6485 = vsel %vm3713, %v6469, %v6217
        %v6486 = vsel %vm3713, %v6470, %v6219
        %v6487 = vsel %vm3713, %v6471, %v6221
        %v6488 = vsel %vm3713, %v6472, %v6223
        %v6489 = vsel %vm3713, %v6473, %v6225
        %v6490 = vsel %vm3713, %v6474, %v6227
        %v6491 = vsel %vm3713, %v6475, %v6229
        %v6492 = vsel %vm3713, %v6476, %v6231
        %v6493 = vsel %vm3713, %v6477, %v6233
        %v6494 = vsel %vm3713, %v6478, %v6235
        %v6495 = vsel %vm3713, %v6479, %v6237
        %v6496 = vsel %vm3713, %v6480, %v6239
        %v6497 = vsel %vm3713, %v6481, %v6241
        %v6514 = vrot.slane %v6482, 7
        %v6515 = vrot.slane %v6483, 7
        %v6516 = vrot.slane %v6484, 7
        %v6517 = vrot.slane %v6485, 7
        %v6518 = vrot.slane %v6486, 7
        %v6519 = vrot.slane %v6487, 7
        %v6520 = vrot.slane %v6488, 7
        %v6521 = vrot.slane %v6489, 7
        %v6522 = vrot.slane %v6490, 7
        %v6523 = vrot.slane %v6491, 7
        %v6524 = vrot.slane %v6492, 7
        %v6525 = vrot.slane %v6493, 7
        %v6526 = vrot.slane %v6494, 7
        %v6527 = vrot.slane %v6495, 7
        %v6528 = vrot.slane %v6496, 7
        %v6529 = vrot.slane %v6497, 7
        %vm6546 = vcmask 1040384
        %v6547 = vsel %vm6546, %v3714, %v6514
        %v6548 = vsel %vm6546, %v3715, %v6515
        %v6549 = vsel %vm6546, %v3716, %v6516
        %v6550 = vsel %vm6546, %v3717, %v6517
        %v6551 = vsel %vm6546, %v3718, %v6518
        %v6552 = vsel %vm6546, %v3719, %v6519
        %v6553 = vsel %vm6546, %v3720, %v6520
        %v6554 = vsel %vm6546, %v3721, %v6521
        %v6555 = vsel %vm6546, %v3722, %v6522
        %v6556 = vsel %vm6546, %v3723, %v6523
        %v6557 = vsel %vm6546, %v3724, %v6524
        %v6558 = vsel %vm6546, %v3725, %v6525
        %v6559 = vsel %vm6546, %v3726, %v6526
        %v6560 = vsel %vm6546, %v3727, %v6527
        %v6561 = vsel %vm6546, %v3728, %v6528
        %v6562 = vsel %vm6546, %v3729, %v6529
        %v6579 = vcombine.low %v6547, %v6548
        %v6580 = vcombine.low %v6549, %v6550
        %v6582 = vunpack.c.l.s4 1983009808
        %v6583 = vunpack.c.0.s8 %v6582
        %v6584 = vlaneseq
        %v6585 = vshrl.u32 %v6584, 7
        %v6586 = vsub.s32 %v6583, %v6585
        %v6587 = vrot.slane %v6579, %v6586
        %v6589 = vunpack.c.l.s4 1983009808
        %v6590 = vunpack.c.0.s8 %v6589
        %v6591 = vlaneseq
        %v6592 = vshrl.u32 %v6591, 7
        %v6593 = vsub.s32 %v6590, %v6592
        %v6594 = vrot.slane %v6580, %v6593
        %v6595 = vcombine.low %v6587, %v6594
        %v6596 = vcombine.low %v6551, %v6552
        %v6597 = vcombine.low %v6553, %v6554
        %v6599 = vunpack.c.l.s4 1983009808
        %v6600 = vunpack.c.0.s8 %v6599
        %v6601 = vlaneseq
        %v6602 = vshrl.u32 %v6601, 7
        %v6603 = vsub.s32 %v6600, %v6602
        %v6604 = vrot.slane %v6596, %v6603
        %v6606 = vunpack.c.l.s4 1983009808
        %v6607 = vunpack.c.0.s8 %v6606
        %v6608 = vlaneseq
        %v6609 = vshrl.u32 %v6608, 7
        %v6610 = vsub.s32 %v6607, %v6609
        %v6611 = vrot.slane %v6597, %v6610
        %v6612 = vcombine.low %v6604, %v6611
        %v6613 = vcombine.low %v6555, %v6556
        %v6614 = vcombine.low %v6557, %v6558
        %v6616 = vunpack.c.l.s4 1983009808
        %v6617 = vunpack.c.0.s8 %v6616
        %v6618 = vlaneseq
        %v6619 = vshrl.u32 %v6618, 7
        %v6620 = vsub.s32 %v6617, %v6619
        %v6621 = vrot.slane %v6613, %v6620
        %v6623 = vunpack.c.l.s4 1983009808
        %v6624 = vunpack.c.0.s8 %v6623
        %v6625 = vlaneseq
        %v6626 = vshrl.u32 %v6625, 7
        %v6627 = vsub.s32 %v6624, %v6626
        %v6628 = vrot.slane %v6614, %v6627
        %v6629 = vcombine.low %v6621, %v6628
        %v6630 = vcombine.low %v6559, %v6560
        %v6631 = vcombine.low %v6561, %v6562
        %v6633 = vunpack.c.l.s4 1983009808
        %v6634 = vunpack.c.0.s8 %v6633
        %v6635 = vlaneseq
        %v6636 = vshrl.u32 %v6635, 7
        %v6637 = vsub.s32 %v6634, %v6636
        %v6638 = vrot.slane %v6630, %v6637
        %v6640 = vunpack.c.l.s4 1983009808
        %v6641 = vunpack.c.0.s8 %v6640
        %v6642 = vlaneseq
        %v6643 = vshrl.u32 %v6642, 7
        %v6644 = vsub.s32 %v6641, %v6643
        %v6645 = vrot.slane %v6631, %v6644
        %v6646 = vcombine.low %v6638, %v6645
        %vm6651 = vcmask 261120
        %6652 = vst.msk [vmem:[%s166] sm:$0xff] %vm6651, %v6595
        %6653 = vst.msk [vmem:[%s166 + $0x8] sm:$0xff] %vm6651, %v6612
        %6654 = vst.msk [vmem:[%s166 + $0x10] sm:$0xff] %vm6651, %v6629
        %6655 = vst.msk [vmem:[%s166 + $0x18] sm:$0xff] %vm6651, %v6646
        %s6656 = sand.u32 %s79, 1
        %s6657 = scalar_lea.sflag [#allocation4], %s6656
        %s6658 = sand.u32 %s79, 1
        %s6659 = smul.addr %s6658, 32
        %s6660 = scalar_lea.vmem [#allocation5], %s6659
        // Predicated region
        $region29: #{tpu_custom_call.1} parent=23 // pred_check
          %p6661 = pneg %p89
        $region30: #{tpu_custom_call.1} parent=23 // pred_check_branch
          %6663 = sbr.rel (%p6661) target = $region32
        $region31: #{tpu_custom_call.1} parent=23 // pred_region
          %s6664 = smul.u32 4, %s25
          %s6666 = ssub.s32 512, 512
          %6667 = vsyncadd %s6657, %s6666
          %s6668 = smul.addr %s24, 4
          %s6669 = sadd.s32 %s6664, %s6668
          %s6670 = smul.addr %s23, 4
          %s6671 = sadd.s32 %s6669, %s6670
          %s6672 = smul.addr %s6671, 128
          %s6673 = scalar_lea.hbm %s1, %s6672
          %s6674 = sshll.u32 %s6660, 4
          %s6675 = int_to_ptr.vmem [resolvable:$true] %s6674
          %6680 = dma.vmem_to_hbm [thread:$0]  %s6675, 512, %s6673, %s6657, 128, 128, 8
        $region32: #{tpu_custom_call.1} parent=23 // pred_fallthru
          _
      $region24: #{tpu_custom_call.1} parent=5 // pred_fallthru
        _
      %p6681 = scmp.le.s32.totalorder 2, %s13
      // Predicated region
      $region33: #{tpu_custom_call.1} parent=5 // pred_check
        %p6682 = pneg %p6681
      $region34: #{tpu_custom_call.1} parent=5 // pred_check_branch
        %6684 = sbr.rel (%p6682) target = $region36
      $region35: #{tpu_custom_call.1} parent=5 // pred_region
        %s6685 = ssub.s32 %s13, 2
        // Predicated region
        $region37: #{tpu_custom_call.1} parent=35 // pred_check
          %p6686 = pneg %p95
        $region38: #{tpu_custom_call.1} parent=35 // pred_check_branch
          %6688 = sbr.rel (%p6686) target = $region40
        $region39: #{tpu_custom_call.1} parent=35 // pred_region
          %s6689 = sand.u32 %s80, 1
          %s6690 = scalar_lea.sflag [#allocation4], %s6689
          %s6691 = sand.u32 %s80, 1
          %s6692 = smul.addr %s6691, 32
          %s6693 = scalar_lea.vmem [#allocation5], %s6692
          %6694 = dma.done %s6690, 512
        $region40: #{tpu_custom_call.1} parent=35 // pred_fallthru
          _
      $region36: #{tpu_custom_call.1} parent=5 // pred_fallthru
        _
    $region6: #{tpu_custom_call.1} parent=1 // loop_footer
      %s17 = sadd.s32 1, %s13
    $region7: #{tpu_custom_call.1} parent=1 // loop_footer_branch
      %12 = sbr.rel target = $region3
    $region8: #{tpu_custom_call.1} parent=1 // loop_exit
      _
    %6695 = vsyncpa [#allocation3], 1
    %s6696 = scalar_lea.sflag [#allocation3], 1
    %6697 = vsyncpa %s6696, 1
    %6698 = vsyncpa [#allocation4], 1
    %s6699 = scalar_lea.sflag [#allocation4], 1
    %6700 = vsyncpa %s6699, 1

</llo_original>
